<compile_context>
chip_gen: v6e
topology: v6e:2x2x1
jax: 0.10.0
libtpu: 0.0.40
codegen_flags: <defaults>
</compile_context>

<pallas_src>
import functools
import numpy as np

import jax
import jax.numpy as jnp
from jax.experimental import pallas as pl
from jax.experimental.pallas import tpu as pltpu

# ----------------------------- SKConv config --------------------------------
FEATURES = 32          # input/output channels (== G -> depthwise groups)
M = 2                  # number of branches
G = 32                 # conv groups
R = 16
L = 32
D = max(FEATURES // R, L)   # bottleneck dim d
B, H, W = 2, 16, 16
PAD = M                # common spatial padding = max dilation over branches
EPS = 1e-5


# ------------------------------- Pallas kernel ------------------------------
def skconv_kernel(xpad_ref, wtap_ref, bn_sh_ref, wfc_ref, fc_sh_ref,
                  wfcs_ref, bfcs_ref, out_ref, feat_ref,
                  *, h, w, c, m_branches, pad):
    """One grid step processes a (bb, h, w*c) lane-dense batch block.

    Refs:
      xpad_ref : (bb, h+2p, (w+2p)*c)  padded input, lane-dense
      wtap_ref : (m, 9, w*c)   depthwise taps (branch BN scale folded), tiled across w
      bn_sh_ref: (m, w*c)      folded branch BN shift, tiled
      wfc_ref  : (w*c, d)      squeeze FC weight (1/(h*w) GAP + BN scale folded)
      fc_sh_ref: (1, d)        folded squeeze BN shift
      wfcs_ref : (d, m*w*c)    excitation weights, branch-concatenated, tiled
      bfcs_ref : (1, m*w*c)    excitation biases, branch-concatenated, tiled
      out_ref  : (bb, h, w*c)
      feat_ref : (m, bb, h, w*c)  VMEM scratch for branch features
    """
    wc = w * c
    bb = out_ref.shape[0]
    gap = jnp.zeros((bb, wc), jnp.float32)

    # ---- M depthwise dilated 3x3 branches (batched VPU FMAs) + BN shift + ReLU
    for mi in range(m_branches):
        dil = mi + 1
        acc = jnp.zeros((bb, h, wc), jnp.float32)
        for kh in range(3):
            for kw in range(3):
                h0 = pad + dil * (kh - 1)
                w0 = pad + dil * (kw - 1)
                # lane-dense window: rows h0..h0+h, lanes w0*c .. (w0+w)*c, all batches
                xs = xpad_ref[:, h0:h0 + h, w0 * c:(w0 + w) * c]        # (bb, h, wc)
                acc = acc + xs * wtap_ref[mi, kh * 3 + kw][None, None, :]
        y = jnp.maximum(acc + bn_sh_ref[mi][None, None, :], 0.0)
        feat_ref[mi] = y
        gap = gap + jnp.sum(y, axis=1)                                  # (bb, wc)

    # ---- squeeze: one MXU matmul for the whole batch block
    z = jnp.dot(gap, wfc_ref[...], preferred_element_type=jnp.float32)  # (bb, d)
    z = jnp.maximum(z + fc_sh_ref[...], 0.0)

    # ---- excitation: single fused matmul, then 128-aligned lane slices per branch
    att_all = jnp.dot(z, wfcs_ref[...], preferred_element_type=jnp.float32)
    att_all = att_all + bfcs_ref[...]                                   # (bb, m*wc)
    att = [att_all[:, mi * wc:(mi + 1) * wc] for mi in range(m_branches)]

    # ---- softmax over branches
    amax = att[0]
    for a in att[1:]:
        amax = jnp.maximum(amax, a)
    exps = [jnp.exp(a - amax) for a in att]
    tot = exps[0]
    for e in exps[1:]:
        tot = tot + e
    # EUP approximate reciprocal + one Newton step to keep full f32 accuracy.
    inv_tot = pl.reciprocal(tot, approx=True)
    inv_tot = inv_tot * (2.0 - tot * inv_tot)

    # ---- attention-weighted sum of branch features (weights computed once)
    out = feat_ref[0] * (exps[0] * inv_tot)[:, None, :]
    for mi in range(1, m_branches):
        out = out + feat_ref[mi] * (exps[mi] * inv_tot)[:, None, :]
    out_ref[...] = out.astype(out_ref.dtype)


# ------------------------------- wrapper -------------------------------------
def _default_batch_block(b):
    """Fold batch into one grid step on single-TC chips; keep grid=(B,) elsewhere."""
    try:
        kind = jax.devices()[0].device_kind.lower()
    except Exception:
        return 1
    if any(tag in kind for tag in ("v5e", "v5 lite", "v5lite", "v6")):
        return b          # single TensorCore: amortize per-grid-step overhead
    return 1              # v7x (2 TCs) / unknown: parallel grid over batch


def skconv_forward(x_nchw, kparams, batch_block=None):
    (wtap_t, bn_sh_t, wfc_t, fc_sh, wfcs_cat, bfcs_cat) = kparams
    b, c, h, w = x_nchw.shape
    if batch_block is None:
        batch_block = _default_batch_block(b)
    bb = batch_block
    assert b % bb == 0

    x = jnp.transpose(x_nchw, (0, 2, 3, 1))                        # NHWC
    xpad = jnp.pad(x, ((0, 0), (PAD, PAD), (PAD, PAD), (0, 0)))
    hp, wp = h + 2 * PAD, w + 2 * PAD
    xpad = xpad.reshape(b, hp, wp * c)                             # lane-dense input
    wc = w * c

    kernel = functools.partial(skconv_kernel, h=h, w=w, c=c,
                               m_branches=M, pad=PAD)

    conv_flops = 2 * b * M * 9 * h * w * c
    fc_flops = 2 * b * (wc * D + D * M * wc)
    n_weight_elems = sum(int(a.size) for a in kparams)
    cost = pl.CostEstimate(
        flops=int(conv_flops + fc_flops),
        transcendentals=int(b * M * wc),
        bytes_accessed=int(4 * (xpad.size + b * h * wc + n_weight_elems)))

    out = pl.pallas_call(
        kernel,
        out_shape=jax.ShapeDtypeStruct((b, h, wc), x.dtype),
        grid_spec=pltpu.PrefetchScalarGridSpec(
            num_scalar_prefetch=0,
            grid=(b // bb,),
            in_specs=[
                pl.BlockSpec((bb, hp, wp * c), lambda i: (i, 0, 0)),   # padded x
                pl.BlockSpec((M, 9, wc), lambda i: (0, 0, 0)),         # depthwise taps
                pl.BlockSpec((M, wc), lambda i: (0, 0)),               # branch BN shift
                pl.BlockSpec((wc, D), lambda i: (0, 0)),               # squeeze FC (tiled)
                pl.BlockSpec((1, D), lambda i: (0, 0)),                # fc BN shift
                pl.BlockSpec((D, M * wc), lambda i: (0, 0)),           # excitation weights
                pl.BlockSpec((1, M * wc), lambda i: (0, 0)),           # excitation biases
            ],
            out_specs=pl.BlockSpec((bb, h, wc), lambda i: (i, 0, 0)),  # lane-dense out
            scratch_shapes=[pltpu.VMEM((M, bb, h, wc), jnp.float32)],  # branch features
        ),
        compiler_params=pltpu.CompilerParams(
            dimension_semantics=("parallel",)),
        cost_estimate=cost,
    )(xpad, wtap_t, bn_sh_t, wfc_t, fc_sh, wfcs_cat, bfcs_cat)

    out = out.reshape(b, h, w, c)
    return jnp.transpose(out, (0, 3, 1, 2))                        # back to NCHW


# --------------------------- parameter construction --------------------------
def make_params(key):
    cpg = FEATURES // G
    k = jax.random.split(key, 12)
    return dict(
        w_branch=jax.random.normal(k[0], (M, FEATURES, cpg, 3, 3), jnp.float32) * 0.2,
        bn_gamma=1.0 + 0.1 * jax.random.normal(k[1], (M, FEATURES), jnp.float32),
        bn_beta=0.1 * jax.random.normal(k[2], (M, FEATURES), jnp.float32),
        bn_mean=0.05 * jax.random.normal(k[3], (M, FEATURES), jnp.float32),
        bn_var=1.0 + 0.1 * jnp.abs(jax.random.normal(k[4], (M, FEATURES), jnp.float32)),
        w_fc=jax.random.normal(k[5], (D, FEATURES), jnp.float32) * 0.2,
        fc_gamma=1.0 + 0.1 * jax.random.normal(k[6], (D,), jnp.float32),
        fc_beta=0.1 * jax.random.normal(k[7], (D,), jnp.float32),
        fc_mean=0.05 * jax.random.normal(k[8], (D,), jnp.float32),
        fc_var=1.0 + 0.1 * jnp.abs(jax.random.normal(k[9], (D,), jnp.float32)),
        w_fcs=jax.random.normal(k[10], (M, FEATURES, D), jnp.float32) * 0.2,
        b_fcs=jax.random.normal(k[11], (M, FEATURES), jnp.float32) * 0.1,
    )


def prepare_kernel_params(p, h, w):
    """Specialize depthwise conv weights + fold eval-mode BN, pre-tiled to W*C lanes."""
    cpg = FEATURES // G
    assert cpg == 1, "only the depthwise (G == features) path is implemented"
    # depthwise taps: (M, 9, C) with tap index kh*3+kw, channel ordering cout == cin
    wtap = jnp.transpose(p["w_branch"][:, :, 0], (0, 2, 3, 1)).reshape(M, 9, FEATURES)

    bn_sc = p["bn_gamma"] / jnp.sqrt(p["bn_var"] + EPS)              # (M, C)
    bn_sh = p["bn_beta"] - p["bn_mean"] * bn_sc
    wtap = wtap * bn_sc[:, None, :]                                  # fold BN scale into taps
    wtap_t = jnp.tile(wtap, (1, 1, w))                               # (M, 9, w*C)
    bn_sh_t = jnp.tile(bn_sh, (1, w))                                # (M, w*C)

    # squeeze FC: rows tiled to w*C, GAP 1/(h*w) and squeeze-BN scale folded in
    fc_sc = p["fc_gamma"] / jnp.sqrt(p["fc_var"] + EPS)              # (D,)
    fc_sh = (p["fc_beta"] - p["fc_mean"] * fc_sc)[None, :]           # (1, D)
    wfc_t = jnp.tile(jnp.transpose(p["w_fc"], (1, 0)), (w, 1)) * (fc_sc[None, :] / float(h * w))

    # excitation: columns tiled to w*C and concatenated over branches
    wfcs_t = jnp.tile(jnp.transpose(p["w_fcs"], (0, 2, 1)), (1, 1, w))        # (M, D, w*C)
    wfcs_cat = jnp.concatenate([wfcs_t[mi] for mi in range(M)], axis=1)       # (D, M*w*C)
    bfcs_cat = jnp.tile(p["b_fcs"], (1, w)).reshape(1, M * w * FEATURES)      # (1, M*w*C)
    return (wtap_t, bn_sh_t, wfc_t, fc_sh, wfcs_cat, bfcs_cat)


# ----------------------------- pure-JAX reference ----------------------------
def skconv_reference(x_nchw, p):
    x = jnp.transpose(x_nchw, (0, 2, 3, 1))
    bn_sc = p["bn_gamma"] / jnp.sqrt(p["bn_var"] + EPS)
    bn_sh = p["bn_beta"] - p["bn_mean"] * bn_sc
    fc_sc = p["fc_gamma"] / jnp.sqrt(p["fc_var"] + EPS)
    fc_sh = p["fc_beta"] - p["fc_mean"] * fc_sc
    feats = []
    for mi in range(M):
        dil = mi + 1
        rhs = jnp.transpose(p["w_branch"][mi], (2, 3, 1, 0))         # HWIO
        y = jax.lax.conv_general_dilated(
            x, rhs, window_strides=(1, 1),
            padding=[(dil, dil), (dil, dil)],
            rhs_dilation=(dil, dil),
            feature_group_count=G,
            dimension_numbers=("NHWC", "HWIO", "NHWC"))
        feats.append(jnp.maximum(y * bn_sc[mi] + bn_sh[mi], 0.0))
    U = feats[0]
    for f in feats[1:]:
        U = U + f
    S = jnp.mean(U, axis=(1, 2))                                     # (B, C)
    Z = jnp.maximum(S @ p["w_fc"].T * fc_sc + fc_sh, 0.0)            # (B, D)
    att = jnp.stack([Z @ p["w_fcs"][mi].T + p["b_fcs"][mi] for mi in range(M)], axis=1)
    att = jax.nn.softmax(att, axis=1)                                # (B, M, C)
    out = feats[0] * att[:, 0][:, None, None, :]
    for mi in range(1, M):
        out = out + feats[mi] * att[:, mi][:, None, None, :]
    return jnp.transpose(out, (0, 3, 1, 2))


# ----------------------------------- main ------------------------------------
if __name__ == "__main__":
    key = jax.random.PRNGKey(0)
    kx, kp = jax.random.split(key)
    x = jax.random.normal(kx, (B, FEATURES, H, W), jnp.float32)      # NCHW, like PyTorch
    params = make_params(kp)
    kparams = prepare_kernel_params(params, H, W)

    out = jax.block_until_ready(skconv_forward(x, kparams))
    assert out.shape == (B, FEATURES, H, W)

    ref = jax.block_until_ready(skconv_reference(x, params))
    np.testing.assert_allclose(np.asarray(out), np.asarray(ref), rtol=2e-4, atol=2e-4)

    print("KERNEL_OK")
</pallas_src>

<mosaic_0001>
module attributes {stable_mosaic.version = 11 : i64} {
  func.func @skconv_kernel(%arg0: i32, %arg1: memref<1x20x640xf32, #tpu.memory_space<vmem>>, %arg2: memref<2x9x512xf32, #tpu.memory_space<vmem>>, %arg3: memref<2x512xf32, #tpu.memory_space<vmem>>, %arg4: memref<512x32xf32, #tpu.memory_space<vmem>>, %arg5: memref<1x32xf32, #tpu.memory_space<vmem>>, %arg6: memref<32x1024xf32, #tpu.memory_space<vmem>>, %arg7: memref<1x1024xf32, #tpu.memory_space<vmem>>, %arg8: memref<1x16x512xf32, #tpu.memory_space<vmem>>, %arg9: memref<2x1x16x512xf32, #tpu.memory_space<vmem>>) attributes {dimension_semantics = [#tpu.dimension_semantics<parallel>], iteration_bounds = array<i64: 2>, scalar_prefetch = 0 : i64, scratch_operands = 1 : i64, tpu.core_type = #tpu.core_type<tc>, window_params = [{transform_indices = @transform_0, window_bounds = array<i64: 1, 20, 640>}, {pipeline_mode = #tpu.pipeline_mode<synchronous>, transform_indices = @transform_1, window_bounds = array<i64: 2, 9, 512>}, {pipeline_mode = #tpu.pipeline_mode<synchronous>, transform_indices = @transform_2, window_bounds = array<i64: 2, 512>}, {pipeline_mode = #tpu.pipeline_mode<synchronous>, transform_indices = @transform_3, window_bounds = array<i64: 512, 32>}, {pipeline_mode = #tpu.pipeline_mode<synchronous>, transform_indices = @transform_4, window_bounds = array<i64: 1, 32>}, {pipeline_mode = #tpu.pipeline_mode<synchronous>, transform_indices = @transform_5, window_bounds = array<i64: 32, 1024>}, {pipeline_mode = #tpu.pipeline_mode<synchronous>, transform_indices = @transform_6, window_bounds = array<i64: 1, 1024>}, {transform_indices = @transform_7, window_bounds = array<i64: 1, 16, 512>}]} {
    %cst = arith.constant 0.000000e+00 : f32
    %0 = vector.broadcast %cst : f32 to vector<1x512xf32>
    %cst_0 = arith.constant 0.000000e+00 : f32
    %1 = vector.broadcast %cst_0 : f32 to vector<1x16x512xf32>
    %c0 = arith.constant 0 : index
    %c1 = arith.constant 1 : index
    %c32 = arith.constant 32 : index
    %2 = vector.load %arg1[%c0, %c1, %c32] : memref<1x20x640xf32, #tpu.memory_space<vmem>>, vector<1x16x512xf32>
    %c0_1 = arith.constant 0 : index
    %c0_2 = arith.constant 0 : index
    %c0_3 = arith.constant 0 : index
    %3 = vector.load %arg2[%c0_1, %c0_2, %c0_3] : memref<2x9x512xf32, #tpu.memory_space<vmem>>, vector<1x1x512xf32>
    %4 = vector.shape_cast %3 : vector<1x1x512xf32> to vector<512xf32>
    %5 = vector.shape_cast %4 : vector<512xf32> to vector<1x1x512xf32>
    %6 = vector.broadcast %5 : vector<1x1x512xf32> to vector<1x16x512xf32>
    %7 = arith.mulf %2, %6 : vector<1x16x512xf32>
    %8 = arith.addf %1, %7 : vector<1x16x512xf32>
    %c0_4 = arith.constant 0 : index
    %c1_5 = arith.constant 1 : index
    %c64 = arith.constant 64 : index
    %9 = vector.load %arg1[%c0_4, %c1_5, %c64] : memref<1x20x640xf32, #tpu.memory_space<vmem>>, vector<1x16x512xf32>
    %c0_6 = arith.constant 0 : index
    %c1_7 = arith.constant 1 : index
    %c0_8 = arith.constant 0 : index
    %10 = vector.load %arg2[%c0_6, %c1_7, %c0_8] : memref<2x9x512xf32, #tpu.memory_space<vmem>>, vector<1x1x512xf32>
    %11 = vector.shape_cast %10 : vector<1x1x512xf32> to vector<512xf32>
    %12 = vector.shape_cast %11 : vector<512xf32> to vector<1x1x512xf32>
    %13 = vector.broadcast %12 : vector<1x1x512xf32> to vector<1x16x512xf32>
    %14 = arith.mulf %9, %13 : vector<1x16x512xf32>
    %15 = arith.addf %8, %14 : vector<1x16x512xf32>
    %c0_9 = arith.constant 0 : index
    %c1_10 = arith.constant 1 : index
    %c96 = arith.constant 96 : index
    %16 = vector.load %arg1[%c0_9, %c1_10, %c96] : memref<1x20x640xf32, #tpu.memory_space<vmem>>, vector<1x16x512xf32>
    %c0_11 = arith.constant 0 : index
    %c2 = arith.constant 2 : index
    %c0_12 = arith.constant 0 : index
    %17 = vector.load %arg2[%c0_11, %c2, %c0_12] : memref<2x9x512xf32, #tpu.memory_space<vmem>>, vector<1x1x512xf32>
    %18 = vector.shape_cast %17 : vector<1x1x512xf32> to vector<512xf32>
    %19 = vector.shape_cast %18 : vector<512xf32> to vector<1x1x512xf32>
    %20 = vector.broadcast %19 : vector<1x1x512xf32> to vector<1x16x512xf32>
    %21 = arith.mulf %16, %20 : vector<1x16x512xf32>
    %22 = arith.addf %15, %21 : vector<1x16x512xf32>
    %c0_13 = arith.constant 0 : index
    %c2_14 = arith.constant 2 : index
    %c32_15 = arith.constant 32 : index
    %23 = vector.load %arg1[%c0_13, %c2_14, %c32_15] : memref<1x20x640xf32, #tpu.memory_space<vmem>>, vector<1x16x512xf32>
    %c0_16 = arith.constant 0 : index
    %c3 = arith.constant 3 : index
    %c0_17 = arith.constant 0 : index
    %24 = vector.load %arg2[%c0_16, %c3, %c0_17] : memref<2x9x512xf32, #tpu.memory_space<vmem>>, vector<1x1x512xf32>
    %25 = vector.shape_cast %24 : vector<1x1x512xf32> to vector<512xf32>
    %26 = vector.shape_cast %25 : vector<512xf32> to vector<1x1x512xf32>
    %27 = vector.broadcast %26 : vector<1x1x512xf32> to vector<1x16x512xf32>
    %28 = arith.mulf %23, %27 : vector<1x16x512xf32>
    %29 = arith.addf %22, %28 : vector<1x16x512xf32>
    %c0_18 = arith.constant 0 : index
    %c2_19 = arith.constant 2 : index
    %c64_20 = arith.constant 64 : index
    %30 = vector.load %arg1[%c0_18, %c2_19, %c64_20] : memref<1x20x640xf32, #tpu.memory_space<vmem>>, vector<1x16x512xf32>
    %c0_21 = arith.constant 0 : index
    %c4 = arith.constant 4 : index
    %c0_22 = arith.constant 0 : index
    %31 = vector.load %arg2[%c0_21, %c4, %c0_22] : memref<2x9x512xf32, #tpu.memory_space<vmem>>, vector<1x1x512xf32>
    %32 = vector.shape_cast %31 : vector<1x1x512xf32> to vector<512xf32>
    %33 = vector.shape_cast %32 : vector<512xf32> to vector<1x1x512xf32>
    %34 = vector.broadcast %33 : vector<1x1x512xf32> to vector<1x16x512xf32>
    %35 = arith.mulf %30, %34 : vector<1x16x512xf32>
    %36 = arith.addf %29, %35 : vector<1x16x512xf32>
    %c0_23 = arith.constant 0 : index
    %c2_24 = arith.constant 2 : index
    %c96_25 = arith.constant 96 : index
    %37 = vector.load %arg1[%c0_23, %c2_24, %c96_25] : memref<1x20x640xf32, #tpu.memory_space<vmem>>, vector<1x16x512xf32>
    %c0_26 = arith.constant 0 : index
    %c5 = arith.constant 5 : index
    %c0_27 = arith.constant 0 : index
    %38 = vector.load %arg2[%c0_26, %c5, %c0_27] : memref<2x9x512xf32, #tpu.memory_space<vmem>>, vector<1x1x512xf32>
    %39 = vector.shape_cast %38 : vector<1x1x512xf32> to vector<512xf32>
    %40 = vector.shape_cast %39 : vector<512xf32> to vector<1x1x512xf32>
    %41 = vector.broadcast %40 : vector<1x1x512xf32> to vector<1x16x512xf32>
    %42 = arith.mulf %37, %41 : vector<1x16x512xf32>
    %43 = arith.addf %36, %42 : vector<1x16x512xf32>
    %c0_28 = arith.constant 0 : index
    %c3_29 = arith.constant 3 : index
    %c32_30 = arith.constant 32 : index
    %44 = vector.load %arg1[%c0_28, %c3_29, %c32_30] : memref<1x20x640xf32, #tpu.memory_space<vmem>>, vector<1x16x512xf32>
    %c0_31 = arith.constant 0 : index
    %c6 = arith.constant 6 : index
    %c0_32 = arith.constant 0 : index
    %45 = vector.load %arg2[%c0_31, %c6, %c0_32] : memref<2x9x512xf32, #tpu.memory_space<vmem>>, vector<1x1x512xf32>
    %46 = vector.shape_cast %45 : vector<1x1x512xf32> to vector<512xf32>
    %47 = vector.shape_cast %46 : vector<512xf32> to vector<1x1x512xf32>
    %48 = vector.broadcast %47 : vector<1x1x512xf32> to vector<1x16x512xf32>
    %49 = arith.mulf %44, %48 : vector<1x16x512xf32>
    %50 = arith.addf %43, %49 : vector<1x16x512xf32>
    %c0_33 = arith.constant 0 : index
    %c3_34 = arith.constant 3 : index
    %c64_35 = arith.constant 64 : index
    %51 = vector.load %arg1[%c0_33, %c3_34, %c64_35] : memref<1x20x640xf32, #tpu.memory_space<vmem>>, vector<1x16x512xf32>
    %c0_36 = arith.constant 0 : index
    %c7 = arith.constant 7 : index
    %c0_37 = arith.constant 0 : index
    %52 = vector.load %arg2[%c0_36, %c7, %c0_37] : memref<2x9x512xf32, #tpu.memory_space<vmem>>, vector<1x1x512xf32>
    %53 = vector.shape_cast %52 : vector<1x1x512xf32> to vector<512xf32>
    %54 = vector.shape_cast %53 : vector<512xf32> to vector<1x1x512xf32>
    %55 = vector.broadcast %54 : vector<1x1x512xf32> to vector<1x16x512xf32>
    %56 = arith.mulf %51, %55 : vector<1x16x512xf32>
    %57 = arith.addf %50, %56 : vector<1x16x512xf32>
    %c0_38 = arith.constant 0 : index
    %c3_39 = arith.constant 3 : index
    %c96_40 = arith.constant 96 : index
    %58 = vector.load %arg1[%c0_38, %c3_39, %c96_40] : memref<1x20x640xf32, #tpu.memory_space<vmem>>, vector<1x16x512xf32>
    %c0_41 = arith.constant 0 : index
    %c8 = arith.constant 8 : index
    %c0_42 = arith.constant 0 : index
    %59 = vector.load %arg2[%c0_41, %c8, %c0_42] : memref<2x9x512xf32, #tpu.memory_space<vmem>>, vector<1x1x512xf32>
    %60 = vector.shape_cast %59 : vector<1x1x512xf32> to vector<512xf32>
    %61 = vector.shape_cast %60 : vector<512xf32> to vector<1x1x512xf32>
    %62 = vector.broadcast %61 : vector<1x1x512xf32> to vector<1x16x512xf32>
    %63 = arith.mulf %58, %62 : vector<1x16x512xf32>
    %64 = arith.addf %57, %63 : vector<1x16x512xf32>
    %c0_43 = arith.constant 0 : index
    %c0_44 = arith.constant 0 : index
    %65 = vector.load %arg3[%c0_43, %c0_44] : memref<2x512xf32, #tpu.memory_space<vmem>>, vector<1x512xf32>
    %66 = vector.shape_cast %65 : vector<1x512xf32> to vector<512xf32>
    %67 = vector.shape_cast %66 : vector<512xf32> to vector<1x1x512xf32>
    %68 = vector.broadcast %67 : vector<1x1x512xf32> to vector<1x16x512xf32>
    %69 = arith.addf %64, %68 : vector<1x16x512xf32>
    %cst_45 = arith.constant 0.000000e+00 : f32
    %70 = vector.broadcast %cst_45 : f32 to vector<1x16x512xf32>
    %71 = arith.maximumf %69, %70 : vector<1x16x512xf32>
    %c0_46 = arith.constant 0 : index
    %c0_47 = arith.constant 0 : index
    %c0_48 = arith.constant 0 : index
    %c0_49 = arith.constant 0 : index
    %72 = vector.load %arg9[%c0_46, %c0_47, %c0_48, %c0_49] : memref<2x1x16x512xf32, #tpu.memory_space<vmem>>, vector<1x1x16x512xf32>
    %73 = vector.shape_cast %72 : vector<1x1x16x512xf32> to vector<1x16x512xf32>
    %74 = vector.shape_cast %71 : vector<1x16x512xf32> to vector<1x1x16x512xf32>
    tpu.vector_store %arg9[%c0_46, %c0_47, %c0_48, %c0_49], %74 {strides = array<i32>} : memref<2x1x16x512xf32, #tpu.memory_space<vmem>>, vector<1x1x16x512xf32>,
    %cst_50 = arith.constant dense<0.000000e+00> : vector<1x512xf32>
    %75 = vector.multi_reduction <add>, %71, %cst_50 [1] : vector<1x16x512xf32> to vector<1x512xf32>
    %76 = arith.addf %0, %75 : vector<1x512xf32>
    %cst_51 = arith.constant 0.000000e+00 : f32
    %77 = vector.broadcast %cst_51 : f32 to vector<1x16x512xf32>
    %c0_52 = arith.constant 0 : index
    %c0_53 = arith.constant 0 : index
    %c0_54 = arith.constant 0 : index
    %78 = vector.load %arg1[%c0_52, %c0_53, %c0_54] : memref<1x20x640xf32, #tpu.memory_space<vmem>>, vector<1x16x512xf32>
    %c1_55 = arith.constant 1 : index
    %c0_56 = arith.constant 0 : index
    %c0_57 = arith.constant 0 : index
    %79 = vector.load %arg2[%c1_55, %c0_56, %c0_57] : memref<2x9x512xf32, #tpu.memory_space<vmem>>, vector<1x1x512xf32>
    %80 = vector.shape_cast %79 : vector<1x1x512xf32> to vector<512xf32>
    %81 = vector.shape_cast %80 : vector<512xf32> to vector<1x1x512xf32>
    %82 = vector.broadcast %81 : vector<1x1x512xf32> to vector<1x16x512xf32>
    %83 = arith.mulf %78, %82 : vector<1x16x512xf32>
    %84 = arith.addf %77, %83 : vector<1x16x512xf32>
    %c0_58 = arith.constant 0 : index
    %c0_59 = arith.constant 0 : index
    %c64_60 = arith.constant 64 : index
    %85 = vector.load %arg1[%c0_58, %c0_59, %c64_60] : memref<1x20x640xf32, #tpu.memory_space<vmem>>, vector<1x16x512xf32>
    %c1_61 = arith.constant 1 : index
    %c1_62 = arith.constant 1 : index
    %c0_63 = arith.constant 0 : index
    %86 = vector.load %arg2[%c1_61, %c1_62, %c0_63] : memref<2x9x512xf32, #tpu.memory_space<vmem>>, vector<1x1x512xf32>
    %87 = vector.shape_cast %86 : vector<1x1x512xf32> to vector<512xf32>
    %88 = vector.shape_cast %87 : vector<512xf32> to vector<1x1x512xf32>
    %89 = vector.broadcast %88 : vector<1x1x512xf32> to vector<1x16x512xf32>
    %90 = arith.mulf %85, %89 : vector<1x16x512xf32>
    %91 = arith.addf %84, %90 : vector<1x16x512xf32>
    %c0_64 = arith.constant 0 : index
    %c0_65 = arith.constant 0 : index
    %c128 = arith.constant 128 : index
    %92 = vector.load %arg1[%c0_64, %c0_65, %c128] : memref<1x20x640xf32, #tpu.memory_space<vmem>>, vector<1x16x512xf32>
    %c1_66 = arith.constant 1 : index
    %c2_67 = arith.constant 2 : index
    %c0_68 = arith.constant 0 : index
    %93 = vector.load %arg2[%c1_66, %c2_67, %c0_68] : memref<2x9x512xf32, #tpu.memory_space<vmem>>, vector<1x1x512xf32>
    %94 = vector.shape_cast %93 : vector<1x1x512xf32> to vector<512xf32>
    %95 = vector.shape_cast %94 : vector<512xf32> to vector<1x1x512xf32>
    %96 = vector.broadcast %95 : vector<1x1x512xf32> to vector<1x16x512xf32>
    %97 = arith.mulf %92, %96 : vector<1x16x512xf32>
    %98 = arith.addf %91, %97 : vector<1x16x512xf32>
    %c0_69 = arith.constant 0 : index
    %c2_70 = arith.constant 2 : index
    %c0_71 = arith.constant 0 : index
    %99 = vector.load %arg1[%c0_69, %c2_70, %c0_71] : memref<1x20x640xf32, #tpu.memory_space<vmem>>, vector<1x16x512xf32>
    %c1_72 = arith.constant 1 : index
    %c3_73 = arith.constant 3 : index
    %c0_74 = arith.constant 0 : index
    %100 = vector.load %arg2[%c1_72, %c3_73, %c0_74] : memref<2x9x512xf32, #tpu.memory_space<vmem>>, vector<1x1x512xf32>
    %101 = vector.shape_cast %100 : vector<1x1x512xf32> to vector<512xf32>
    %102 = vector.shape_cast %101 : vector<512xf32> to vector<1x1x512xf32>
    %103 = vector.broadcast %102 : vector<1x1x512xf32> to vector<1x16x512xf32>
    %104 = arith.mulf %99, %103 : vector<1x16x512xf32>
    %105 = arith.addf %98, %104 : vector<1x16x512xf32>
    %c0_75 = arith.constant 0 : index
    %c2_76 = arith.constant 2 : index
    %c64_77 = arith.constant 64 : index
    %106 = vector.load %arg1[%c0_75, %c2_76, %c64_77] : memref<1x20x640xf32, #tpu.memory_space<vmem>>, vector<1x16x512xf32>
    %c1_78 = arith.constant 1 : index
    %c4_79 = arith.constant 4 : index
    %c0_80 = arith.constant 0 : index
    %107 = vector.load %arg2[%c1_78, %c4_79, %c0_80] : memref<2x9x512xf32, #tpu.memory_space<vmem>>, vector<1x1x512xf32>
    %108 = vector.shape_cast %107 : vector<1x1x512xf32> to vector<512xf32>
    %109 = vector.shape_cast %108 : vector<512xf32> to vector<1x1x512xf32>
    %110 = vector.broadcast %109 : vector<1x1x512xf32> to vector<1x16x512xf32>
    %111 = arith.mulf %106, %110 : vector<1x16x512xf32>
    %112 = arith.addf %105, %111 : vector<1x16x512xf32>
    %c0_81 = arith.constant 0 : index
    %c2_82 = arith.constant 2 : index
    %c128_83 = arith.constant 128 : index
    %113 = vector.load %arg1[%c0_81, %c2_82, %c128_83] : memref<1x20x640xf32, #tpu.memory_space<vmem>>, vector<1x16x512xf32>
    %c1_84 = arith.constant 1 : index
    %c5_85 = arith.constant 5 : index
    %c0_86 = arith.constant 0 : index
    %114 = vector.load %arg2[%c1_84, %c5_85, %c0_86] : memref<2x9x512xf32, #tpu.memory_space<vmem>>, vector<1x1x512xf32>
    %115 = vector.shape_cast %114 : vector<1x1x512xf32> to vector<512xf32>
    %116 = vector.shape_cast %115 : vector<512xf32> to vector<1x1x512xf32>
    %117 = vector.broadcast %116 : vector<1x1x512xf32> to vector<1x16x512xf32>
    %118 = arith.mulf %113, %117 : vector<1x16x512xf32>
    %119 = arith.addf %112, %118 : vector<1x16x512xf32>
    %c0_87 = arith.constant 0 : index
    %c4_88 = arith.constant 4 : index
    %c0_89 = arith.constant 0 : index
    %120 = vector.load %arg1[%c0_87, %c4_88, %c0_89] : memref<1x20x640xf32, #tpu.memory_space<vmem>>, vector<1x16x512xf32>
    %c1_90 = arith.constant 1 : index
    %c6_91 = arith.constant 6 : index
    %c0_92 = arith.constant 0 : index
    %121 = vector.load %arg2[%c1_90, %c6_91, %c0_92] : memref<2x9x512xf32, #tpu.memory_space<vmem>>, vector<1x1x512xf32>
    %122 = vector.shape_cast %121 : vector<1x1x512xf32> to vector<512xf32>
    %123 = vector.shape_cast %122 : vector<512xf32> to vector<1x1x512xf32>
    %124 = vector.broadcast %123 : vector<1x1x512xf32> to vector<1x16x512xf32>
    %125 = arith.mulf %120, %124 : vector<1x16x512xf32>
    %126 = arith.addf %119, %125 : vector<1x16x512xf32>
    %c0_93 = arith.constant 0 : index
    %c4_94 = arith.constant 4 : index
    %c64_95 = arith.constant 64 : index
    %127 = vector.load %arg1[%c0_93, %c4_94, %c64_95] : memref<1x20x640xf32, #tpu.memory_space<vmem>>, vector<1x16x512xf32>
    %c1_96 = arith.constant 1 : index
    %c7_97 = arith.constant 7 : index
    %c0_98 = arith.constant 0 : index
    %128 = vector.load %arg2[%c1_96, %c7_97, %c0_98] : memref<2x9x512xf32, #tpu.memory_space<vmem>>, vector<1x1x512xf32>
    %129 = vector.shape_cast %128 : vector<1x1x512xf32> to vector<512xf32>
    %130 = vector.shape_cast %129 : vector<512xf32> to vector<1x1x512xf32>
    %131 = vector.broadcast %130 : vector<1x1x512xf32> to vector<1x16x512xf32>
    %132 = arith.mulf %127, %131 : vector<1x16x512xf32>
    %133 = arith.addf %126, %132 : vector<1x16x512xf32>
    %c0_99 = arith.constant 0 : index
    %c4_100 = arith.constant 4 : index
    %c128_101 = arith.constant 128 : index
    %134 = vector.load %arg1[%c0_99, %c4_100, %c128_101] : memref<1x20x640xf32, #tpu.memory_space<vmem>>, vector<1x16x512xf32>
    %c1_102 = arith.constant 1 : index
    %c8_103 = arith.constant 8 : index
    %c0_104 = arith.constant 0 : index
    %135 = vector.load %arg2[%c1_102, %c8_103, %c0_104] : memref<2x9x512xf32, #tpu.memory_space<vmem>>, vector<1x1x512xf32>
    %136 = vector.shape_cast %135 : vector<1x1x512xf32> to vector<512xf32>
    %137 = vector.shape_cast %136 : vector<512xf32> to vector<1x1x512xf32>
    %138 = vector.broadcast %137 : vector<1x1x512xf32> to vector<1x16x512xf32>
    %139 = arith.mulf %134, %138 : vector<1x16x512xf32>
    %140 = arith.addf %133, %139 : vector<1x16x512xf32>
    %c1_105 = arith.constant 1 : index
    %c0_106 = arith.constant 0 : index
    %141 = vector.load %arg3[%c1_105, %c0_106] : memref<2x512xf32, #tpu.memory_space<vmem>>, vector<1x512xf32>
    %142 = vector.shape_cast %141 : vector<1x512xf32> to vector<512xf32>
    %143 = vector.shape_cast %142 : vector<512xf32> to vector<1x1x512xf32>
    %144 = vector.broadcast %143 : vector<1x1x512xf32> to vector<1x16x512xf32>
    %145 = arith.addf %140, %144 : vector<1x16x512xf32>
    %cst_107 = arith.constant 0.000000e+00 : f32
    %146 = vector.broadcast %cst_107 : f32 to vector<1x16x512xf32>
    %147 = arith.maximumf %145, %146 : vector<1x16x512xf32>
    %c1_108 = arith.constant 1 : index
    %c0_109 = arith.constant 0 : index
    %c0_110 = arith.constant 0 : index
    %c0_111 = arith.constant 0 : index
    %148 = vector.load %arg9[%c1_108, %c0_109, %c0_110, %c0_111] : memref<2x1x16x512xf32, #tpu.memory_space<vmem>>, vector<1x1x16x512xf32>
    %149 = vector.shape_cast %148 : vector<1x1x16x512xf32> to vector<1x16x512xf32>
    %150 = vector.shape_cast %147 : vector<1x16x512xf32> to vector<1x1x16x512xf32>
    tpu.vector_store %arg9[%c1_108, %c0_109, %c0_110, %c0_111], %150 {strides = array<i32>} : memref<2x1x16x512xf32, #tpu.memory_space<vmem>>, vector<1x1x16x512xf32>,
    %cst_112 = arith.constant dense<0.000000e+00> : vector<1x512xf32>
    %151 = vector.multi_reduction <add>, %147, %cst_112 [1] : vector<1x16x512xf32> to vector<1x512xf32>
    %152 = arith.addf %76, %151 : vector<1x512xf32>
    %c0_113 = arith.constant 0 : index
    %c0_114 = arith.constant 0 : index
    %153 = vector.load %arg4[%c0_113, %c0_114] : memref<512x32xf32, #tpu.memory_space<vmem>>, vector<512x32xf32>
    %cst_115 = arith.constant dense<0.000000e+00> : vector<1x32xf32>
    %154 = tpu.matmul %152, %153, %cst_115 {dimension_numbers = #tpu.dot_dimension_numbers<[1], [0], [0], [1], [0, 0, 1, 1], [], []>} : vector<1x512xf32>, vector<512x32xf32>, vector<1x32xf32> -> vector<1x32xf32>
    %c0_116 = arith.constant 0 : index
    %c0_117 = arith.constant 0 : index
    %155 = vector.load %arg5[%c0_116, %c0_117] : memref<1x32xf32, #tpu.memory_space<vmem>>, vector<1x32xf32>
    %156 = arith.addf %154, %155 : vector<1x32xf32>
    %cst_118 = arith.constant 0.000000e+00 : f32
    %157 = vector.broadcast %cst_118 : f32 to vector<1x32xf32>
    %158 = arith.maximumf %156, %157 : vector<1x32xf32>
    %c0_119 = arith.constant 0 : index
    %c0_120 = arith.constant 0 : index
    %159 = vector.load %arg6[%c0_119, %c0_120] : memref<32x1024xf32, #tpu.memory_space<vmem>>, vector<32x1024xf32>
    %cst_121 = arith.constant dense<0.000000e+00> : vector<1x1024xf32>
    %160 = tpu.matmul %158, %159, %cst_121 {dimension_numbers = #tpu.dot_dimension_numbers<[1], [0], [0], [1], [0, 0, 1, 1], [], []>} : vector<1x32xf32>, vector<32x1024xf32>, vector<1x1024xf32> -> vector<1x1024xf32>
    %c0_122 = arith.constant 0 : index
    %c0_123 = arith.constant 0 : index
    %161 = vector.load %arg7[%c0_122, %c0_123] : memref<1x1024xf32, #tpu.memory_space<vmem>>, vector<1x1024xf32>
    %162 = arith.addf %160, %161 : vector<1x1024xf32>
    %163 = vector.extract_strided_slice %162 {offsets = [0, 0], sizes = [1, 512], strides = [1, 1]} : vector<1x1024xf32> to vector<1x512xf32>
    %164 = vector.extract_strided_slice %162 {offsets = [0, 512], sizes = [1, 512], strides = [1, 1]} : vector<1x1024xf32> to vector<1x512xf32>
    %165 = arith.maximumf %163, %164 : vector<1x512xf32>
    %166 = arith.subf %163, %165 : vector<1x512xf32>
    %167 = math.exp %166 : vector<1x512xf32>
    %168 = arith.subf %164, %165 : vector<1x512xf32>
    %169 = math.exp %168 : vector<1x512xf32>
    %170 = arith.addf %167, %169 : vector<1x512xf32>
    %171 = tpu.reciprocal %170 {approx = true} : vector<1x512xf32> -> vector<1x512xf32>
    %172 = arith.mulf %170, %171 : vector<1x512xf32>
    %cst_124 = arith.constant 2.000000e+00 : f32
    %173 = vector.broadcast %cst_124 : f32 to vector<1x512xf32>
    %174 = arith.subf %173, %172 : vector<1x512xf32>
    %175 = arith.mulf %171, %174 : vector<1x512xf32>
    %c0_125 = arith.constant 0 : index
    %c0_126 = arith.constant 0 : index
    %c0_127 = arith.constant 0 : index
    %c0_128 = arith.constant 0 : index
    %176 = vector.load %arg9[%c0_125, %c0_126, %c0_127, %c0_128] : memref<2x1x16x512xf32, #tpu.memory_space<vmem>>, vector<1x1x16x512xf32>
    %177 = vector.shape_cast %176 : vector<1x1x16x512xf32> to vector<1x16x512xf32>
    %178 = arith.mulf %167, %175 : vector<1x512xf32>
    %179 = vector.shape_cast %178 : vector<1x512xf32> to vector<1x1x512xf32>
    %180 = vector.broadcast %179 : vector<1x1x512xf32> to vector<1x16x512xf32>
    %181 = arith.mulf %177, %180 : vector<1x16x512xf32>
    %c1_129 = arith.constant 1 : index
    %c0_130 = arith.constant 0 : index
    %c0_131 = arith.constant 0 : index
    %c0_132 = arith.constant 0 : index
    %182 = vector.load %arg9[%c1_129, %c0_130, %c0_131, %c0_132] : memref<2x1x16x512xf32, #tpu.memory_space<vmem>>, vector<1x1x16x512xf32>
    %183 = vector.shape_cast %182 : vector<1x1x16x512xf32> to vector<1x16x512xf32>
    %184 = arith.mulf %169, %175 : vector<1x512xf32>
    %185 = vector.shape_cast %184 : vector<1x512xf32> to vector<1x1x512xf32>
    %186 = vector.broadcast %185 : vector<1x1x512xf32> to vector<1x16x512xf32>
    %187 = arith.mulf %183, %186 : vector<1x16x512xf32>
    %188 = arith.addf %181, %187 : vector<1x16x512xf32>
    %c0_133 = arith.constant 0 : index
    %c0_134 = arith.constant 0 : index
    %c0_135 = arith.constant 0 : index
    %189 = vector.load %arg8[%c0_133, %c0_134, %c0_135] : memref<1x16x512xf32, #tpu.memory_space<vmem>>, vector<1x16x512xf32>
    tpu.vector_store %arg8[%c0_133, %c0_134, %c0_135], %188 {strides = array<i32>} : memref<1x16x512xf32, #tpu.memory_space<vmem>>, vector<1x16x512xf32>,
    return
  }
  func.func @transform_0(%arg0: i32) -> (i32, i32, i32) {
    %c0_i32 = arith.constant 0 : i32
    %c0_i32_0 = arith.constant 0 : i32
    %c0_i32_1 = arith.constant 0 : i32
    return %arg0, %c0_i32, %c0_i32_0 : i32, i32, i32
  }
  func.func @transform_1(%arg0: i32) -> (i32, i32, i32) {
    %c0_i32 = arith.constant 0 : i32
    %c0_i32_0 = arith.constant 0 : i32
    %c0_i32_1 = arith.constant 0 : i32
    %c0_i32_2 = arith.constant 0 : i32
    return %c0_i32, %c0_i32_0, %c0_i32_1 : i32, i32, i32
  }
  func.func @transform_2(%arg0: i32) -> (i32, i32) {
    %c0_i32 = arith.constant 0 : i32
    %c0_i32_0 = arith.constant 0 : i32
    %c0_i32_1 = arith.constant 0 : i32
    return %c0_i32, %c0_i32_0 : i32, i32
  }
  func.func @transform_3(%arg0: i32) -> (i32, i32) {
    %c0_i32 = arith.constant 0 : i32
    %c0_i32_0 = arith.constant 0 : i32
    %c0_i32_1 = arith.constant 0 : i32
    return %c0_i32, %c0_i32_0 : i32, i32
  }
  func.func @transform_4(%arg0: i32) -> (i32, i32) {
    %c0_i32 = arith.constant 0 : i32
    %c0_i32_0 = arith.constant 0 : i32
    %c0_i32_1 = arith.constant 0 : i32
    return %c0_i32, %c0_i32_0 : i32, i32
  }
  func.func @transform_5(%arg0: i32) -> (i32, i32) {
    %c0_i32 = arith.constant 0 : i32
    %c0_i32_0 = arith.constant 0 : i32
    %c0_i32_1 = arith.constant 0 : i32
    return %c0_i32, %c0_i32_0 : i32, i32
  }
  func.func @transform_6(%arg0: i32) -> (i32, i32) {
    %c0_i32 = arith.constant 0 : i32
    %c0_i32_0 = arith.constant 0 : i32
    %c0_i32_1 = arith.constant 0 : i32
    return %c0_i32, %c0_i32_0 : i32, i32
  }
  func.func @transform_7(%arg0: i32) -> (i32, i32, i32) {
    %c0_i32 = arith.constant 0 : i32
    %c0_i32_0 = arith.constant 0 : i32
    %c0_i32_1 = arith.constant 0 : i32
    return %arg0, %c0_i32, %c0_i32_0 : i32, i32, i32
  }
}

</mosaic_0001>

<llo_original>
// kernel: tpu_custom_call.1
$region0: #{tpu_custom_call.1}
  #allocation0 [shape = 'u32[]', space=smem, size = 0x4, offset = 0x4, fixed_abs, tag = 'smem constant byte address 0x4 - core index']
  #allocation1 [shape = 'u32[144,128]{1,0:T(1,128)}', space=vmem, size = 0x12000, scoped, tag = 'internal scratch']
  #allocation2 [shape = 'f32[2,1,16,512]{3,2,1,0:T(8,128)}', space=vmem, size = 0x10000, scoped, tag = 'scratch operand']
  %s0 = inlined_call_operand.vmem [shape: f32[2,20,640], index: 0, kind: input, shape index: {}]
  %s1 = inlined_call_operand.vmem [shape: f32[2,9,512], index: 1, kind: input, shape index: {}]
  %s2 = inlined_call_operand.vmem [shape: f32[2,512], index: 2, kind: input, shape index: {}]
  %s3 = inlined_call_operand.vmem [shape: f32[512,32], index: 3, kind: input, shape index: {}]
  %s4 = inlined_call_operand.vmem [shape: f32[1,32], index: 4, kind: input, shape index: {}]
  %s5 = inlined_call_operand.vmem [shape: f32[32,1024], index: 5, kind: input, shape index: {}]
  %s6 = inlined_call_operand.vmem [shape: f32[1,1024], index: 6, kind: input, shape index: {}]
  %s7 = inlined_call_operand.hbm [shape: f32[2,16,512], index: 7, kind: output, shape index: {}]
  %s8 = sld [smem:[#allocation0]]
  $region61: #{tpu_custom_call.1} parent=0
    _
  %s10 = ssub.s32 1, %s8
  %s11 = scalar_select 0, %s10, %s8
  $region1: #{tpu_custom_call.1} parent=0
    #allocation3 [shape = 'u8[65536]{0}', space=vmem, size = 0x10000, scoped, tag = 'output window, operand 0']
    #allocation4 [shape = 's32[2]{0}', space=sflag, size = 0x8, scoped, tag = 'scoped memory for tpu_custom_call.1']
    %12 = vsyncpa [#allocation4], 0
    %s13 = scalar_lea.sflag [#allocation4], 1
    %14 = vsyncpa %s13, 0
    loop: start=0, step=1, limit=4
    $region2: #{tpu_custom_call.1} parent=1 // loop_pre_header
      _
    $region3: #{tpu_custom_call.1} parent=1 // loop_header
      %s16 = sphi 0, %s20
      %p17 = scmp.ge.s32.totalorder %s16, 4
      %s26 = sphi 0, %s28
      %s29 = sphi 0, %s26
      %s30 = sphi 0, %s29
      %s46 = sphi 0, %s30
      %s50 = sphi 0, %s50
      %s52 = sphi 0, %s50
      %s53 = sphi 0, %s52
      %s67 = sphi 0, %s53
      %s71 = sphi 0, %s71
      %s73 = sphi 0, %s71
      %s74 = sphi 0, %s73
      %s88 = sphi 0, %s74
      %s92 = sphi 0, %s92
      %s94 = sphi 0, %s92
      %s95 = sphi 0, %s94
      %s109 = sphi 0, %s95
      %s113 = sphi 0, %s113
      %s115 = sphi 0, %s113
      %s116 = sphi 0, %s115
      %s130 = sphi 0, %s116
      %s134 = sphi 0, %s134
      %s136 = sphi 0, %s134
      %s137 = sphi 0, %s136
      %s151 = sphi 0, %s137
      %s155 = sphi 0, %s155
      %s157 = sphi 0, %s155
      %s158 = sphi 0, %s157
      %s172 = sphi 0, %s158
      %s178 = sphi 0, %s180
      %s181 = sphi 0, %s178
      %s182 = sphi 0, %s181
      %s198 = sphi 0, %s182
    $region4: #{tpu_custom_call.1} parent=1 // loop_header_branch
      %19 = sbr.rel (%p17) target = $region8
    $region5: #{tpu_custom_call.1} parent=1 // loop_body
      %s21 = ssub.s32 %s16, 1
      %s22 = ssub.s32 %s16, 2
      %s23 = sadd.s32 %s16, 1
      %s24 = ssub.s32 %s16, %s23
      %p25 = scmp.eq.s32.totalorder %s24, 0
      %s27 = sadd.s32 %s26, 1
      %s28 = scalar_select %p25, %s26, %s27
      %p31 = pneg %p25
      %p32 = scmp.eq.s32.totalorder %s16, 1
      %p33 = por %p31, %p32
      %p34 = scmp.ne.s32.totalorder %s26, %s29
      %p35 = scmp.eq.s32.totalorder %s16, 0
      %p36 = por %p34, %p35
      %p37 = scmp.ne.s32.totalorder %s26, %s29
      %p38 = scmp.eq.s32.totalorder %s21, 1
      %p39 = por %p37, %p38
      %p40 = scmp.ne.s32.totalorder %s29, %s30
      %p41 = scmp.eq.s32.totalorder %s21, 0
      %p42 = por %p40, %p41
      %p43 = scmp.ne.s32.totalorder %s29, %s30
      %p44 = scmp.eq.s32.totalorder %s22, 1
      %p45 = por %p43, %p44
      %p47 = scmp.ne.s32.totalorder %s30, %s46
      %p48 = scmp.eq.s32.totalorder %s22, 0
      %p49 = por %p47, %p48
      %s51 = sadd.s32 %s50, 1
      %p54 = scmp.eq.s32.totalorder %s16, 1
      %p55 = scmp.ne.s32.totalorder %s50, %s52
      %p56 = scmp.eq.s32.totalorder %s16, 0
      %p57 = por %p55, %p56
      %p58 = scmp.ne.s32.totalorder %s50, %s52
      %p59 = scmp.eq.s32.totalorder %s21, 1
      %p60 = por %p58, %p59
      %p61 = scmp.ne.s32.totalorder %s52, %s53
      %p62 = scmp.eq.s32.totalorder %s21, 0
      %p63 = por %p61, %p62
      %p64 = scmp.ne.s32.totalorder %s52, %s53
      %p65 = scmp.eq.s32.totalorder %s22, 1
      %p66 = por %p64, %p65
      %p68 = scmp.ne.s32.totalorder %s53, %s67
      %p69 = scmp.eq.s32.totalorder %s22, 0
      %p70 = por %p68, %p69
      %s72 = sadd.s32 %s71, 1
      %p75 = scmp.eq.s32.totalorder %s16, 1
      %p76 = scmp.ne.s32.totalorder %s71, %s73
      %p77 = scmp.eq.s32.totalorder %s16, 0
      %p78 = por %p76, %p77
      %p79 = scmp.ne.s32.totalorder %s71, %s73
      %p80 = scmp.eq.s32.totalorder %s21, 1
      %p81 = por %p79, %p80
      %p82 = scmp.ne.s32.totalorder %s73, %s74
      %p83 = scmp.eq.s32.totalorder %s21, 0
      %p84 = por %p82, %p83
      %p85 = scmp.ne.s32.totalorder %s73, %s74
      %p86 = scmp.eq.s32.totalorder %s22, 1
      %p87 = por %p85, %p86
      %p89 = scmp.ne.s32.totalorder %s74, %s88
      %p90 = scmp.eq.s32.totalorder %s22, 0
      %p91 = por %p89, %p90
      %s93 = sadd.s32 %s92, 1
      %p96 = scmp.eq.s32.totalorder %s16, 1
      %p97 = scmp.ne.s32.totalorder %s92, %s94
      %p98 = scmp.eq.s32.totalorder %s16, 0
      %p99 = por %p97, %p98
      %p100 = scmp.ne.s32.totalorder %s92, %s94
      %p101 = scmp.eq.s32.totalorder %s21, 1
      %p102 = por %p100, %p101
      %p103 = scmp.ne.s32.totalorder %s94, %s95
      %p104 = scmp.eq.s32.totalorder %s21, 0
      %p105 = por %p103, %p104
      %p106 = scmp.ne.s32.totalorder %s94, %s95
      %p107 = scmp.eq.s32.totalorder %s22, 1
      %p108 = por %p106, %p107
      %p110 = scmp.ne.s32.totalorder %s95, %s109
      %p111 = scmp.eq.s32.totalorder %s22, 0
      %p112 = por %p110, %p111
      %s114 = sadd.s32 %s113, 1
      %p117 = scmp.eq.s32.totalorder %s16, 1
      %p118 = scmp.ne.s32.totalorder %s113, %s115
      %p119 = scmp.eq.s32.totalorder %s16, 0
      %p120 = por %p118, %p119
      %p121 = scmp.ne.s32.totalorder %s113, %s115
      %p122 = scmp.eq.s32.totalorder %s21, 1
      %p123 = por %p121, %p122
      %p124 = scmp.ne.s32.totalorder %s115, %s116
      %p125 = scmp.eq.s32.totalorder %s21, 0
      %p126 = por %p124, %p125
      %p127 = scmp.ne.s32.totalorder %s115, %s116
      %p128 = scmp.eq.s32.totalorder %s22, 1
      %p129 = por %p127, %p128
      %p131 = scmp.ne.s32.totalorder %s116, %s130
      %p132 = scmp.eq.s32.totalorder %s22, 0
      %p133 = por %p131, %p132
      %s135 = sadd.s32 %s134, 1
      %p138 = scmp.eq.s32.totalorder %s16, 1
      %p139 = scmp.ne.s32.totalorder %s134, %s136
      %p140 = scmp.eq.s32.totalorder %s16, 0
      %p141 = por %p139, %p140
      %p142 = scmp.ne.s32.totalorder %s134, %s136
      %p143 = scmp.eq.s32.totalorder %s21, 1
      %p144 = por %p142, %p143
      %p145 = scmp.ne.s32.totalorder %s136, %s137
      %p146 = scmp.eq.s32.totalorder %s21, 0
      %p147 = por %p145, %p146
      %p148 = scmp.ne.s32.totalorder %s136, %s137
      %p149 = scmp.eq.s32.totalorder %s22, 1
      %p150 = por %p148, %p149
      %p152 = scmp.ne.s32.totalorder %s137, %s151
      %p153 = scmp.eq.s32.totalorder %s22, 0
      %p154 = por %p152, %p153
      %s156 = sadd.s32 %s155, 1
      %p159 = scmp.eq.s32.totalorder %s16, 1
      %p160 = scmp.ne.s32.totalorder %s155, %s157
      %p161 = scmp.eq.s32.totalorder %s16, 0
      %p162 = por %p160, %p161
      %p163 = scmp.ne.s32.totalorder %s155, %s157
      %p164 = scmp.eq.s32.totalorder %s21, 1
      %p165 = por %p163, %p164
      %p166 = scmp.ne.s32.totalorder %s157, %s158
      %p167 = scmp.eq.s32.totalorder %s21, 0
      %p168 = por %p166, %p167
      %p169 = scmp.ne.s32.totalorder %s157, %s158
      %p170 = scmp.eq.s32.totalorder %s22, 1
      %p171 = por %p169, %p170
      %p173 = scmp.ne.s32.totalorder %s158, %s172
      %p174 = scmp.eq.s32.totalorder %s22, 0
      %p175 = por %p173, %p174
      %s176 = ssub.s32 %s16, %s23
      %p177 = scmp.eq.s32.totalorder %s176, 0
      %s179 = sadd.s32 %s178, 1
      %s180 = scalar_select %p177, %s178, %s179
      %p183 = pneg %p177
      %p184 = scmp.eq.s32.totalorder %s16, 1
      %p185 = por %p183, %p184
      %p186 = scmp.ne.s32.totalorder %s178, %s181
      %p187 = scmp.eq.s32.totalorder %s16, 0
      %p188 = por %p186, %p187
      %p189 = scmp.ne.s32.totalorder %s178, %s181
      %p190 = scmp.eq.s32.totalorder %s21, 1
      %p191 = por %p189, %p190
      %p192 = scmp.ne.s32.totalorder %s181, %s182
      %p193 = scmp.eq.s32.totalorder %s21, 0
      %p194 = por %p192, %p193
      %p195 = scmp.ne.s32.totalorder %s181, %s182
      %p196 = scmp.eq.s32.totalorder %s22, 1
      %p197 = por %p195, %p196
      %p199 = scmp.ne.s32.totalorder %s182, %s198
      %p200 = scmp.eq.s32.totalorder %s22, 0
      %p201 = por %p199, %p200
      %p202 = scmp.le.s32.totalorder 1, %s16
      %p203 = scmp.lt.s32.totalorder %s16, 3
      %p204 = pnand %p202, %p203
      %p205 = pneg %p204
      // Predicated region
      $region9: #{tpu_custom_call.1} parent=5 // pred_check
        _
      $region10: #{tpu_custom_call.1} parent=5 // pred_check_branch
        %207 = sbr.rel (%p204) target = $region12
      $region11: #{tpu_custom_call.1} parent=5 // pred_region
        %s208 = ssub.s32 %s16, 1
        // Predicated region
        $region13: #{tpu_custom_call.1} parent=11 // pred_check
          %p209 = pneg %p63
        $region14: #{tpu_custom_call.1} parent=11 // pred_check_branch
          %211 = sbr.rel (%p209) target = $region16
        $region15: #{tpu_custom_call.1} parent=11 // pred_region
          _
        $region16: #{tpu_custom_call.1} parent=11 // pred_fallthru
          _
        // Predicated region
        $region17: #{tpu_custom_call.1} parent=11 // pred_check
          %p212 = pneg %p84
        $region18: #{tpu_custom_call.1} parent=11 // pred_check_branch
          %214 = sbr.rel (%p212) target = $region20
        $region19: #{tpu_custom_call.1} parent=11 // pred_region
          _
        $region20: #{tpu_custom_call.1} parent=11 // pred_fallthru
          _
        // Predicated region
        $region21: #{tpu_custom_call.1} parent=11 // pred_check
          %p215 = pneg %p105
        $region22: #{tpu_custom_call.1} parent=11 // pred_check_branch
          %217 = sbr.rel (%p215) target = $region24
        $region23: #{tpu_custom_call.1} parent=11 // pred_region
          _
        $region24: #{tpu_custom_call.1} parent=11 // pred_fallthru
          _
        // Predicated region
        $region25: #{tpu_custom_call.1} parent=11 // pred_check
          %p218 = pneg %p126
        $region26: #{tpu_custom_call.1} parent=11 // pred_check_branch
          %220 = sbr.rel (%p218) target = $region28
        $region27: #{tpu_custom_call.1} parent=11 // pred_region
          _
        $region28: #{tpu_custom_call.1} parent=11 // pred_fallthru
          _
        // Predicated region
        $region29: #{tpu_custom_call.1} parent=11 // pred_check
          %p221 = pneg %p147
        $region30: #{tpu_custom_call.1} parent=11 // pred_check_branch
          %223 = sbr.rel (%p221) target = $region32
        $region31: #{tpu_custom_call.1} parent=11 // pred_region
          _
        $region32: #{tpu_custom_call.1} parent=11 // pred_fallthru
          _
        // Predicated region
        $region33: #{tpu_custom_call.1} parent=11 // pred_check
          %p224 = pneg %p168
        $region34: #{tpu_custom_call.1} parent=11 // pred_check_branch
          %226 = sbr.rel (%p224) target = $region36
        $region35: #{tpu_custom_call.1} parent=11 // pred_region
          _
        $region36: #{tpu_custom_call.1} parent=11 // pred_fallthru
          _
      $region12: #{tpu_custom_call.1} parent=5 // pred_fallthru
        _
      %p227 = scmp.lt.s32.totalorder %s16, 2
      // Predicated region
      $region37: #{tpu_custom_call.1} parent=5 // pred_check
        %p228 = pneg %p227
      $region38: #{tpu_custom_call.1} parent=5 // pred_check_branch
        %230 = sbr.rel (%p228) target = $region40
      $region39: #{tpu_custom_call.1} parent=5 // pred_region
        // Predicated region
        $region41: #{tpu_custom_call.1} parent=39 // pred_check
          %p231 = pneg %p36
        $region42: #{tpu_custom_call.1} parent=39 // pred_check_branch
          %233 = sbr.rel (%p231) target = $region44
        $region43: #{tpu_custom_call.1} parent=39 // pred_region
          %p234 = scmp.lt.s32.totalorder %s16, 1
          %s235 = scalar_select %p234, %s16, 1
          %s236 = smul.addr %s235, 15
          %s237 = smul.addr %s236, 8
          %s238 = scalar_lea.vmem %s0, %s237
        $region44: #{tpu_custom_call.1} parent=39 // pred_fallthru
          _
      $region40: #{tpu_custom_call.1} parent=5 // pred_fallthru
        _
      %p239 = scmp.le.s32.totalorder 1, %s16
      %p240 = scmp.lt.s32.totalorder %s16, 3
      %p241 = pnand %p239, %p240
      %p242 = pneg %p241
      // Predicated region
      $region45: #{tpu_custom_call.1} parent=5 // pred_check
        _
      $region46: #{tpu_custom_call.1} parent=5 // pred_check_branch
        %244 = sbr.rel (%p241) target = $region48
      $region47: #{tpu_custom_call.1} parent=5 // pred_region
        %s245 = ssub.s32 %s16, 1
        %p246 = scmp.lt.s32.totalorder %s21, 1
        %s247 = scalar_select %p246, %s21, 1
        %s248 = smul.addr %s247, 15
        %s249 = smul.addr %s248, 8
        %s250 = scalar_lea.vmem %s0, %s249
        %p251 = pneg %p42
        %p252 = pneg %p39
        %p253 = pneg %p63
        %p254 = pneg %p60
        %p255 = pneg %p84
        %p256 = pneg %p81
        %p257 = pneg %p105
        %p258 = pneg %p102
        %p259 = pneg %p126
        %p260 = pneg %p123
        %p261 = pneg %p147
        %p262 = pneg %p144
        %p263 = pneg %p168
        %p264 = pneg %p165
        %p265 = pneg %p194
        %p266 = pneg %p191
        %s267 = sand.u32 %s181, 1
        %s268 = scalar_lea.sflag [#allocation4], %s267
        %s269 = sand.u32 %s181, 1
        %s270 = smul.addr %s269, 64
        %s271 = scalar_lea.vmem [#allocation3], %s270
        %p272 = scmp.lt.s32.totalorder %s21, 1
        %s273 = scalar_select %p272, %s21, 1
        %s274 = smul.addr %s273, 15
        %s275 = smul.addr %s274, 8
        %s276 = scalar_lea.vmem %s0, %s275
        %v277 = vld [vmem:[%s276] sm:$0xfe]
        %v278 = vld [vmem:[%s276 + $0x8] sm:$0xfe]
        %v279 = vld [vmem:[%s276 + $0x10] sm:$0xfe]
        %v280 = vld [vmem:[%s276 + $0x18] sm:$0xfe]
        %v281 = vld [vmem:[%s276 + $0x20] sm:$0xfe]
        %v282 = vld [vmem:[%s276 + $0x28] sm:$0xff]
        %v283 = vld [vmem:[%s276 + $0x30] sm:$0xff]
        %v284 = vld [vmem:[%s276 + $0x38] sm:$0xff]
        %v285 = vld [vmem:[%s276 + $0x40] sm:$0xff]
        %v286 = vld [vmem:[%s276 + $0x48] sm:$0xff]
        %v287 = vld [vmem:[%s276 + $0x50] sm:$0x1]
        %v288 = vld [vmem:[%s276 + $0x58] sm:$0x1]
        %v289 = vld [vmem:[%s276 + $0x60] sm:$0x1]
        %v290 = vld [vmem:[%s276 + $0x68] sm:$0x1]
        %v291 = vld [vmem:[%s276 + $0x70] sm:$0x1]
        %v292 = vld [vmem:[%s1] ss:$8 sm:$0xf]
        %v294 = vlaneseq
        %v295 = vshrl.u32 %v294, 7
        %v296 = vsub.s32 0, %v295
        %v297 = vrot.slane %v292, %v296
        %v298 = vlaneseq
        %v299 = vshrl.u32 %v298, 7
        %v300 = vsub.s32 1, %v299
        %v301 = vrot.slane %v292, %v300
        %v302 = vlaneseq
        %v303 = vshrl.u32 %v302, 7
        %v304 = vsub.s32 2, %v303
        %v305 = vrot.slane %v292, %v304
        %v306 = vlaneseq
        %v307 = vshrl.u32 %v306, 7
        %v308 = vsub.s32 3, %v307
        %v309 = vrot.slane %v292, %v308
        %310 = vrot.lane.b32.xlu0 %v297, 32
        %v311 = vpop.permute.xlu0 %310
        %312 = vrot.lane.b32.xlu0 %v301, 32
        %v313 = vpop.permute.xlu0 %312
        %314 = vrot.lane.b32.xlu0 %v305, 32
        %v315 = vpop.permute.xlu0 %314
        %316 = vrot.lane.b32.xlu0 %v309, 32
        %v317 = vpop.permute.xlu0 %316
        %vm318 = vcmask 261120
        %v319 = vsel %vm318, %v311, %v313
        %v320 = vsel %vm318, %v313, %v315
        %v321 = vsel %vm318, %v315, %v317
        %v327 = vmul.f32 %v277, %v311
        %v328 = vmul.f32 %v278, %v319
        %v329 = vmul.f32 %v279, %v320
        %v330 = vmul.f32 %v280, %v321
        %v331 = vmul.f32 %v281, %v317
        %v332 = vmul.f32 %v282, %v311
        %v333 = vmul.f32 %v283, %v319
        %v334 = vmul.f32 %v284, %v320
        %v335 = vmul.f32 %v285, %v321
        %v336 = vmul.f32 %v286, %v317
        %v337 = vmul.f32 %v287, %v311
        %v338 = vmul.f32 %v288, %v319
        %v339 = vmul.f32 %v289, %v320
        %v340 = vmul.f32 %v290, %v321
        %v341 = vmul.f32 %v291, %v317
        %v342 = vadd.f32 %v327, 0.0
        %v343 = vadd.f32 %v328, 0.0
        %v344 = vadd.f32 %v329, 0.0
        %v345 = vadd.f32 %v330, 0.0
        %v346 = vadd.f32 %v331, 0.0
        %v347 = vadd.f32 %v332, 0.0
        %v348 = vadd.f32 %v333, 0.0
        %v349 = vadd.f32 %v334, 0.0
        %v350 = vadd.f32 %v335, 0.0
        %v351 = vadd.f32 %v336, 0.0
        %v352 = vadd.f32 %v337, 0.0
        %v353 = vadd.f32 %v338, 0.0
        %v354 = vadd.f32 %v339, 0.0
        %v355 = vadd.f32 %v340, 0.0
        %v356 = vadd.f32 %v341, 0.0
        %s357 = scalar_lea.vmem %s1, 1
        %v358 = vld [vmem:[%s357] ss:$8 sm:$0xf]
        %v360 = vlaneseq
        %v361 = vshrl.u32 %v360, 7
        %v362 = vsub.s32 0, %v361
        %v363 = vrot.slane %v358, %v362
        %v364 = vlaneseq
        %v365 = vshrl.u32 %v364, 7
        %v366 = vsub.s32 1, %v365
        %v367 = vrot.slane %v358, %v366
        %v368 = vlaneseq
        %v369 = vshrl.u32 %v368, 7
        %v370 = vsub.s32 2, %v369
        %v371 = vrot.slane %v358, %v370
        %v372 = vlaneseq
        %v373 = vshrl.u32 %v372, 7
        %v374 = vsub.s32 3, %v373
        %v375 = vrot.slane %v358, %v374
        %376 = vrot.lane.b32.xlu0 %v363, 64
        %v377 = vpop.permute.xlu0 %376
        %378 = vrot.lane.b32.xlu0 %v367, 64
        %v379 = vpop.permute.xlu0 %378
        %380 = vrot.lane.b32.xlu0 %v371, 64
        %v381 = vpop.permute.xlu0 %380
        %382 = vrot.lane.b32.xlu0 %v375, 64
        %v383 = vpop.permute.xlu0 %382
        %vm384 = vcmask 523264
        %v385 = vsel %vm384, %v377, %v379
        %v386 = vsel %vm384, %v379, %v381
        %v387 = vsel %vm384, %v381, %v383
        %v393 = vmul.f32 %v277, %v377
        %v394 = vmul.f32 %v278, %v385
        %v395 = vmul.f32 %v279, %v386
        %v396 = vmul.f32 %v280, %v387
        %v397 = vmul.f32 %v281, %v383
        %v398 = vmul.f32 %v282, %v377
        %v399 = vmul.f32 %v283, %v385
        %v400 = vmul.f32 %v284, %v386
        %v401 = vmul.f32 %v285, %v387
        %v402 = vmul.f32 %v286, %v383
        %v403 = vmul.f32 %v287, %v377
        %v404 = vmul.f32 %v288, %v385
        %v405 = vmul.f32 %v289, %v386
        %v406 = vmul.f32 %v290, %v387
        %v407 = vmul.f32 %v291, %v383
        %423 = vrot.lane.b32.xlu0 %v393, 96
        %v424 = vpop.permute.xlu0 %423
        %425 = vrot.lane.b32.xlu0 %v394, 96
        %v426 = vpop.permute.xlu0 %425
        %427 = vrot.lane.b32.xlu0 %v395, 96
        %v428 = vpop.permute.xlu0 %427
        %429 = vrot.lane.b32.xlu0 %v396, 96
        %v430 = vpop.permute.xlu0 %429
        %431 = vrot.lane.b32.xlu0 %v397, 96
        %v432 = vpop.permute.xlu0 %431
        %433 = vrot.lane.b32.xlu0 %v398, 96
        %v434 = vpop.permute.xlu0 %433
        %435 = vrot.lane.b32.xlu0 %v399, 96
        %v436 = vpop.permute.xlu0 %435
        %437 = vrot.lane.b32.xlu0 %v400, 96
        %v438 = vpop.permute.xlu0 %437
        %439 = vrot.lane.b32.xlu0 %v401, 96
        %v440 = vpop.permute.xlu0 %439
        %441 = vrot.lane.b32.xlu0 %v402, 96
        %v442 = vpop.permute.xlu0 %441
        %443 = vrot.lane.b32.xlu0 %v403, 96
        %v444 = vpop.permute.xlu0 %443
        %445 = vrot.lane.b32.xlu0 %v404, 96
        %v446 = vpop.permute.xlu0 %445
        %447 = vrot.lane.b32.xlu0 %v405, 96
        %v448 = vpop.permute.xlu0 %447
        %449 = vrot.lane.b32.xlu0 %v406, 96
        %v450 = vpop.permute.xlu0 %449
        %451 = vrot.lane.b32.xlu0 %v407, 96
        %v452 = vpop.permute.xlu0 %451
        %vm453 = vcmask 785408
        %v454 = vsel %vm453, %v424, %v426
        %v455 = vsel %vm453, %v426, %v428
        %v456 = vsel %vm453, %v428, %v430
        %v457 = vsel %vm453, %v430, %v432
        %v458 = vsel %vm453, %v434, %v436
        %v459 = vsel %vm453, %v436, %v438
        %v460 = vsel %vm453, %v438, %v440
        %v461 = vsel %vm453, %v440, %v442
        %v462 = vsel %vm453, %v444, %v446
        %v463 = vsel %vm453, %v446, %v448
        %v464 = vsel %vm453, %v448, %v450
        %v465 = vsel %vm453, %v450, %v452
        %v481 = vadd.f32 %v342, %v454
        %v482 = vadd.f32 %v343, %v455
        %v483 = vadd.f32 %v344, %v456
        %v484 = vadd.f32 %v345, %v457
        %v485 = vadd.f32 %v346, %v432
        %v486 = vadd.f32 %v347, %v458
        %v487 = vadd.f32 %v348, %v459
        %v488 = vadd.f32 %v349, %v460
        %v489 = vadd.f32 %v350, %v461
        %v490 = vadd.f32 %v351, %v442
        %v491 = vadd.f32 %v352, %v462
        %v492 = vadd.f32 %v353, %v463
        %v493 = vadd.f32 %v354, %v464
        %v494 = vadd.f32 %v355, %v465
        %v495 = vadd.f32 %v356, %v452
        %s496 = scalar_lea.vmem %s1, 2
        %v497 = vld [vmem:[%s496] ss:$8 sm:$0xf]
        %v499 = vlaneseq
        %v500 = vshrl.u32 %v499, 7
        %v501 = vsub.s32 0, %v500
        %v502 = vrot.slane %v497, %v501
        %v503 = vlaneseq
        %v504 = vshrl.u32 %v503, 7
        %v505 = vsub.s32 1, %v504
        %v506 = vrot.slane %v497, %v505
        %v507 = vlaneseq
        %v508 = vshrl.u32 %v507, 7
        %v509 = vsub.s32 2, %v508
        %v510 = vrot.slane %v497, %v509
        %v511 = vlaneseq
        %v512 = vshrl.u32 %v511, 7
        %v513 = vsub.s32 3, %v512
        %v514 = vrot.slane %v497, %v513
        %515 = vrot.lane.b32.xlu0 %v502, 96
        %v516 = vpop.permute.xlu0 %515
        %517 = vrot.lane.b32.xlu0 %v506, 96
        %v518 = vpop.permute.xlu0 %517
        %519 = vrot.lane.b32.xlu0 %v510, 96
        %v520 = vpop.permute.xlu0 %519
        %521 = vrot.lane.b32.xlu0 %v514, 96
        %v522 = vpop.permute.xlu0 %521
        %v523 = vsel %vm453, %v516, %v518
        %v524 = vsel %vm453, %v518, %v520
        %v525 = vsel %vm453, %v520, %v522
        %v531 = vmul.f32 %v277, %v516
        %v532 = vmul.f32 %v278, %v523
        %v533 = vmul.f32 %v279, %v524
        %v534 = vmul.f32 %v280, %v525
        %v535 = vmul.f32 %v281, %v522
        %v536 = vmul.f32 %v282, %v516
        %v537 = vmul.f32 %v283, %v523
        %v538 = vmul.f32 %v284, %v524
        %v539 = vmul.f32 %v285, %v525
        %v540 = vmul.f32 %v286, %v522
        %v541 = vmul.f32 %v287, %v516
        %v542 = vmul.f32 %v288, %v523
        %v543 = vmul.f32 %v289, %v524
        %v544 = vmul.f32 %v290, %v525
        %v545 = vmul.f32 %v291, %v522
        %561 = vrot.lane.b32.xlu0 %v531, 64
        %v562 = vpop.permute.xlu0 %561
        %563 = vrot.lane.b32.xlu0 %v532, 64
        %v564 = vpop.permute.xlu0 %563
        %565 = vrot.lane.b32.xlu0 %v533, 64
        %v566 = vpop.permute.xlu0 %565
        %567 = vrot.lane.b32.xlu0 %v534, 64
        %v568 = vpop.permute.xlu0 %567
        %569 = vrot.lane.b32.xlu0 %v535, 64
        %v570 = vpop.permute.xlu0 %569
        %571 = vrot.lane.b32.xlu0 %v536, 64
        %v572 = vpop.permute.xlu0 %571
        %573 = vrot.lane.b32.xlu0 %v537, 64
        %v574 = vpop.permute.xlu0 %573
        %575 = vrot.lane.b32.xlu0 %v538, 64
        %v576 = vpop.permute.xlu0 %575
        %577 = vrot.lane.b32.xlu0 %v539, 64
        %v578 = vpop.permute.xlu0 %577
        %579 = vrot.lane.b32.xlu0 %v540, 64
        %v580 = vpop.permute.xlu0 %579
        %581 = vrot.lane.b32.xlu0 %v541, 64
        %v582 = vpop.permute.xlu0 %581
        %583 = vrot.lane.b32.xlu0 %v542, 64
        %v584 = vpop.permute.xlu0 %583
        %585 = vrot.lane.b32.xlu0 %v543, 64
        %v586 = vpop.permute.xlu0 %585
        %587 = vrot.lane.b32.xlu0 %v544, 64
        %v588 = vpop.permute.xlu0 %587
        %589 = vrot.lane.b32.xlu0 %v545, 64
        %v590 = vpop.permute.xlu0 %589
        %v591 = vsel %vm384, %v562, %v564
        %v592 = vsel %vm384, %v564, %v566
        %v593 = vsel %vm384, %v566, %v568
        %v594 = vsel %vm384, %v568, %v570
        %v595 = vsel %vm384, %v572, %v574
        %v596 = vsel %vm384, %v574, %v576
        %v597 = vsel %vm384, %v576, %v578
        %v598 = vsel %vm384, %v578, %v580
        %v599 = vsel %vm384, %v582, %v584
        %v600 = vsel %vm384, %v584, %v586
        %v601 = vsel %vm384, %v586, %v588
        %v602 = vsel %vm384, %v588, %v590
        %v618 = vadd.f32 %v481, %v591
        %v619 = vadd.f32 %v482, %v592
        %v620 = vadd.f32 %v483, %v593
        %v621 = vadd.f32 %v484, %v594
        %v622 = vadd.f32 %v485, %v570
        %v623 = vadd.f32 %v486, %v595
        %v624 = vadd.f32 %v487, %v596
        %v625 = vadd.f32 %v488, %v597
        %v626 = vadd.f32 %v489, %v598
        %v627 = vadd.f32 %v490, %v580
        %v628 = vadd.f32 %v491, %v599
        %v629 = vadd.f32 %v492, %v600
        %v630 = vadd.f32 %v493, %v601
        %v631 = vadd.f32 %v494, %v602
        %v632 = vadd.f32 %v495, %v590
        %v633 = vld [vmem:[%s276] sm:$0xfc]
        %v634 = vld [vmem:[%s276 + $0x8] sm:$0xfc]
        %v635 = vld [vmem:[%s276 + $0x10] sm:$0xfc]
        %v636 = vld [vmem:[%s276 + $0x18] sm:$0xfc]
        %v637 = vld [vmem:[%s276 + $0x20] sm:$0xfc]
        %v638 = vld [vmem:[%s276 + $0x50] sm:$0x3]
        %v639 = vld [vmem:[%s276 + $0x58] sm:$0x3]
        %v640 = vld [vmem:[%s276 + $0x60] sm:$0x3]
        %v641 = vld [vmem:[%s276 + $0x68] sm:$0x3]
        %v642 = vld [vmem:[%s276 + $0x70] sm:$0x3]
        %s643 = scalar_lea.vmem %s1, 3
        %v644 = vld [vmem:[%s643] ss:$8 sm:$0xf]
        %v646 = vlaneseq
        %v647 = vshrl.u32 %v646, 7
        %v648 = vsub.s32 0, %v647
        %v649 = vrot.slane %v644, %v648
        %v650 = vlaneseq
        %v651 = vshrl.u32 %v650, 7
        %v652 = vsub.s32 1, %v651
        %v653 = vrot.slane %v644, %v652
        %v654 = vlaneseq
        %v655 = vshrl.u32 %v654, 7
        %v656 = vsub.s32 2, %v655
        %v657 = vrot.slane %v644, %v656
        %v658 = vlaneseq
        %v659 = vshrl.u32 %v658, 7
        %v660 = vsub.s32 3, %v659
        %v661 = vrot.slane %v644, %v660
        %662 = vrot.lane.b32.xlu0 %v649, 32
        %v663 = vpop.permute.xlu0 %662
        %664 = vrot.lane.b32.xlu0 %v653, 32
        %v665 = vpop.permute.xlu0 %664
        %666 = vrot.lane.b32.xlu0 %v657, 32
        %v667 = vpop.permute.xlu0 %666
        %668 = vrot.lane.b32.xlu0 %v661, 32
        %v669 = vpop.permute.xlu0 %668
        %v670 = vsel %vm318, %v663, %v665
        %v671 = vsel %vm318, %v665, %v667
        %v672 = vsel %vm318, %v667, %v669
        %v678 = vmul.f32 %v633, %v663
        %v679 = vmul.f32 %v634, %v670
        %v680 = vmul.f32 %v635, %v671
        %v681 = vmul.f32 %v636, %v672
        %v682 = vmul.f32 %v637, %v669
        %v683 = vmul.f32 %v282, %v663
        %v684 = vmul.f32 %v283, %v670
        %v685 = vmul.f32 %v284, %v671
        %v686 = vmul.f32 %v285, %v672
        %v687 = vmul.f32 %v286, %v669
        %v688 = vmul.f32 %v638, %v663
        %v689 = vmul.f32 %v639, %v670
        %v690 = vmul.f32 %v640, %v671
        %v691 = vmul.f32 %v641, %v672
        %v692 = vmul.f32 %v642, %v669
        %vm708 = vcmask 1046528
        %v709 = vrot.slane %v678, 1
        %v710 = vrot.slane %v683, 1
        %v711 = vsel %vm708, %v709, %v710
        %v712 = vrot.slane %v679, 1
        %v713 = vrot.slane %v684, 1
        %v714 = vsel %vm708, %v712, %v713
        %v715 = vrot.slane %v680, 1
        %v716 = vrot.slane %v685, 1
        %v717 = vsel %vm708, %v715, %v716
        %v718 = vrot.slane %v681, 1
        %v719 = vrot.slane %v686, 1
        %v720 = vsel %vm708, %v718, %v719
        %v721 = vrot.slane %v682, 1
        %v722 = vrot.slane %v687, 1
        %v723 = vsel %vm708, %v721, %v722
        %v724 = vrot.slane %v688, 1
        %v725 = vsel %vm708, %v710, %v724
        %v726 = vrot.slane %v689, 1
        %v727 = vsel %vm708, %v713, %v726
        %v728 = vrot.slane %v690, 1
        %v729 = vsel %vm708, %v716, %v728
        %v730 = vrot.slane %v691, 1
        %v731 = vsel %vm708, %v719, %v730
        %v732 = vrot.slane %v692, 1
        %v733 = vsel %vm708, %v722, %v732
        %v749 = vadd.f32 %v618, %v711
        %v750 = vadd.f32 %v619, %v714
        %v751 = vadd.f32 %v620, %v717
        %v752 = vadd.f32 %v621, %v720
        %v753 = vadd.f32 %v622, %v723
        %v754 = vadd.f32 %v623, %v725
        %v755 = vadd.f32 %v624, %v727
        %v756 = vadd.f32 %v625, %v729
        %v757 = vadd.f32 %v626, %v731
        %v758 = vadd.f32 %v627, %v733
        %v759 = vadd.f32 %v628, %v724
        %v760 = vadd.f32 %v629, %v726
        %v761 = vadd.f32 %v630, %v728
        %v762 = vadd.f32 %v631, %v730
        %v763 = vadd.f32 %v632, %v732
        %s764 = scalar_lea.vmem %s1, 4
        %v765 = vld [vmem:[%s764] ss:$8 sm:$0xf]
        %v767 = vlaneseq
        %v768 = vshrl.u32 %v767, 7
        %v769 = vsub.s32 0, %v768
        %v770 = vrot.slane %v765, %v769
        %v771 = vlaneseq
        %v772 = vshrl.u32 %v771, 7
        %v773 = vsub.s32 1, %v772
        %v774 = vrot.slane %v765, %v773
        %v775 = vlaneseq
        %v776 = vshrl.u32 %v775, 7
        %v777 = vsub.s32 2, %v776
        %v778 = vrot.slane %v765, %v777
        %v779 = vlaneseq
        %v780 = vshrl.u32 %v779, 7
        %v781 = vsub.s32 3, %v780
        %v782 = vrot.slane %v765, %v781
        %783 = vrot.lane.b32.xlu0 %v770, 64
        %v784 = vpop.permute.xlu0 %783
        %785 = vrot.lane.b32.xlu0 %v774, 64
        %v786 = vpop.permute.xlu0 %785
        %787 = vrot.lane.b32.xlu0 %v778, 64
        %v788 = vpop.permute.xlu0 %787
        %789 = vrot.lane.b32.xlu0 %v782, 64
        %v790 = vpop.permute.xlu0 %789
        %v791 = vsel %vm384, %v784, %v786
        %v792 = vsel %vm384, %v786, %v788
        %v793 = vsel %vm384, %v788, %v790
        %v799 = vmul.f32 %v633, %v784
        %v800 = vmul.f32 %v634, %v791
        %v801 = vmul.f32 %v635, %v792
        %v802 = vmul.f32 %v636, %v793
        %v803 = vmul.f32 %v637, %v790
        %v804 = vmul.f32 %v282, %v784
        %v805 = vmul.f32 %v283, %v791
        %v806 = vmul.f32 %v284, %v792
        %v807 = vmul.f32 %v285, %v793
        %v808 = vmul.f32 %v286, %v790
        %v809 = vmul.f32 %v638, %v784
        %v810 = vmul.f32 %v639, %v791
        %v811 = vmul.f32 %v640, %v792
        %v812 = vmul.f32 %v641, %v793
        %v813 = vmul.f32 %v642, %v790
        %v829 = vrot.slane %v799, 1
        %v830 = vrot.slane %v804, 1
        %v831 = vsel %vm708, %v829, %v830
        %v832 = vrot.slane %v800, 1
        %v833 = vrot.slane %v805, 1
        %v834 = vsel %vm708, %v832, %v833
        %v835 = vrot.slane %v801, 1
        %v836 = vrot.slane %v806, 1
        %v837 = vsel %vm708, %v835, %v836
        %v838 = vrot.slane %v802, 1
        %v839 = vrot.slane %v807, 1
        %v840 = vsel %vm708, %v838, %v839
        %v841 = vrot.slane %v803, 1
        %v842 = vrot.slane %v808, 1
        %v843 = vsel %vm708, %v841, %v842
        %v844 = vrot.slane %v809, 1
        %v845 = vsel %vm708, %v830, %v844
        %v846 = vrot.slane %v810, 1
        %v847 = vsel %vm708, %v833, %v846
        %v848 = vrot.slane %v811, 1
        %v849 = vsel %vm708, %v836, %v848
        %v850 = vrot.slane %v812, 1
        %v851 = vsel %vm708, %v839, %v850
        %v852 = vrot.slane %v813, 1
        %v853 = vsel %vm708, %v842, %v852
        %854 = vrot.lane.b32.xlu0 %v831, 96
        %v855 = vpop.permute.xlu0 %854
        %856 = vrot.lane.b32.xlu0 %v834, 96
        %v857 = vpop.permute.xlu0 %856
        %858 = vrot.lane.b32.xlu0 %v837, 96
        %v859 = vpop.permute.xlu0 %858
        %860 = vrot.lane.b32.xlu0 %v840, 96
        %v861 = vpop.permute.xlu0 %860
        %862 = vrot.lane.b32.xlu0 %v843, 96
        %v863 = vpop.permute.xlu0 %862
        %864 = vrot.lane.b32.xlu0 %v845, 96
        %v865 = vpop.permute.xlu0 %864
        %866 = vrot.lane.b32.xlu0 %v847, 96
        %v867 = vpop.permute.xlu0 %866
        %868 = vrot.lane.b32.xlu0 %v849, 96
        %v869 = vpop.permute.xlu0 %868
        %870 = vrot.lane.b32.xlu0 %v851, 96
        %v871 = vpop.permute.xlu0 %870
        %872 = vrot.lane.b32.xlu0 %v853, 96
        %v873 = vpop.permute.xlu0 %872
        %874 = vrot.lane.b32.xlu0 %v844, 96
        %v875 = vpop.permute.xlu0 %874
        %876 = vrot.lane.b32.xlu0 %v846, 96
        %v877 = vpop.permute.xlu0 %876
        %878 = vrot.lane.b32.xlu0 %v848, 96
        %v879 = vpop.permute.xlu0 %878
        %880 = vrot.lane.b32.xlu0 %v850, 96
        %v881 = vpop.permute.xlu0 %880
        %882 = vrot.lane.b32.xlu0 %v852, 96
        %v883 = vpop.permute.xlu0 %882
        %v884 = vsel %vm453, %v855, %v857
        %v885 = vsel %vm453, %v857, %v859
        %v886 = vsel %vm453, %v859, %v861
        %v887 = vsel %vm453, %v861, %v863
        %v888 = vsel %vm453, %v865, %v867
        %v889 = vsel %vm453, %v867, %v869
        %v890 = vsel %vm453, %v869, %v871
        %v891 = vsel %vm453, %v871, %v873
        %v892 = vsel %vm453, %v875, %v877
        %v893 = vsel %vm453, %v877, %v879
        %v894 = vsel %vm453, %v879, %v881
        %v895 = vsel %vm453, %v881, %v883
        %v911 = vadd.f32 %v749, %v884
        %v912 = vadd.f32 %v750, %v885
        %v913 = vadd.f32 %v751, %v886
        %v914 = vadd.f32 %v752, %v887
        %v915 = vadd.f32 %v753, %v863
        %v916 = vadd.f32 %v754, %v888
        %v917 = vadd.f32 %v755, %v889
        %v918 = vadd.f32 %v756, %v890
        %v919 = vadd.f32 %v757, %v891
        %v920 = vadd.f32 %v758, %v873
        %v921 = vadd.f32 %v759, %v892
        %v922 = vadd.f32 %v760, %v893
        %v923 = vadd.f32 %v761, %v894
        %v924 = vadd.f32 %v762, %v895
        %v925 = vadd.f32 %v763, %v883
        %s926 = scalar_lea.vmem %s1, 5
        %v927 = vld [vmem:[%s926] ss:$8 sm:$0xf]
        %v929 = vlaneseq
        %v930 = vshrl.u32 %v929, 7
        %v931 = vsub.s32 0, %v930
        %v932 = vrot.slane %v927, %v931
        %v933 = vlaneseq
        %v934 = vshrl.u32 %v933, 7
        %v935 = vsub.s32 1, %v934
        %v936 = vrot.slane %v927, %v935
        %v937 = vlaneseq
        %v938 = vshrl.u32 %v937, 7
        %v939 = vsub.s32 2, %v938
        %v940 = vrot.slane %v927, %v939
        %v941 = vlaneseq
        %v942 = vshrl.u32 %v941, 7
        %v943 = vsub.s32 3, %v942
        %v944 = vrot.slane %v927, %v943
        %945 = vrot.lane.b32.xlu0 %v932, 96
        %v946 = vpop.permute.xlu0 %945
        %947 = vrot.lane.b32.xlu0 %v936, 96
        %v948 = vpop.permute.xlu0 %947
        %949 = vrot.lane.b32.xlu0 %v940, 96
        %v950 = vpop.permute.xlu0 %949
        %951 = vrot.lane.b32.xlu0 %v944, 96
        %v952 = vpop.permute.xlu0 %951
        %v953 = vsel %vm453, %v946, %v948
        %v954 = vsel %vm453, %v948, %v950
        %v955 = vsel %vm453, %v950, %v952
        %v961 = vmul.f32 %v633, %v946
        %v962 = vmul.f32 %v634, %v953
        %v963 = vmul.f32 %v635, %v954
        %v964 = vmul.f32 %v636, %v955
        %v965 = vmul.f32 %v637, %v952
        %v966 = vmul.f32 %v282, %v946
        %v967 = vmul.f32 %v283, %v953
        %v968 = vmul.f32 %v284, %v954
        %v969 = vmul.f32 %v285, %v955
        %v970 = vmul.f32 %v286, %v952
        %v971 = vmul.f32 %v638, %v946
        %v972 = vmul.f32 %v639, %v953
        %v973 = vmul.f32 %v640, %v954
        %v974 = vmul.f32 %v641, %v955
        %v975 = vmul.f32 %v642, %v952
        %v991 = vrot.slane %v961, 1
        %v992 = vrot.slane %v966, 1
        %v993 = vsel %vm708, %v991, %v992
        %v994 = vrot.slane %v962, 1
        %v995 = vrot.slane %v967, 1
        %v996 = vsel %vm708, %v994, %v995
        %v997 = vrot.slane %v963, 1
        %v998 = vrot.slane %v968, 1
        %v999 = vsel %vm708, %v997, %v998
        %v1000 = vrot.slane %v964, 1
        %v1001 = vrot.slane %v969, 1
        %v1002 = vsel %vm708, %v1000, %v1001
        %v1003 = vrot.slane %v965, 1
        %v1004 = vrot.slane %v970, 1
        %v1005 = vsel %vm708, %v1003, %v1004
        %v1006 = vrot.slane %v971, 1
        %v1007 = vsel %vm708, %v992, %v1006
        %v1008 = vrot.slane %v972, 1
        %v1009 = vsel %vm708, %v995, %v1008
        %v1010 = vrot.slane %v973, 1
        %v1011 = vsel %vm708, %v998, %v1010
        %v1012 = vrot.slane %v974, 1
        %v1013 = vsel %vm708, %v1001, %v1012
        %v1014 = vrot.slane %v975, 1
        %v1015 = vsel %vm708, %v1004, %v1014
        %1016 = vrot.lane.b32.xlu0 %v993, 64
        %v1017 = vpop.permute.xlu0 %1016
        %1018 = vrot.lane.b32.xlu0 %v996, 64
        %v1019 = vpop.permute.xlu0 %1018
        %1020 = vrot.lane.b32.xlu0 %v999, 64
        %v1021 = vpop.permute.xlu0 %1020
        %1022 = vrot.lane.b32.xlu0 %v1002, 64
        %v1023 = vpop.permute.xlu0 %1022
        %1024 = vrot.lane.b32.xlu0 %v1005, 64
        %v1025 = vpop.permute.xlu0 %1024
        %1026 = vrot.lane.b32.xlu0 %v1007, 64
        %v1027 = vpop.permute.xlu0 %1026
        %1028 = vrot.lane.b32.xlu0 %v1009, 64
        %v1029 = vpop.permute.xlu0 %1028
        %1030 = vrot.lane.b32.xlu0 %v1011, 64
        %v1031 = vpop.permute.xlu0 %1030
        %1032 = vrot.lane.b32.xlu0 %v1013, 64
        %v1033 = vpop.permute.xlu0 %1032
        %1034 = vrot.lane.b32.xlu0 %v1015, 64
        %v1035 = vpop.permute.xlu0 %1034
        %1036 = vrot.lane.b32.xlu0 %v1006, 64
        %v1037 = vpop.permute.xlu0 %1036
        %1038 = vrot.lane.b32.xlu0 %v1008, 64
        %v1039 = vpop.permute.xlu0 %1038
        %1040 = vrot.lane.b32.xlu0 %v1010, 64
        %v1041 = vpop.permute.xlu0 %1040
        %1042 = vrot.lane.b32.xlu0 %v1012, 64
        %v1043 = vpop.permute.xlu0 %1042
        %1044 = vrot.lane.b32.xlu0 %v1014, 64
        %v1045 = vpop.permute.xlu0 %1044
        %v1046 = vsel %vm384, %v1017, %v1019
        %v1047 = vsel %vm384, %v1019, %v1021
        %v1048 = vsel %vm384, %v1021, %v1023
        %v1049 = vsel %vm384, %v1023, %v1025
        %v1050 = vsel %vm384, %v1027, %v1029
        %v1051 = vsel %vm384, %v1029, %v1031
        %v1052 = vsel %vm384, %v1031, %v1033
        %v1053 = vsel %vm384, %v1033, %v1035
        %v1054 = vsel %vm384, %v1037, %v1039
        %v1055 = vsel %vm384, %v1039, %v1041
        %v1056 = vsel %vm384, %v1041, %v1043
        %v1057 = vsel %vm384, %v1043, %v1045
        %v1073 = vadd.f32 %v911, %v1046
        %v1074 = vadd.f32 %v912, %v1047
        %v1075 = vadd.f32 %v913, %v1048
        %v1076 = vadd.f32 %v914, %v1049
        %v1077 = vadd.f32 %v915, %v1025
        %v1078 = vadd.f32 %v916, %v1050
        %v1079 = vadd.f32 %v917, %v1051
        %v1080 = vadd.f32 %v918, %v1052
        %v1081 = vadd.f32 %v919, %v1053
        %v1082 = vadd.f32 %v920, %v1035
        %v1083 = vadd.f32 %v921, %v1054
        %v1084 = vadd.f32 %v922, %v1055
        %v1085 = vadd.f32 %v923, %v1056
        %v1086 = vadd.f32 %v924, %v1057
        %v1087 = vadd.f32 %v925, %v1045
        %v1088 = vld [vmem:[%s276] sm:$0xf8]
        %v1089 = vld [vmem:[%s276 + $0x8] sm:$0xf8]
        %v1090 = vld [vmem:[%s276 + $0x10] sm:$0xf8]
        %v1091 = vld [vmem:[%s276 + $0x18] sm:$0xf8]
        %v1092 = vld [vmem:[%s276 + $0x20] sm:$0xf8]
        %v1093 = vld [vmem:[%s276 + $0x50] sm:$0x7]
        %v1094 = vld [vmem:[%s276 + $0x58] sm:$0x7]
        %v1095 = vld [vmem:[%s276 + $0x60] sm:$0x7]
        %v1096 = vld [vmem:[%s276 + $0x68] sm:$0x7]
        %v1097 = vld [vmem:[%s276 + $0x70] sm:$0x7]
        %s1098 = scalar_lea.vmem %s1, 6
        %v1099 = vld [vmem:[%s1098] ss:$8 sm:$0xf]
        %v1101 = vlaneseq
        %v1102 = vshrl.u32 %v1101, 7
        %v1103 = vsub.s32 0, %v1102
        %v1104 = vrot.slane %v1099, %v1103
        %v1105 = vlaneseq
        %v1106 = vshrl.u32 %v1105, 7
        %v1107 = vsub.s32 1, %v1106
        %v1108 = vrot.slane %v1099, %v1107
        %v1109 = vlaneseq
        %v1110 = vshrl.u32 %v1109, 7
        %v1111 = vsub.s32 2, %v1110
        %v1112 = vrot.slane %v1099, %v1111
        %v1113 = vlaneseq
        %v1114 = vshrl.u32 %v1113, 7
        %v1115 = vsub.s32 3, %v1114
        %v1116 = vrot.slane %v1099, %v1115
        %1117 = vrot.lane.b32.xlu0 %v1104, 32
        %v1118 = vpop.permute.xlu0 %1117
        %1119 = vrot.lane.b32.xlu0 %v1108, 32
        %v1120 = vpop.permute.xlu0 %1119
        %1121 = vrot.lane.b32.xlu0 %v1112, 32
        %v1122 = vpop.permute.xlu0 %1121
        %1123 = vrot.lane.b32.xlu0 %v1116, 32
        %v1124 = vpop.permute.xlu0 %1123
        %v1125 = vsel %vm318, %v1118, %v1120
        %v1126 = vsel %vm318, %v1120, %v1122
        %v1127 = vsel %vm318, %v1122, %v1124
        %v1133 = vmul.f32 %v1088, %v1118
        %v1134 = vmul.f32 %v1089, %v1125
        %v1135 = vmul.f32 %v1090, %v1126
        %v1136 = vmul.f32 %v1091, %v1127
        %v1137 = vmul.f32 %v1092, %v1124
        %v1138 = vmul.f32 %v282, %v1118
        %v1139 = vmul.f32 %v283, %v1125
        %v1140 = vmul.f32 %v284, %v1126
        %v1141 = vmul.f32 %v285, %v1127
        %v1142 = vmul.f32 %v286, %v1124
        %v1143 = vmul.f32 %v1093, %v1118
        %v1144 = vmul.f32 %v1094, %v1125
        %v1145 = vmul.f32 %v1095, %v1126
        %v1146 = vmul.f32 %v1096, %v1127
        %v1147 = vmul.f32 %v1097, %v1124
        %vm1163 = vcmask 1045504
        %v1164 = vrot.slane %v1133, 2
        %v1165 = vrot.slane %v1138, 2
        %v1166 = vsel %vm1163, %v1164, %v1165
        %v1167 = vrot.slane %v1134, 2
        %v1168 = vrot.slane %v1139, 2
        %v1169 = vsel %vm1163, %v1167, %v1168
        %v1170 = vrot.slane %v1135, 2
        %v1171 = vrot.slane %v1140, 2
        %v1172 = vsel %vm1163, %v1170, %v1171
        %v1173 = vrot.slane %v1136, 2
        %v1174 = vrot.slane %v1141, 2
        %v1175 = vsel %vm1163, %v1173, %v1174
        %v1176 = vrot.slane %v1137, 2
        %v1177 = vrot.slane %v1142, 2
        %v1178 = vsel %vm1163, %v1176, %v1177
        %v1179 = vrot.slane %v1143, 2
        %v1180 = vsel %vm1163, %v1165, %v1179
        %v1181 = vrot.slane %v1144, 2
        %v1182 = vsel %vm1163, %v1168, %v1181
        %v1183 = vrot.slane %v1145, 2
        %v1184 = vsel %vm1163, %v1171, %v1183
        %v1185 = vrot.slane %v1146, 2
        %v1186 = vsel %vm1163, %v1174, %v1185
        %v1187 = vrot.slane %v1147, 2
        %v1188 = vsel %vm1163, %v1177, %v1187
        %v1204 = vadd.f32 %v1073, %v1166
        %v1205 = vadd.f32 %v1074, %v1169
        %v1206 = vadd.f32 %v1075, %v1172
        %v1207 = vadd.f32 %v1076, %v1175
        %v1208 = vadd.f32 %v1077, %v1178
        %v1209 = vadd.f32 %v1078, %v1180
        %v1210 = vadd.f32 %v1079, %v1182
        %v1211 = vadd.f32 %v1080, %v1184
        %v1212 = vadd.f32 %v1081, %v1186
        %v1213 = vadd.f32 %v1082, %v1188
        %v1214 = vadd.f32 %v1083, %v1179
        %v1215 = vadd.f32 %v1084, %v1181
        %v1216 = vadd.f32 %v1085, %v1183
        %v1217 = vadd.f32 %v1086, %v1185
        %v1218 = vadd.f32 %v1087, %v1187
        %s1219 = scalar_lea.vmem %s1, 7
        %v1220 = vld [vmem:[%s1219] ss:$8 sm:$0xf]
        %v1222 = vlaneseq
        %v1223 = vshrl.u32 %v1222, 7
        %v1224 = vsub.s32 0, %v1223
        %v1225 = vrot.slane %v1220, %v1224
        %v1226 = vlaneseq
        %v1227 = vshrl.u32 %v1226, 7
        %v1228 = vsub.s32 1, %v1227
        %v1229 = vrot.slane %v1220, %v1228
        %v1230 = vlaneseq
        %v1231 = vshrl.u32 %v1230, 7
        %v1232 = vsub.s32 2, %v1231
        %v1233 = vrot.slane %v1220, %v1232
        %v1234 = vlaneseq
        %v1235 = vshrl.u32 %v1234, 7
        %v1236 = vsub.s32 3, %v1235
        %v1237 = vrot.slane %v1220, %v1236
        %1238 = vrot.lane.b32.xlu0 %v1225, 64
        %v1239 = vpop.permute.xlu0 %1238
        %1240 = vrot.lane.b32.xlu0 %v1229, 64
        %v1241 = vpop.permute.xlu0 %1240
        %1242 = vrot.lane.b32.xlu0 %v1233, 64
        %v1243 = vpop.permute.xlu0 %1242
        %1244 = vrot.lane.b32.xlu0 %v1237, 64
        %v1245 = vpop.permute.xlu0 %1244
        %v1246 = vsel %vm384, %v1239, %v1241
        %v1247 = vsel %vm384, %v1241, %v1243
        %v1248 = vsel %vm384, %v1243, %v1245
        %v1254 = vmul.f32 %v1088, %v1239
        %v1255 = vmul.f32 %v1089, %v1246
        %v1256 = vmul.f32 %v1090, %v1247
        %v1257 = vmul.f32 %v1091, %v1248
        %v1258 = vmul.f32 %v1092, %v1245
        %v1259 = vmul.f32 %v282, %v1239
        %v1260 = vmul.f32 %v283, %v1246
        %v1261 = vmul.f32 %v284, %v1247
        %v1262 = vmul.f32 %v285, %v1248
        %v1263 = vmul.f32 %v286, %v1245
        %v1264 = vmul.f32 %v1093, %v1239
        %v1265 = vmul.f32 %v1094, %v1246
        %v1266 = vmul.f32 %v1095, %v1247
        %v1267 = vmul.f32 %v1096, %v1248
        %v1268 = vmul.f32 %v1097, %v1245
        %v1284 = vrot.slane %v1254, 2
        %v1285 = vrot.slane %v1259, 2
        %v1286 = vsel %vm1163, %v1284, %v1285
        %v1287 = vrot.slane %v1255, 2
        %v1288 = vrot.slane %v1260, 2
        %v1289 = vsel %vm1163, %v1287, %v1288
        %v1290 = vrot.slane %v1256, 2
        %v1291 = vrot.slane %v1261, 2
        %v1292 = vsel %vm1163, %v1290, %v1291
        %v1293 = vrot.slane %v1257, 2
        %v1294 = vrot.slane %v1262, 2
        %v1295 = vsel %vm1163, %v1293, %v1294
        %v1296 = vrot.slane %v1258, 2
        %v1297 = vrot.slane %v1263, 2
        %v1298 = vsel %vm1163, %v1296, %v1297
        %v1299 = vrot.slane %v1264, 2
        %v1300 = vsel %vm1163, %v1285, %v1299
        %v1301 = vrot.slane %v1265, 2
        %v1302 = vsel %vm1163, %v1288, %v1301
        %v1303 = vrot.slane %v1266, 2
        %v1304 = vsel %vm1163, %v1291, %v1303
        %v1305 = vrot.slane %v1267, 2
        %v1306 = vsel %vm1163, %v1294, %v1305
        %v1307 = vrot.slane %v1268, 2
        %v1308 = vsel %vm1163, %v1297, %v1307
        %1309 = vrot.lane.b32.xlu0 %v1286, 96
        %v1310 = vpop.permute.xlu0 %1309
        %1311 = vrot.lane.b32.xlu0 %v1289, 96
        %v1312 = vpop.permute.xlu0 %1311
        %1313 = vrot.lane.b32.xlu0 %v1292, 96
        %v1314 = vpop.permute.xlu0 %1313
        %1315 = vrot.lane.b32.xlu0 %v1295, 96
        %v1316 = vpop.permute.xlu0 %1315
        %1317 = vrot.lane.b32.xlu0 %v1298, 96
        %v1318 = vpop.permute.xlu0 %1317
        %1319 = vrot.lane.b32.xlu0 %v1300, 96
        %v1320 = vpop.permute.xlu0 %1319
        %1321 = vrot.lane.b32.xlu0 %v1302, 96
        %v1322 = vpop.permute.xlu0 %1321
        %1323 = vrot.lane.b32.xlu0 %v1304, 96
        %v1324 = vpop.permute.xlu0 %1323
        %1325 = vrot.lane.b32.xlu0 %v1306, 96
        %v1326 = vpop.permute.xlu0 %1325
        %1327 = vrot.lane.b32.xlu0 %v1308, 96
        %v1328 = vpop.permute.xlu0 %1327
        %1329 = vrot.lane.b32.xlu0 %v1299, 96
        %v1330 = vpop.permute.xlu0 %1329
        %1331 = vrot.lane.b32.xlu0 %v1301, 96
        %v1332 = vpop.permute.xlu0 %1331
        %1333 = vrot.lane.b32.xlu0 %v1303, 96
        %v1334 = vpop.permute.xlu0 %1333
        %1335 = vrot.lane.b32.xlu0 %v1305, 96
        %v1336 = vpop.permute.xlu0 %1335
        %1337 = vrot.lane.b32.xlu0 %v1307, 96
        %v1338 = vpop.permute.xlu0 %1337
        %v1339 = vsel %vm453, %v1310, %v1312
        %v1340 = vsel %vm453, %v1312, %v1314
        %v1341 = vsel %vm453, %v1314, %v1316
        %v1342 = vsel %vm453, %v1316, %v1318
        %v1343 = vsel %vm453, %v1320, %v1322
        %v1344 = vsel %vm453, %v1322, %v1324
        %v1345 = vsel %vm453, %v1324, %v1326
        %v1346 = vsel %vm453, %v1326, %v1328
        %v1347 = vsel %vm453, %v1330, %v1332
        %v1348 = vsel %vm453, %v1332, %v1334
        %v1349 = vsel %vm453, %v1334, %v1336
        %v1350 = vsel %vm453, %v1336, %v1338
        %v1366 = vadd.f32 %v1204, %v1339
        %v1367 = vadd.f32 %v1205, %v1340
        %v1368 = vadd.f32 %v1206, %v1341
        %v1369 = vadd.f32 %v1207, %v1342
        %v1370 = vadd.f32 %v1208, %v1318
        %v1371 = vadd.f32 %v1209, %v1343
        %v1372 = vadd.f32 %v1210, %v1344
        %v1373 = vadd.f32 %v1211, %v1345
        %v1374 = vadd.f32 %v1212, %v1346
        %v1375 = vadd.f32 %v1213, %v1328
        %v1376 = vadd.f32 %v1214, %v1347
        %v1377 = vadd.f32 %v1215, %v1348
        %v1378 = vadd.f32 %v1216, %v1349
        %v1379 = vadd.f32 %v1217, %v1350
        %v1380 = vadd.f32 %v1218, %v1338
        %s1381 = scalar_lea.vmem %s1, 32
        %v1382 = vld [vmem:[%s1381] ss:$8 sm:$0xf]
        %v1384 = vlaneseq
        %v1385 = vshrl.u32 %v1384, 7
        %v1386 = vsub.s32 0, %v1385
        %v1387 = vrot.slane %v1382, %v1386
        %v1388 = vlaneseq
        %v1389 = vshrl.u32 %v1388, 7
        %v1390 = vsub.s32 1, %v1389
        %v1391 = vrot.slane %v1382, %v1390
        %v1392 = vlaneseq
        %v1393 = vshrl.u32 %v1392, 7
        %v1394 = vsub.s32 2, %v1393
        %v1395 = vrot.slane %v1382, %v1394
        %v1396 = vlaneseq
        %v1397 = vshrl.u32 %v1396, 7
        %v1398 = vsub.s32 3, %v1397
        %v1399 = vrot.slane %v1382, %v1398
        %1400 = vrot.lane.b32.xlu0 %v1387, 96
        %v1401 = vpop.permute.xlu0 %1400
        %1402 = vrot.lane.b32.xlu0 %v1391, 96
        %v1403 = vpop.permute.xlu0 %1402
        %1404 = vrot.lane.b32.xlu0 %v1395, 96
        %v1405 = vpop.permute.xlu0 %1404
        %1406 = vrot.lane.b32.xlu0 %v1399, 96
        %v1407 = vpop.permute.xlu0 %1406
        %v1408 = vsel %vm453, %v1401, %v1403
        %v1409 = vsel %vm453, %v1403, %v1405
        %v1410 = vsel %vm453, %v1405, %v1407
        %v1416 = vmul.f32 %v1088, %v1401
        %v1417 = vmul.f32 %v1089, %v1408
        %v1418 = vmul.f32 %v1090, %v1409
        %v1419 = vmul.f32 %v1091, %v1410
        %v1420 = vmul.f32 %v1092, %v1407
        %v1421 = vmul.f32 %v282, %v1401
        %v1422 = vmul.f32 %v283, %v1408
        %v1423 = vmul.f32 %v284, %v1409
        %v1424 = vmul.f32 %v285, %v1410
        %v1425 = vmul.f32 %v286, %v1407
        %v1426 = vmul.f32 %v1093, %v1401
        %v1427 = vmul.f32 %v1094, %v1408
        %v1428 = vmul.f32 %v1095, %v1409
        %v1429 = vmul.f32 %v1096, %v1410
        %v1430 = vmul.f32 %v1097, %v1407
        %v1446 = vrot.slane %v1416, 2
        %v1447 = vrot.slane %v1421, 2
        %v1448 = vsel %vm1163, %v1446, %v1447
        %v1449 = vrot.slane %v1417, 2
        %v1450 = vrot.slane %v1422, 2
        %v1451 = vsel %vm1163, %v1449, %v1450
        %v1452 = vrot.slane %v1418, 2
        %v1453 = vrot.slane %v1423, 2
        %v1454 = vsel %vm1163, %v1452, %v1453
        %v1455 = vrot.slane %v1419, 2
        %v1456 = vrot.slane %v1424, 2
        %v1457 = vsel %vm1163, %v1455, %v1456
        %v1458 = vrot.slane %v1420, 2
        %v1459 = vrot.slane %v1425, 2
        %v1460 = vsel %vm1163, %v1458, %v1459
        %v1461 = vrot.slane %v1426, 2
        %v1462 = vsel %vm1163, %v1447, %v1461
        %v1463 = vrot.slane %v1427, 2
        %v1464 = vsel %vm1163, %v1450, %v1463
        %v1465 = vrot.slane %v1428, 2
        %v1466 = vsel %vm1163, %v1453, %v1465
        %v1467 = vrot.slane %v1429, 2
        %v1468 = vsel %vm1163, %v1456, %v1467
        %v1469 = vrot.slane %v1430, 2
        %v1470 = vsel %vm1163, %v1459, %v1469
        %1471 = vrot.lane.b32.xlu0 %v1448, 64
        %v1472 = vpop.permute.xlu0 %1471
        %1473 = vrot.lane.b32.xlu0 %v1451, 64
        %v1474 = vpop.permute.xlu0 %1473
        %1475 = vrot.lane.b32.xlu0 %v1454, 64
        %v1476 = vpop.permute.xlu0 %1475
        %1477 = vrot.lane.b32.xlu0 %v1457, 64
        %v1478 = vpop.permute.xlu0 %1477
        %1479 = vrot.lane.b32.xlu0 %v1460, 64
        %v1480 = vpop.permute.xlu0 %1479
        %1481 = vrot.lane.b32.xlu0 %v1462, 64
        %v1482 = vpop.permute.xlu0 %1481
        %1483 = vrot.lane.b32.xlu0 %v1464, 64
        %v1484 = vpop.permute.xlu0 %1483
        %1485 = vrot.lane.b32.xlu0 %v1466, 64
        %v1486 = vpop.permute.xlu0 %1485
        %1487 = vrot.lane.b32.xlu0 %v1468, 64
        %v1488 = vpop.permute.xlu0 %1487
        %1489 = vrot.lane.b32.xlu0 %v1470, 64
        %v1490 = vpop.permute.xlu0 %1489
        %1491 = vrot.lane.b32.xlu0 %v1461, 64
        %v1492 = vpop.permute.xlu0 %1491
        %1493 = vrot.lane.b32.xlu0 %v1463, 64
        %v1494 = vpop.permute.xlu0 %1493
        %1495 = vrot.lane.b32.xlu0 %v1465, 64
        %v1496 = vpop.permute.xlu0 %1495
        %1497 = vrot.lane.b32.xlu0 %v1467, 64
        %v1498 = vpop.permute.xlu0 %1497
        %1499 = vrot.lane.b32.xlu0 %v1469, 64
        %v1500 = vpop.permute.xlu0 %1499
        %v1501 = vsel %vm384, %v1472, %v1474
        %v1502 = vsel %vm384, %v1474, %v1476
        %v1503 = vsel %vm384, %v1476, %v1478
        %v1504 = vsel %vm384, %v1478, %v1480
        %v1505 = vsel %vm384, %v1482, %v1484
        %v1506 = vsel %vm384, %v1484, %v1486
        %v1507 = vsel %vm384, %v1486, %v1488
        %v1508 = vsel %vm384, %v1488, %v1490
        %v1509 = vsel %vm384, %v1492, %v1494
        %v1510 = vsel %vm384, %v1494, %v1496
        %v1511 = vsel %vm384, %v1496, %v1498
        %v1512 = vsel %vm384, %v1498, %v1500
        %v1528 = vadd.f32 %v1366, %v1501
        %v1529 = vadd.f32 %v1367, %v1502
        %v1530 = vadd.f32 %v1368, %v1503
        %v1531 = vadd.f32 %v1369, %v1504
        %v1532 = vadd.f32 %v1370, %v1480
        %v1533 = vadd.f32 %v1371, %v1505
        %v1534 = vadd.f32 %v1372, %v1506
        %v1535 = vadd.f32 %v1373, %v1507
        %v1536 = vadd.f32 %v1374, %v1508
        %v1537 = vadd.f32 %v1375, %v1490
        %v1538 = vadd.f32 %v1376, %v1509
        %v1539 = vadd.f32 %v1377, %v1510
        %v1540 = vadd.f32 %v1378, %v1511
        %v1541 = vadd.f32 %v1379, %v1512
        %v1542 = vadd.f32 %v1380, %v1500
        %v1543 = vld [vmem:[%s2] ss:$2 sm:$0xf]
        %v1545 = vlaneseq
        %v1546 = vshrl.u32 %v1545, 7
        %v1547 = vsub.s32 0, %v1546
        %v1548 = vrot.slane %v1543, %v1547
        %v1549 = vlaneseq
        %v1550 = vshrl.u32 %v1549, 7
        %v1551 = vsub.s32 1, %v1550
        %v1552 = vrot.slane %v1543, %v1551
        %v1553 = vlaneseq
        %v1554 = vshrl.u32 %v1553, 7
        %v1555 = vsub.s32 2, %v1554
        %v1556 = vrot.slane %v1543, %v1555
        %v1557 = vlaneseq
        %v1558 = vshrl.u32 %v1557, 7
        %v1559 = vsub.s32 3, %v1558
        %v1560 = vrot.slane %v1543, %v1559
        %1561 = vrot.lane.b32.xlu0 %v1548, 32
        %v1562 = vpop.permute.xlu0 %1561
        %1563 = vrot.lane.b32.xlu0 %v1552, 32
        %v1564 = vpop.permute.xlu0 %1563
        %1565 = vrot.lane.b32.xlu0 %v1556, 32
        %v1566 = vpop.permute.xlu0 %1565
        %1567 = vrot.lane.b32.xlu0 %v1560, 32
        %v1568 = vpop.permute.xlu0 %1567
        %v1569 = vsel %vm318, %v1562, %v1564
        %v1570 = vsel %vm318, %v1564, %v1566
        %v1571 = vsel %vm318, %v1566, %v1568
        %v1577 = vadd.f32 %v1528, %v1562
        %v1578 = vadd.f32 %v1529, %v1569
        %v1579 = vadd.f32 %v1530, %v1570
        %v1580 = vadd.f32 %v1531, %v1571
        %v1581 = vadd.f32 %v1532, %v1568
        %v1582 = vadd.f32 %v1533, %v1562
        %v1583 = vadd.f32 %v1534, %v1569
        %v1584 = vadd.f32 %v1535, %v1570
        %v1585 = vadd.f32 %v1536, %v1571
        %v1586 = vadd.f32 %v1537, %v1568
        %v1587 = vadd.f32 %v1538, %v1562
        %v1588 = vadd.f32 %v1539, %v1569
        %v1589 = vadd.f32 %v1540, %v1570
        %v1590 = vadd.f32 %v1541, %v1571
        %v1591 = vadd.f32 %v1542, %v1568
        %v1592 = vmax.f32 %v1577, 0.0
        %v1593 = vmax.f32 %v1578, 0.0
        %v1594 = vmax.f32 %v1579, 0.0
        %v1595 = vmax.f32 %v1580, 0.0
        %v1596 = vmax.f32 %v1581, 0.0
        %v1597 = vmax.f32 %v1582, 0.0
        %v1598 = vmax.f32 %v1583, 0.0
        %v1599 = vmax.f32 %v1584, 0.0
        %v1600 = vmax.f32 %v1585, 0.0
        %v1601 = vmax.f32 %v1586, 0.0
        %v1602 = vmax.f32 %v1587, 0.0
        %v1603 = vmax.f32 %v1588, 0.0
        %v1604 = vmax.f32 %v1589, 0.0
        %v1605 = vmax.f32 %v1590, 0.0
        %v1606 = vmax.f32 %v1591, 0.0
        %v1622 = vrot.slane %v1592, 1
        %v1623 = vrot.slane %v1597, 1
        %v1624 = vsel %vm708, %v1622, %v1623
        %v1625 = vrot.slane %v1593, 1
        %v1626 = vrot.slane %v1598, 1
        %v1627 = vsel %vm708, %v1625, %v1626
        %v1628 = vrot.slane %v1594, 1
        %v1629 = vrot.slane %v1599, 1
        %v1630 = vsel %vm708, %v1628, %v1629
        %v1631 = vrot.slane %v1595, 1
        %v1632 = vrot.slane %v1600, 1
        %v1633 = vsel %vm708, %v1631, %v1632
        %v1634 = vrot.slane %v1596, 1
        %v1635 = vrot.slane %v1601, 1
        %v1636 = vsel %vm708, %v1634, %v1635
        %v1637 = vrot.slane %v1602, 1
        %v1638 = vsel %vm708, %v1623, %v1637
        %v1639 = vrot.slane %v1603, 1
        %v1640 = vsel %vm708, %v1626, %v1639
        %v1641 = vrot.slane %v1604, 1
        %v1642 = vsel %vm708, %v1629, %v1641
        %v1643 = vrot.slane %v1605, 1
        %v1644 = vsel %vm708, %v1632, %v1643
        %v1645 = vrot.slane %v1606, 1
        %v1646 = vsel %vm708, %v1635, %v1645
        %1647 = vrot.lane.b32.xlu0 %v1624, 96
        %v1648 = vpop.permute.xlu0 %1647
        %1649 = vrot.lane.b32.xlu0 %v1627, 96
        %v1650 = vpop.permute.xlu0 %1649
        %1651 = vrot.lane.b32.xlu0 %v1630, 96
        %v1652 = vpop.permute.xlu0 %1651
        %1653 = vrot.lane.b32.xlu0 %v1633, 96
        %v1654 = vpop.permute.xlu0 %1653
        %1655 = vrot.lane.b32.xlu0 %v1636, 96
        %v1656 = vpop.permute.xlu0 %1655
        %1657 = vrot.lane.b32.xlu0 %v1638, 96
        %v1658 = vpop.permute.xlu0 %1657
        %1659 = vrot.lane.b32.xlu0 %v1640, 96
        %v1660 = vpop.permute.xlu0 %1659
        %1661 = vrot.lane.b32.xlu0 %v1642, 96
        %v1662 = vpop.permute.xlu0 %1661
        %1663 = vrot.lane.b32.xlu0 %v1644, 96
        %v1664 = vpop.permute.xlu0 %1663
        %1665 = vrot.lane.b32.xlu0 %v1646, 96
        %v1666 = vpop.permute.xlu0 %1665
        %v1667 = vsel %vm453, %v1648, %v1650
        %v1668 = vsel %vm453, %v1650, %v1652
        %v1669 = vsel %vm453, %v1652, %v1654
        %v1670 = vsel %vm453, %v1654, %v1656
        %v1671 = vsel %vm453, %v1658, %v1660
        %v1672 = vsel %vm453, %v1660, %v1662
        %v1673 = vsel %vm453, %v1662, %v1664
        %v1674 = vsel %vm453, %v1664, %v1666
        %1683 = vst [vmem:[#allocation2] sm:$0xff] %v1667
        %1684 = vst [vmem:[#allocation2 + $0x8] sm:$0xff] %v1668
        %1685 = vst [vmem:[#allocation2 + $0x10] sm:$0xff] %v1669
        %1686 = vst [vmem:[#allocation2 + $0x18] sm:$0xff] %v1670
        %1687 = vst [vmem:[#allocation2 + $0x20] sm:$0xff] %v1671
        %1688 = vst [vmem:[#allocation2 + $0x28] sm:$0xff] %v1672
        %1689 = vst [vmem:[#allocation2 + $0x30] sm:$0xff] %v1673
        %1690 = vst [vmem:[#allocation2 + $0x38] sm:$0xff] %v1674
        %vm1701 = vcmask 1047808
        %v1702 = vsel %vm1701, %v1624, 0.0
        %v1703 = vsel %vm1701, %v1638, 0.0
        %v1704 = vadd.f32 %v1702, %v1703
        %v1705 = vrot.slane %v1704, 4
        %v1706 = vadd.f32 %v1704, %v1705
        %v1707 = vrot.slane %v1706, 2
        %v1708 = vadd.f32 %v1706, %v1707
        %v1709 = vrot.slane %v1708, 1
        %v1710 = vadd.f32 %v1708, %v1709
        %v1711 = vadd.f32 %v1627, %v1640
        %v1712 = vrot.slane %v1711, 4
        %v1713 = vadd.f32 %v1711, %v1712
        %v1714 = vrot.slane %v1713, 2
        %v1715 = vadd.f32 %v1713, %v1714
        %v1716 = vrot.slane %v1715, 1
        %v1717 = vadd.f32 %v1715, %v1716
        %v1718 = vadd.f32 %v1630, %v1642
        %v1719 = vrot.slane %v1718, 4
        %v1720 = vadd.f32 %v1718, %v1719
        %v1721 = vrot.slane %v1720, 2
        %v1722 = vadd.f32 %v1720, %v1721
        %v1723 = vrot.slane %v1722, 1
        %v1724 = vadd.f32 %v1722, %v1723
        %v1725 = vadd.f32 %v1633, %v1644
        %v1726 = vrot.slane %v1725, 4
        %v1727 = vadd.f32 %v1725, %v1726
        %v1728 = vrot.slane %v1727, 2
        %v1729 = vadd.f32 %v1727, %v1728
        %v1730 = vrot.slane %v1729, 1
        %v1731 = vadd.f32 %v1729, %v1730
        %v1732 = vsel %vm318, %v1636, 0.0
        %v1733 = vsel %vm318, %v1646, 0.0
        %v1734 = vadd.f32 %v1732, %v1733
        %v1735 = vrot.slane %v1734, 4
        %v1736 = vadd.f32 %v1734, %v1735
        %v1737 = vrot.slane %v1736, 2
        %v1738 = vadd.f32 %v1736, %v1737
        %v1739 = vrot.slane %v1738, 1
        %v1740 = vadd.f32 %v1738, %v1739
        %v1741 = vadd.f32 %v1710, 0.0
        %v1742 = vadd.f32 %v1717, 0.0
        %v1743 = vadd.f32 %v1724, 0.0
        %v1744 = vadd.f32 %v1731, 0.0
        %v1745 = vadd.f32 %v1740, 0.0
        %v1746 = vld [vmem:[%s276] sm:$0xff]
        %v1747 = vld [vmem:[%s276 + $0x8] sm:$0xff]
        %v1748 = vld [vmem:[%s276 + $0x10] sm:$0xff]
        %v1749 = vld [vmem:[%s276 + $0x18] sm:$0xff]
        %v1750 = vld [vmem:[%s276 + $0x28] sm:$0xff]
        %v1751 = vld [vmem:[%s276 + $0x30] sm:$0xff]
        %v1752 = vld [vmem:[%s276 + $0x38] sm:$0xff]
        %v1753 = vld [vmem:[%s276 + $0x40] sm:$0xff]
        %s1754 = scalar_lea.vmem %s1, 64
        %v1755 = vld [vmem:[%s1754] ss:$8 sm:$0xf]
        %v1757 = vlaneseq
        %v1758 = vshrl.u32 %v1757, 7
        %v1759 = vsub.s32 0, %v1758
        %v1760 = vrot.slane %v1755, %v1759
        %v1761 = vlaneseq
        %v1762 = vshrl.u32 %v1761, 7
        %v1763 = vsub.s32 1, %v1762
        %v1764 = vrot.slane %v1755, %v1763
        %v1765 = vlaneseq
        %v1766 = vshrl.u32 %v1765, 7
        %v1767 = vsub.s32 2, %v1766
        %v1768 = vrot.slane %v1755, %v1767
        %v1769 = vlaneseq
        %v1770 = vshrl.u32 %v1769, 7
        %v1771 = vsub.s32 3, %v1770
        %v1772 = vrot.slane %v1755, %v1771
        %v1777 = vmul.f32 %v1746, %v1760
        %v1778 = vmul.f32 %v1747, %v1764
        %v1779 = vmul.f32 %v1748, %v1768
        %v1780 = vmul.f32 %v1749, %v1772
        %v1781 = vmul.f32 %v1750, %v1760
        %v1782 = vmul.f32 %v1751, %v1764
        %v1783 = vmul.f32 %v1752, %v1768
        %v1784 = vmul.f32 %v1753, %v1772
        %v1785 = vadd.f32 %v1777, 0.0
        %v1786 = vadd.f32 %v1778, 0.0
        %v1787 = vadd.f32 %v1779, 0.0
        %v1788 = vadd.f32 %v1780, 0.0
        %v1789 = vadd.f32 %v1781, 0.0
        %v1790 = vadd.f32 %v1782, 0.0
        %v1791 = vadd.f32 %v1783, 0.0
        %v1792 = vadd.f32 %v1784, 0.0
        %v1793 = vld [vmem:[%s276 + $0x20] sm:$0xff]
        %v1794 = vld [vmem:[%s276 + $0x48] sm:$0xff]
        %s1795 = scalar_lea.vmem %s1754, 1
        %v1796 = vld [vmem:[%s1795] ss:$8 sm:$0xf]
        %v1798 = vlaneseq
        %v1799 = vshrl.u32 %v1798, 7
        %v1800 = vsub.s32 0, %v1799
        %v1801 = vrot.slane %v1796, %v1800
        %v1802 = vlaneseq
        %v1803 = vshrl.u32 %v1802, 7
        %v1804 = vsub.s32 1, %v1803
        %v1805 = vrot.slane %v1796, %v1804
        %v1806 = vlaneseq
        %v1807 = vshrl.u32 %v1806, 7
        %v1808 = vsub.s32 2, %v1807
        %v1809 = vrot.slane %v1796, %v1808
        %v1810 = vlaneseq
        %v1811 = vshrl.u32 %v1810, 7
        %v1812 = vsub.s32 3, %v1811
        %v1813 = vrot.slane %v1796, %v1812
        %1814 = vrot.lane.b32.xlu0 %v1801, 64
        %v1815 = vpop.permute.xlu0 %1814
        %1816 = vrot.lane.b32.xlu0 %v1805, 64
        %v1817 = vpop.permute.xlu0 %1816
        %1818 = vrot.lane.b32.xlu0 %v1809, 64
        %v1819 = vpop.permute.xlu0 %1818
        %1820 = vrot.lane.b32.xlu0 %v1813, 64
        %v1821 = vpop.permute.xlu0 %1820
        %v1822 = vsel %vm384, %v1815, %v1817
        %v1823 = vsel %vm384, %v1817, %v1819
        %v1824 = vsel %vm384, %v1819, %v1821
        %v1830 = vmul.f32 %v1746, %v1815
        %v1831 = vmul.f32 %v1747, %v1822
        %v1832 = vmul.f32 %v1748, %v1823
        %v1833 = vmul.f32 %v1749, %v1824
        %v1834 = vmul.f32 %v1793, %v1821
        %v1835 = vmul.f32 %v1750, %v1815
        %v1836 = vmul.f32 %v1751, %v1822
        %v1837 = vmul.f32 %v1752, %v1823
        %v1838 = vmul.f32 %v1753, %v1824
        %v1839 = vmul.f32 %v1794, %v1821
        %1850 = vrot.lane.b32.xlu0 %v1830, 64
        %v1851 = vpop.permute.xlu0 %1850
        %1852 = vrot.lane.b32.xlu0 %v1831, 64
        %v1853 = vpop.permute.xlu0 %1852
        %1854 = vrot.lane.b32.xlu0 %v1832, 64
        %v1855 = vpop.permute.xlu0 %1854
        %1856 = vrot.lane.b32.xlu0 %v1833, 64
        %v1857 = vpop.permute.xlu0 %1856
        %1858 = vrot.lane.b32.xlu0 %v1834, 64
        %v1859 = vpop.permute.xlu0 %1858
        %1860 = vrot.lane.b32.xlu0 %v1835, 64
        %v1861 = vpop.permute.xlu0 %1860
        %1862 = vrot.lane.b32.xlu0 %v1836, 64
        %v1863 = vpop.permute.xlu0 %1862
        %1864 = vrot.lane.b32.xlu0 %v1837, 64
        %v1865 = vpop.permute.xlu0 %1864
        %1866 = vrot.lane.b32.xlu0 %v1838, 64
        %v1867 = vpop.permute.xlu0 %1866
        %1868 = vrot.lane.b32.xlu0 %v1839, 64
        %v1869 = vpop.permute.xlu0 %1868
        %v1870 = vsel %vm384, %v1851, %v1853
        %v1871 = vsel %vm384, %v1853, %v1855
        %v1872 = vsel %vm384, %v1855, %v1857
        %v1873 = vsel %vm384, %v1857, %v1859
        %v1874 = vsel %vm384, %v1861, %v1863
        %v1875 = vsel %vm384, %v1863, %v1865
        %v1876 = vsel %vm384, %v1865, %v1867
        %v1877 = vsel %vm384, %v1867, %v1869
        %v1886 = vadd.f32 %v1785, %v1870
        %v1887 = vadd.f32 %v1786, %v1871
        %v1888 = vadd.f32 %v1787, %v1872
        %v1889 = vadd.f32 %v1788, %v1873
        %v1890 = vadd.f32 %v1789, %v1874
        %v1891 = vadd.f32 %v1790, %v1875
        %v1892 = vadd.f32 %v1791, %v1876
        %v1893 = vadd.f32 %v1792, %v1877
        %s1894 = scalar_lea.vmem %s1754, 2
        %v1895 = vld [vmem:[%s1894] ss:$8 sm:$0xf]
        %v1897 = vlaneseq
        %v1898 = vshrl.u32 %v1897, 7
        %v1899 = vsub.s32 0, %v1898
        %v1900 = vrot.slane %v1895, %v1899
        %v1901 = vlaneseq
        %v1902 = vshrl.u32 %v1901, 7
        %v1903 = vsub.s32 1, %v1902
        %v1904 = vrot.slane %v1895, %v1903
        %v1905 = vlaneseq
        %v1906 = vshrl.u32 %v1905, 7
        %v1907 = vsub.s32 2, %v1906
        %v1908 = vrot.slane %v1895, %v1907
        %v1909 = vlaneseq
        %v1910 = vshrl.u32 %v1909, 7
        %v1911 = vsub.s32 3, %v1910
        %v1912 = vrot.slane %v1895, %v1911
        %v1917 = vmul.f32 %v1747, %v1900
        %v1918 = vmul.f32 %v1748, %v1904
        %v1919 = vmul.f32 %v1749, %v1908
        %v1920 = vmul.f32 %v1793, %v1912
        %v1921 = vmul.f32 %v1751, %v1900
        %v1922 = vmul.f32 %v1752, %v1904
        %v1923 = vmul.f32 %v1753, %v1908
        %v1924 = vmul.f32 %v1794, %v1912
        %v1925 = vadd.f32 %v1886, %v1917
        %v1926 = vadd.f32 %v1887, %v1918
        %v1927 = vadd.f32 %v1888, %v1919
        %v1928 = vadd.f32 %v1889, %v1920
        %v1929 = vadd.f32 %v1890, %v1921
        %v1930 = vadd.f32 %v1891, %v1922
        %v1931 = vadd.f32 %v1892, %v1923
        %v1932 = vadd.f32 %v1893, %v1924
        %v1933 = vld [vmem:[%s276] sm:$0xfc]
        %v1934 = vld [vmem:[%s276 + $0x8] sm:$0xfc]
        %v1935 = vld [vmem:[%s276 + $0x10] sm:$0xfc]
        %v1936 = vld [vmem:[%s276 + $0x18] sm:$0xfc]
        %v1937 = vld [vmem:[%s276 + $0x50] sm:$0x3]
        %v1938 = vld [vmem:[%s276 + $0x58] sm:$0x3]
        %v1939 = vld [vmem:[%s276 + $0x60] sm:$0x3]
        %v1940 = vld [vmem:[%s276 + $0x68] sm:$0x3]
        %s1941 = scalar_lea.vmem %s1754, 3
        %v1942 = vld [vmem:[%s1941] ss:$8 sm:$0xf]
        %v1944 = vlaneseq
        %v1945 = vshrl.u32 %v1944, 7
        %v1946 = vsub.s32 0, %v1945
        %v1947 = vrot.slane %v1942, %v1946
        %v1948 = vlaneseq
        %v1949 = vshrl.u32 %v1948, 7
        %v1950 = vsub.s32 1, %v1949
        %v1951 = vrot.slane %v1942, %v1950
        %v1952 = vlaneseq
        %v1953 = vshrl.u32 %v1952, 7
        %v1954 = vsub.s32 2, %v1953
        %v1955 = vrot.slane %v1942, %v1954
        %v1956 = vlaneseq
        %v1957 = vshrl.u32 %v1956, 7
        %v1958 = vsub.s32 3, %v1957
        %v1959 = vrot.slane %v1942, %v1958
        %v1964 = vmul.f32 %v1933, %v1947
        %v1965 = vmul.f32 %v1934, %v1951
        %v1966 = vmul.f32 %v1935, %v1955
        %v1967 = vmul.f32 %v1936, %v1959
        %v1968 = vmul.f32 %v1750, %v1947
        %v1969 = vmul.f32 %v1751, %v1951
        %v1970 = vmul.f32 %v1752, %v1955
        %v1971 = vmul.f32 %v1753, %v1959
        %v1972 = vmul.f32 %v1937, %v1947
        %v1973 = vmul.f32 %v1938, %v1951
        %v1974 = vmul.f32 %v1939, %v1955
        %v1975 = vmul.f32 %v1940, %v1959
        %v1988 = vrot.slane %v1964, 2
        %v1989 = vrot.slane %v1968, 2
        %v1990 = vsel %vm1163, %v1988, %v1989
        %v1991 = vrot.slane %v1965, 2
        %v1992 = vrot.slane %v1969, 2
        %v1993 = vsel %vm1163, %v1991, %v1992
        %v1994 = vrot.slane %v1966, 2
        %v1995 = vrot.slane %v1970, 2
        %v1996 = vsel %vm1163, %v1994, %v1995
        %v1997 = vrot.slane %v1967, 2
        %v1998 = vrot.slane %v1971, 2
        %v1999 = vsel %vm1163, %v1997, %v1998
        %v2000 = vrot.slane %v1972, 2
        %v2001 = vsel %vm1163, %v1989, %v2000
        %v2002 = vrot.slane %v1973, 2
        %v2003 = vsel %vm1163, %v1992, %v2002
        %v2004 = vrot.slane %v1974, 2
        %v2005 = vsel %vm1163, %v1995, %v2004
        %v2006 = vrot.slane %v1975, 2
        %v2007 = vsel %vm1163, %v1998, %v2006
        %v2016 = vadd.f32 %v1925, %v1990
        %v2017 = vadd.f32 %v1926, %v1993
        %v2018 = vadd.f32 %v1927, %v1996
        %v2019 = vadd.f32 %v1928, %v1999
        %v2020 = vadd.f32 %v1929, %v2001
        %v2021 = vadd.f32 %v1930, %v2003
        %v2022 = vadd.f32 %v1931, %v2005
        %v2023 = vadd.f32 %v1932, %v2007
        %v2024 = vld [vmem:[%s276 + $0x20] sm:$0xfc]
        %v2025 = vld [vmem:[%s276 + $0x70] sm:$0x3]
        %s2026 = scalar_lea.vmem %s1754, 4
        %v2027 = vld [vmem:[%s2026] ss:$8 sm:$0xf]
        %v2029 = vlaneseq
        %v2030 = vshrl.u32 %v2029, 7
        %v2031 = vsub.s32 0, %v2030
        %v2032 = vrot.slane %v2027, %v2031
        %v2033 = vlaneseq
        %v2034 = vshrl.u32 %v2033, 7
        %v2035 = vsub.s32 1, %v2034
        %v2036 = vrot.slane %v2027, %v2035
        %v2037 = vlaneseq
        %v2038 = vshrl.u32 %v2037, 7
        %v2039 = vsub.s32 2, %v2038
        %v2040 = vrot.slane %v2027, %v2039
        %v2041 = vlaneseq
        %v2042 = vshrl.u32 %v2041, 7
        %v2043 = vsub.s32 3, %v2042
        %v2044 = vrot.slane %v2027, %v2043
        %2045 = vrot.lane.b32.xlu0 %v2032, 64
        %v2046 = vpop.permute.xlu0 %2045
        %2047 = vrot.lane.b32.xlu0 %v2036, 64
        %v2048 = vpop.permute.xlu0 %2047
        %2049 = vrot.lane.b32.xlu0 %v2040, 64
        %v2050 = vpop.permute.xlu0 %2049
        %2051 = vrot.lane.b32.xlu0 %v2044, 64
        %v2052 = vpop.permute.xlu0 %2051
        %v2053 = vsel %vm384, %v2046, %v2048
        %v2054 = vsel %vm384, %v2048, %v2050
        %v2055 = vsel %vm384, %v2050, %v2052
        %v2061 = vmul.f32 %v1933, %v2046
        %v2062 = vmul.f32 %v1934, %v2053
        %v2063 = vmul.f32 %v1935, %v2054
        %v2064 = vmul.f32 %v1936, %v2055
        %v2065 = vmul.f32 %v2024, %v2052
        %v2066 = vmul.f32 %v1750, %v2046
        %v2067 = vmul.f32 %v1751, %v2053
        %v2068 = vmul.f32 %v1752, %v2054
        %v2069 = vmul.f32 %v1753, %v2055
        %v2070 = vmul.f32 %v1794, %v2052
        %v2071 = vmul.f32 %v1937, %v2046
        %v2072 = vmul.f32 %v1938, %v2053
        %v2073 = vmul.f32 %v1939, %v2054
        %v2074 = vmul.f32 %v1940, %v2055
        %v2075 = vmul.f32 %v2025, %v2052
        %v2091 = vrot.slane %v2061, 2
        %v2092 = vrot.slane %v2066, 2
        %v2093 = vsel %vm1163, %v2091, %v2092
        %v2094 = vrot.slane %v2062, 2
        %v2095 = vrot.slane %v2067, 2
        %v2096 = vsel %vm1163, %v2094, %v2095
        %v2097 = vrot.slane %v2063, 2
        %v2098 = vrot.slane %v2068, 2
        %v2099 = vsel %vm1163, %v2097, %v2098
        %v2100 = vrot.slane %v2064, 2
        %v2101 = vrot.slane %v2069, 2
        %v2102 = vsel %vm1163, %v2100, %v2101
        %v2103 = vrot.slane %v2065, 2
        %v2104 = vrot.slane %v2070, 2
        %v2105 = vsel %vm1163, %v2103, %v2104
        %v2106 = vrot.slane %v2071, 2
        %v2107 = vsel %vm1163, %v2092, %v2106
        %v2108 = vrot.slane %v2072, 2
        %v2109 = vsel %vm1163, %v2095, %v2108
        %v2110 = vrot.slane %v2073, 2
        %v2111 = vsel %vm1163, %v2098, %v2110
        %v2112 = vrot.slane %v2074, 2
        %v2113 = vsel %vm1163, %v2101, %v2112
        %v2114 = vrot.slane %v2075, 2
        %v2115 = vsel %vm1163, %v2104, %v2114
        %2116 = vrot.lane.b32.xlu0 %v2093, 64
        %v2117 = vpop.permute.xlu0 %2116
        %2118 = vrot.lane.b32.xlu0 %v2096, 64
        %v2119 = vpop.permute.xlu0 %2118
        %2120 = vrot.lane.b32.xlu0 %v2099, 64
        %v2121 = vpop.permute.xlu0 %2120
        %2122 = vrot.lane.b32.xlu0 %v2102, 64
        %v2123 = vpop.permute.xlu0 %2122
        %2124 = vrot.lane.b32.xlu0 %v2105, 64
        %v2125 = vpop.permute.xlu0 %2124
        %2126 = vrot.lane.b32.xlu0 %v2107, 64
        %v2127 = vpop.permute.xlu0 %2126
        %2128 = vrot.lane.b32.xlu0 %v2109, 64
        %v2129 = vpop.permute.xlu0 %2128
        %2130 = vrot.lane.b32.xlu0 %v2111, 64
        %v2131 = vpop.permute.xlu0 %2130
        %2132 = vrot.lane.b32.xlu0 %v2113, 64
        %v2133 = vpop.permute.xlu0 %2132
        %2134 = vrot.lane.b32.xlu0 %v2115, 64
        %v2135 = vpop.permute.xlu0 %2134
        %v2136 = vsel %vm384, %v2117, %v2119
        %v2137 = vsel %vm384, %v2119, %v2121
        %v2138 = vsel %vm384, %v2121, %v2123
        %v2139 = vsel %vm384, %v2123, %v2125
        %v2140 = vsel %vm384, %v2127, %v2129
        %v2141 = vsel %vm384, %v2129, %v2131
        %v2142 = vsel %vm384, %v2131, %v2133
        %v2143 = vsel %vm384, %v2133, %v2135
        %v2152 = vadd.f32 %v2016, %v2136
        %v2153 = vadd.f32 %v2017, %v2137
        %v2154 = vadd.f32 %v2018, %v2138
        %v2155 = vadd.f32 %v2019, %v2139
        %v2156 = vadd.f32 %v2020, %v2140
        %v2157 = vadd.f32 %v2021, %v2141
        %v2158 = vadd.f32 %v2022, %v2142
        %v2159 = vadd.f32 %v2023, %v2143
        %s2160 = scalar_lea.vmem %s1754, 5
        %v2161 = vld [vmem:[%s2160] ss:$8 sm:$0xf]
        %v2163 = vlaneseq
        %v2164 = vshrl.u32 %v2163, 7
        %v2165 = vsub.s32 0, %v2164
        %v2166 = vrot.slane %v2161, %v2165
        %v2167 = vlaneseq
        %v2168 = vshrl.u32 %v2167, 7
        %v2169 = vsub.s32 1, %v2168
        %v2170 = vrot.slane %v2161, %v2169
        %v2171 = vlaneseq
        %v2172 = vshrl.u32 %v2171, 7
        %v2173 = vsub.s32 2, %v2172
        %v2174 = vrot.slane %v2161, %v2173
        %v2175 = vlaneseq
        %v2176 = vshrl.u32 %v2175, 7
        %v2177 = vsub.s32 3, %v2176
        %v2178 = vrot.slane %v2161, %v2177
        %v2183 = vmul.f32 %v1934, %v2166
        %v2184 = vmul.f32 %v1935, %v2170
        %v2185 = vmul.f32 %v1936, %v2174
        %v2186 = vmul.f32 %v2024, %v2178
        %v2187 = vmul.f32 %v1751, %v2166
        %v2188 = vmul.f32 %v1752, %v2170
        %v2189 = vmul.f32 %v1753, %v2174
        %v2190 = vmul.f32 %v1794, %v2178
        %v2191 = vmul.f32 %v1938, %v2166
        %v2192 = vmul.f32 %v1939, %v2170
        %v2193 = vmul.f32 %v1940, %v2174
        %v2194 = vmul.f32 %v2025, %v2178
        %v2207 = vrot.slane %v2183, 2
        %v2208 = vrot.slane %v2187, 2
        %v2209 = vsel %vm1163, %v2207, %v2208
        %v2210 = vrot.slane %v2184, 2
        %v2211 = vrot.slane %v2188, 2
        %v2212 = vsel %vm1163, %v2210, %v2211
        %v2213 = vrot.slane %v2185, 2
        %v2214 = vrot.slane %v2189, 2
        %v2215 = vsel %vm1163, %v2213, %v2214
        %v2216 = vrot.slane %v2186, 2
        %v2217 = vrot.slane %v2190, 2
        %v2218 = vsel %vm1163, %v2216, %v2217
        %v2219 = vrot.slane %v2191, 2
        %v2220 = vsel %vm1163, %v2208, %v2219
        %v2221 = vrot.slane %v2192, 2
        %v2222 = vsel %vm1163, %v2211, %v2221
        %v2223 = vrot.slane %v2193, 2
        %v2224 = vsel %vm1163, %v2214, %v2223
        %v2225 = vrot.slane %v2194, 2
        %v2226 = vsel %vm1163, %v2217, %v2225
        %v2235 = vadd.f32 %v2152, %v2209
        %v2236 = vadd.f32 %v2153, %v2212
        %v2237 = vadd.f32 %v2154, %v2215
        %v2238 = vadd.f32 %v2155, %v2218
        %v2239 = vadd.f32 %v2156, %v2220
        %v2240 = vadd.f32 %v2157, %v2222
        %v2241 = vadd.f32 %v2158, %v2224
        %v2242 = vadd.f32 %v2159, %v2226
        %v2243 = vld [vmem:[%s276] sm:$0xf0]
        %v2244 = vld [vmem:[%s276 + $0x8] sm:$0xf0]
        %v2245 = vld [vmem:[%s276 + $0x10] sm:$0xf0]
        %v2246 = vld [vmem:[%s276 + $0x18] sm:$0xf0]
        %v2247 = vld [vmem:[%s276 + $0x50] sm:$0xf]
        %v2248 = vld [vmem:[%s276 + $0x58] sm:$0xf]
        %v2249 = vld [vmem:[%s276 + $0x60] sm:$0xf]
        %v2250 = vld [vmem:[%s276 + $0x68] sm:$0xf]
        %s2251 = scalar_lea.vmem %s1754, 6
        %v2252 = vld [vmem:[%s2251] ss:$8 sm:$0xf]
        %v2254 = vlaneseq
        %v2255 = vshrl.u32 %v2254, 7
        %v2256 = vsub.s32 0, %v2255
        %v2257 = vrot.slane %v2252, %v2256
        %v2258 = vlaneseq
        %v2259 = vshrl.u32 %v2258, 7
        %v2260 = vsub.s32 1, %v2259
        %v2261 = vrot.slane %v2252, %v2260
        %v2262 = vlaneseq
        %v2263 = vshrl.u32 %v2262, 7
        %v2264 = vsub.s32 2, %v2263
        %v2265 = vrot.slane %v2252, %v2264
        %v2266 = vlaneseq
        %v2267 = vshrl.u32 %v2266, 7
        %v2268 = vsub.s32 3, %v2267
        %v2269 = vrot.slane %v2252, %v2268
        %v2274 = vmul.f32 %v2243, %v2257
        %v2275 = vmul.f32 %v2244, %v2261
        %v2276 = vmul.f32 %v2245, %v2265
        %v2277 = vmul.f32 %v2246, %v2269
        %v2278 = vmul.f32 %v1750, %v2257
        %v2279 = vmul.f32 %v1751, %v2261
        %v2280 = vmul.f32 %v1752, %v2265
        %v2281 = vmul.f32 %v1753, %v2269
        %v2282 = vmul.f32 %v2247, %v2257
        %v2283 = vmul.f32 %v2248, %v2261
        %v2284 = vmul.f32 %v2249, %v2265
        %v2285 = vmul.f32 %v2250, %v2269
        %vm2298 = vcmask 1043456
        %v2299 = vrot.slane %v2274, 4
        %v2300 = vrot.slane %v2278, 4
        %v2301 = vsel %vm2298, %v2299, %v2300
        %v2302 = vrot.slane %v2275, 4
        %v2303 = vrot.slane %v2279, 4
        %v2304 = vsel %vm2298, %v2302, %v2303
        %v2305 = vrot.slane %v2276, 4
        %v2306 = vrot.slane %v2280, 4
        %v2307 = vsel %vm2298, %v2305, %v2306
        %v2308 = vrot.slane %v2277, 4
        %v2309 = vrot.slane %v2281, 4
        %v2310 = vsel %vm2298, %v2308, %v2309
        %v2311 = vrot.slane %v2282, 4
        %v2312 = vsel %vm2298, %v2300, %v2311
        %v2313 = vrot.slane %v2283, 4
        %v2314 = vsel %vm2298, %v2303, %v2313
        %v2315 = vrot.slane %v2284, 4
        %v2316 = vsel %vm2298, %v2306, %v2315
        %v2317 = vrot.slane %v2285, 4
        %v2318 = vsel %vm2298, %v2309, %v2317
        %v2327 = vadd.f32 %v2235, %v2301
        %v2328 = vadd.f32 %v2236, %v2304
        %v2329 = vadd.f32 %v2237, %v2307
        %v2330 = vadd.f32 %v2238, %v2310
        %v2331 = vadd.f32 %v2239, %v2312
        %v2332 = vadd.f32 %v2240, %v2314
        %v2333 = vadd.f32 %v2241, %v2316
        %v2334 = vadd.f32 %v2242, %v2318
        %v2335 = vld [vmem:[%s276 + $0x20] sm:$0xf0]
        %v2336 = vld [vmem:[%s276 + $0x70] sm:$0xf]
        %s2337 = scalar_lea.vmem %s1754, 7
        %v2338 = vld [vmem:[%s2337] ss:$8 sm:$0xf]
        %v2340 = vlaneseq
        %v2341 = vshrl.u32 %v2340, 7
        %v2342 = vsub.s32 0, %v2341
        %v2343 = vrot.slane %v2338, %v2342
        %v2344 = vlaneseq
        %v2345 = vshrl.u32 %v2344, 7
        %v2346 = vsub.s32 1, %v2345
        %v2347 = vrot.slane %v2338, %v2346
        %v2348 = vlaneseq
        %v2349 = vshrl.u32 %v2348, 7
        %v2350 = vsub.s32 2, %v2349
        %v2351 = vrot.slane %v2338, %v2350
        %v2352 = vlaneseq
        %v2353 = vshrl.u32 %v2352, 7
        %v2354 = vsub.s32 3, %v2353
        %v2355 = vrot.slane %v2338, %v2354
        %2356 = vrot.lane.b32.xlu0 %v2343, 64
        %v2357 = vpop.permute.xlu0 %2356
        %2358 = vrot.lane.b32.xlu0 %v2347, 64
        %v2359 = vpop.permute.xlu0 %2358
        %2360 = vrot.lane.b32.xlu0 %v2351, 64
        %v2361 = vpop.permute.xlu0 %2360
        %2362 = vrot.lane.b32.xlu0 %v2355, 64
        %v2363 = vpop.permute.xlu0 %2362
        %v2364 = vsel %vm384, %v2357, %v2359
        %v2365 = vsel %vm384, %v2359, %v2361
        %v2366 = vsel %vm384, %v2361, %v2363
        %v2372 = vmul.f32 %v2243, %v2357
        %v2373 = vmul.f32 %v2244, %v2364
        %v2374 = vmul.f32 %v2245, %v2365
        %v2375 = vmul.f32 %v2246, %v2366
        %v2376 = vmul.f32 %v2335, %v2363
        %v2377 = vmul.f32 %v1750, %v2357
        %v2378 = vmul.f32 %v1751, %v2364
        %v2379 = vmul.f32 %v1752, %v2365
        %v2380 = vmul.f32 %v1753, %v2366
        %v2381 = vmul.f32 %v1794, %v2363
        %v2382 = vmul.f32 %v2247, %v2357
        %v2383 = vmul.f32 %v2248, %v2364
        %v2384 = vmul.f32 %v2249, %v2365
        %v2385 = vmul.f32 %v2250, %v2366
        %v2386 = vmul.f32 %v2336, %v2363
        %v2402 = vrot.slane %v2372, 4
        %v2403 = vrot.slane %v2377, 4
        %v2404 = vsel %vm2298, %v2402, %v2403
        %v2405 = vrot.slane %v2373, 4
        %v2406 = vrot.slane %v2378, 4
        %v2407 = vsel %vm2298, %v2405, %v2406
        %v2408 = vrot.slane %v2374, 4
        %v2409 = vrot.slane %v2379, 4
        %v2410 = vsel %vm2298, %v2408, %v2409
        %v2411 = vrot.slane %v2375, 4
        %v2412 = vrot.slane %v2380, 4
        %v2413 = vsel %vm2298, %v2411, %v2412
        %v2414 = vrot.slane %v2376, 4
        %v2415 = vrot.slane %v2381, 4
        %v2416 = vsel %vm2298, %v2414, %v2415
        %v2417 = vrot.slane %v2382, 4
        %v2418 = vsel %vm2298, %v2403, %v2417
        %v2419 = vrot.slane %v2383, 4
        %v2420 = vsel %vm2298, %v2406, %v2419
        %v2421 = vrot.slane %v2384, 4
        %v2422 = vsel %vm2298, %v2409, %v2421
        %v2423 = vrot.slane %v2385, 4
        %v2424 = vsel %vm2298, %v2412, %v2423
        %v2425 = vrot.slane %v2386, 4
        %v2426 = vsel %vm2298, %v2415, %v2425
        %2427 = vrot.lane.b32.xlu0 %v2404, 64
        %v2428 = vpop.permute.xlu0 %2427
        %2429 = vrot.lane.b32.xlu0 %v2407, 64
        %v2430 = vpop.permute.xlu0 %2429
        %2431 = vrot.lane.b32.xlu0 %v2410, 64
        %v2432 = vpop.permute.xlu0 %2431
        %2433 = vrot.lane.b32.xlu0 %v2413, 64
        %v2434 = vpop.permute.xlu0 %2433
        %2435 = vrot.lane.b32.xlu0 %v2416, 64
        %v2436 = vpop.permute.xlu0 %2435
        %2437 = vrot.lane.b32.xlu0 %v2418, 64
        %v2438 = vpop.permute.xlu0 %2437
        %2439 = vrot.lane.b32.xlu0 %v2420, 64
        %v2440 = vpop.permute.xlu0 %2439
        %2441 = vrot.lane.b32.xlu0 %v2422, 64
        %v2442 = vpop.permute.xlu0 %2441
        %2443 = vrot.lane.b32.xlu0 %v2424, 64
        %v2444 = vpop.permute.xlu0 %2443
        %2445 = vrot.lane.b32.xlu0 %v2426, 64
        %v2446 = vpop.permute.xlu0 %2445
        %v2447 = vsel %vm384, %v2428, %v2430
        %v2448 = vsel %vm384, %v2430, %v2432
        %v2449 = vsel %vm384, %v2432, %v2434
        %v2450 = vsel %vm384, %v2434, %v2436
        %v2451 = vsel %vm384, %v2438, %v2440
        %v2452 = vsel %vm384, %v2440, %v2442
        %v2453 = vsel %vm384, %v2442, %v2444
        %v2454 = vsel %vm384, %v2444, %v2446
        %v2463 = vadd.f32 %v2327, %v2447
        %v2464 = vadd.f32 %v2328, %v2448
        %v2465 = vadd.f32 %v2329, %v2449
        %v2466 = vadd.f32 %v2330, %v2450
        %v2467 = vadd.f32 %v2331, %v2451
        %v2468 = vadd.f32 %v2332, %v2452
        %v2469 = vadd.f32 %v2333, %v2453
        %v2470 = vadd.f32 %v2334, %v2454
        %s2471 = scalar_lea.vmem %s1754, 32
        %v2472 = vld [vmem:[%s2471] ss:$8 sm:$0xf]
        %v2474 = vlaneseq
        %v2475 = vshrl.u32 %v2474, 7
        %v2476 = vsub.s32 0, %v2475
        %v2477 = vrot.slane %v2472, %v2476
        %v2478 = vlaneseq
        %v2479 = vshrl.u32 %v2478, 7
        %v2480 = vsub.s32 1, %v2479
        %v2481 = vrot.slane %v2472, %v2480
        %v2482 = vlaneseq
        %v2483 = vshrl.u32 %v2482, 7
        %v2484 = vsub.s32 2, %v2483
        %v2485 = vrot.slane %v2472, %v2484
        %v2486 = vlaneseq
        %v2487 = vshrl.u32 %v2486, 7
        %v2488 = vsub.s32 3, %v2487
        %v2489 = vrot.slane %v2472, %v2488
        %v2494 = vmul.f32 %v2244, %v2477
        %v2495 = vmul.f32 %v2245, %v2481
        %v2496 = vmul.f32 %v2246, %v2485
        %v2497 = vmul.f32 %v2335, %v2489
        %v2498 = vmul.f32 %v1751, %v2477
        %v2499 = vmul.f32 %v1752, %v2481
        %v2500 = vmul.f32 %v1753, %v2485
        %v2501 = vmul.f32 %v1794, %v2489
        %v2502 = vmul.f32 %v2248, %v2477
        %v2503 = vmul.f32 %v2249, %v2481
        %v2504 = vmul.f32 %v2250, %v2485
        %v2505 = vmul.f32 %v2336, %v2489
        %v2518 = vrot.slane %v2494, 4
        %v2519 = vrot.slane %v2498, 4
        %v2520 = vsel %vm2298, %v2518, %v2519
        %v2521 = vrot.slane %v2495, 4
        %v2522 = vrot.slane %v2499, 4
        %v2523 = vsel %vm2298, %v2521, %v2522
        %v2524 = vrot.slane %v2496, 4
        %v2525 = vrot.slane %v2500, 4
        %v2526 = vsel %vm2298, %v2524, %v2525
        %v2527 = vrot.slane %v2497, 4
        %v2528 = vrot.slane %v2501, 4
        %v2529 = vsel %vm2298, %v2527, %v2528
        %v2530 = vrot.slane %v2502, 4
        %v2531 = vsel %vm2298, %v2519, %v2530
        %v2532 = vrot.slane %v2503, 4
        %v2533 = vsel %vm2298, %v2522, %v2532
        %v2534 = vrot.slane %v2504, 4
        %v2535 = vsel %vm2298, %v2525, %v2534
        %v2536 = vrot.slane %v2505, 4
        %v2537 = vsel %vm2298, %v2528, %v2536
        %v2546 = vadd.f32 %v2463, %v2520
        %v2547 = vadd.f32 %v2464, %v2523
        %v2548 = vadd.f32 %v2465, %v2526
        %v2549 = vadd.f32 %v2466, %v2529
        %v2550 = vadd.f32 %v2467, %v2531
        %v2551 = vadd.f32 %v2468, %v2533
        %v2552 = vadd.f32 %v2469, %v2535
        %v2553 = vadd.f32 %v2470, %v2537
        %s2554 = scalar_lea.vmem %s2, 1
        %v2555 = vld [vmem:[%s2554] ss:$2 sm:$0xf]
        %v2557 = vlaneseq
        %v2558 = vshrl.u32 %v2557, 7
        %v2559 = vsub.s32 0, %v2558
        %v2560 = vrot.slane %v2555, %v2559
        %v2561 = vlaneseq
        %v2562 = vshrl.u32 %v2561, 7
        %v2563 = vsub.s32 1, %v2562
        %v2564 = vrot.slane %v2555, %v2563
        %v2565 = vlaneseq
        %v2566 = vshrl.u32 %v2565, 7
        %v2567 = vsub.s32 2, %v2566
        %v2568 = vrot.slane %v2555, %v2567
        %v2569 = vlaneseq
        %v2570 = vshrl.u32 %v2569, 7
        %v2571 = vsub.s32 3, %v2570
        %v2572 = vrot.slane %v2555, %v2571
        %v2577 = vadd.f32 %v2546, %v2560
        %v2578 = vadd.f32 %v2547, %v2564
        %v2579 = vadd.f32 %v2548, %v2568
        %v2580 = vadd.f32 %v2549, %v2572
        %v2581 = vadd.f32 %v2550, %v2560
        %v2582 = vadd.f32 %v2551, %v2564
        %v2583 = vadd.f32 %v2552, %v2568
        %v2584 = vadd.f32 %v2553, %v2572
        %v2585 = vmax.f32 %v2577, 0.0
        %v2586 = vmax.f32 %v2578, 0.0
        %v2587 = vmax.f32 %v2579, 0.0
        %v2588 = vmax.f32 %v2580, 0.0
        %v2589 = vmax.f32 %v2581, 0.0
        %v2590 = vmax.f32 %v2582, 0.0
        %v2591 = vmax.f32 %v2583, 0.0
        %v2592 = vmax.f32 %v2584, 0.0
        %s2593 = scalar_lea.vmem [#allocation2], 64
        %2594 = vst [vmem:[%s2593] sm:$0xff] %v2585
        %2595 = vst [vmem:[%s2593 + $0x8] sm:$0xff] %v2586
        %2596 = vst [vmem:[%s2593 + $0x10] sm:$0xff] %v2587
        %2597 = vst [vmem:[%s2593 + $0x18] sm:$0xff] %v2588
        %2598 = vst [vmem:[%s2593 + $0x20] sm:$0xff] %v2589
        %2599 = vst [vmem:[%s2593 + $0x28] sm:$0xff] %v2590
        %2600 = vst [vmem:[%s2593 + $0x30] sm:$0xff] %v2591
        %2601 = vst [vmem:[%s2593 + $0x38] sm:$0xff] %v2592
        %v2602 = vadd.f32 %v2585, %v2589
        %v2603 = vrot.slane %v2602, 4
        %v2604 = vadd.f32 %v2602, %v2603
        %v2605 = vrot.slane %v2604, 2
        %v2606 = vadd.f32 %v2604, %v2605
        %v2607 = vrot.slane %v2606, 1
        %v2608 = vadd.f32 %v2606, %v2607
        %v2609 = vadd.f32 %v2586, %v2590
        %v2610 = vrot.slane %v2609, 4
        %v2611 = vadd.f32 %v2609, %v2610
        %v2612 = vrot.slane %v2611, 2
        %v2613 = vadd.f32 %v2611, %v2612
        %v2614 = vrot.slane %v2613, 1
        %v2615 = vadd.f32 %v2613, %v2614
        %v2616 = vadd.f32 %v2587, %v2591
        %v2617 = vrot.slane %v2616, 4
        %v2618 = vadd.f32 %v2616, %v2617
        %v2619 = vrot.slane %v2618, 2
        %v2620 = vadd.f32 %v2618, %v2619
        %v2621 = vrot.slane %v2620, 1
        %v2622 = vadd.f32 %v2620, %v2621
        %v2623 = vadd.f32 %v2588, %v2592
        %v2624 = vrot.slane %v2623, 4
        %v2625 = vadd.f32 %v2623, %v2624
        %v2626 = vrot.slane %v2625, 2
        %v2627 = vadd.f32 %v2625, %v2626
        %v2628 = vrot.slane %v2627, 1
        %v2629 = vadd.f32 %v2627, %v2628
        %2634 = vrot.lane.b32.xlu0 %v2608, 32
        %v2635 = vpop.permute.xlu0 %2634
        %2636 = vrot.lane.b32.xlu0 %v2615, 32
        %v2637 = vpop.permute.xlu0 %2636
        %2638 = vrot.lane.b32.xlu0 %v2622, 32
        %v2639 = vpop.permute.xlu0 %2638
        %2640 = vrot.lane.b32.xlu0 %v2629, 32
        %v2641 = vpop.permute.xlu0 %2640
        %v2642 = vsel %vm318, %v2635, %v2637
        %v2643 = vsel %vm318, %v2637, %v2639
        %v2644 = vsel %vm318, %v2639, %v2641
        %v2650 = vadd.f32 %v1741, %v2635
        %v2651 = vadd.f32 %v1742, %v2642
        %v2652 = vadd.f32 %v1743, %v2643
        %v2653 = vadd.f32 %v1744, %v2644
        %v2654 = vadd.f32 %v1745, %v2641
        %v2655 = vld [vmem:[%s3] sm:$0xff]
        %v2656 = vld [vmem:[%s3 + $0x8] sm:$0xff]
        %v2657 = vld [vmem:[%s3 + $0x10] sm:$0xff]
        %v2658 = vld [vmem:[%s3 + $0x18] sm:$0xff]
        %v2659 = vld [vmem:[%s3 + $0x20] sm:$0xff]
        %v2660 = vld [vmem:[%s3 + $0x28] sm:$0xff]
        %v2661 = vld [vmem:[%s3 + $0x30] sm:$0xff]
        %v2662 = vld [vmem:[%s3 + $0x38] sm:$0xff]
        %v2663 = vld [vmem:[%s3 + $0x40] sm:$0xff]
        %v2664 = vld [vmem:[%s3 + $0x48] sm:$0xff]
        %v2665 = vld [vmem:[%s3 + $0x50] sm:$0xff]
        %v2666 = vld [vmem:[%s3 + $0x58] sm:$0xff]
        %v2667 = vld [vmem:[%s3 + $0x60] sm:$0xff]
        %v2668 = vld [vmem:[%s3 + $0x68] sm:$0xff]
        %v2669 = vld [vmem:[%s3 + $0x70] sm:$0xff]
        %v2670 = vld [vmem:[%s3 + $0x78] sm:$0xff]
        %v2671 = vld [vmem:[%s3 + $0x80] sm:$0xff]
        %v2672 = vld [vmem:[%s3 + $0x88] sm:$0xff]
        %v2673 = vld [vmem:[%s3 + $0x90] sm:$0xff]
        %v2674 = vld [vmem:[%s3 + $0x98] sm:$0xff]
        %v2675 = vld [vmem:[%s3 + $0xa0] sm:$0xff]
        %v2676 = vld [vmem:[%s3 + $0xa8] sm:$0xff]
        %v2677 = vld [vmem:[%s3 + $0xb0] sm:$0xff]
        %v2678 = vld [vmem:[%s3 + $0xb8] sm:$0xff]
        %v2679 = vld [vmem:[%s3 + $0xc0] sm:$0xff]
        %v2680 = vld [vmem:[%s3 + $0xc8] sm:$0xff]
        %v2681 = vld [vmem:[%s3 + $0xd0] sm:$0xff]
        %v2682 = vld [vmem:[%s3 + $0xd8] sm:$0xff]
        %v2683 = vld [vmem:[%s3 + $0xe0] sm:$0xff]
        %v2684 = vld [vmem:[%s3 + $0xe8] sm:$0xff]
        %v2685 = vld [vmem:[%s3 + $0xf0] sm:$0xff]
        %v2686 = vld [vmem:[%s3 + $0xf8] sm:$0xff]
        %v2687 = vld [vmem:[%s3 + $0x100] sm:$0xff]
        %v2688 = vld [vmem:[%s3 + $0x108] sm:$0xff]
        %v2689 = vld [vmem:[%s3 + $0x110] sm:$0xff]
        %v2690 = vld [vmem:[%s3 + $0x118] sm:$0xff]
        %v2691 = vld [vmem:[%s3 + $0x120] sm:$0xff]
        %v2692 = vld [vmem:[%s3 + $0x128] sm:$0xff]
        %v2693 = vld [vmem:[%s3 + $0x130] sm:$0xff]
        %v2694 = vld [vmem:[%s3 + $0x138] sm:$0xff]
        %v2695 = vld [vmem:[%s3 + $0x140] sm:$0xff]
        %v2696 = vld [vmem:[%s3 + $0x148] sm:$0xff]
        %v2697 = vld [vmem:[%s3 + $0x150] sm:$0xff]
        %v2698 = vld [vmem:[%s3 + $0x158] sm:$0xff]
        %v2699 = vld [vmem:[%s3 + $0x160] sm:$0xff]
        %v2700 = vld [vmem:[%s3 + $0x168] sm:$0xff]
        %v2701 = vld [vmem:[%s3 + $0x170] sm:$0xff]
        %v2702 = vld [vmem:[%s3 + $0x178] sm:$0xff]
        %v2703 = vld [vmem:[%s3 + $0x180] sm:$0xff]
        %v2704 = vld [vmem:[%s3 + $0x188] sm:$0xff]
        %v2705 = vld [vmem:[%s3 + $0x190] sm:$0xff]
        %v2706 = vld [vmem:[%s3 + $0x198] sm:$0xff]
        %v2707 = vld [vmem:[%s3 + $0x1a0] sm:$0xff]
        %v2708 = vld [vmem:[%s3 + $0x1a8] sm:$0xff]
        %v2709 = vld [vmem:[%s3 + $0x1b0] sm:$0xff]
        %v2710 = vld [vmem:[%s3 + $0x1b8] sm:$0xff]
        %v2711 = vld [vmem:[%s3 + $0x1c0] sm:$0xff]
        %v2712 = vld [vmem:[%s3 + $0x1c8] sm:$0xff]
        %v2713 = vld [vmem:[%s3 + $0x1d0] sm:$0xff]
        %v2714 = vld [vmem:[%s3 + $0x1d8] sm:$0xff]
        %v2715 = vld [vmem:[%s3 + $0x1e0] sm:$0xff]
        %v2716 = vld [vmem:[%s3 + $0x1e8] sm:$0xff]
        %v2717 = vld [vmem:[%s3 + $0x1f0] sm:$0xff]
        %v2718 = vld [vmem:[%s3 + $0x1f8] sm:$0xff]
        %v2719 = vld [vmem:[%s4] sm:$0x1]
        %2725 = vrot.lane.b32.xlu0 %v2650, 96
        %v2726 = vpop.permute.xlu0 %2725
        %2727 = vrot.lane.b32.xlu0 %v2651, 96
        %v2728 = vpop.permute.xlu0 %2727
        %2729 = vrot.lane.b32.xlu0 %v2652, 96
        %v2730 = vpop.permute.xlu0 %2729
        %2731 = vrot.lane.b32.xlu0 %v2653, 96
        %v2732 = vpop.permute.xlu0 %2731
        %2733 = vrot.lane.b32.xlu0 %v2654, 96
        %v2734 = vpop.permute.xlu0 %2733
        %v2735 = vsel %vm453, %v2726, %v2728
        %v2736 = vsel %vm453, %v2728, %v2730
        %v2737 = vsel %vm453, %v2730, %v2732
        %v2738 = vsel %vm453, %v2732, %v2734
        %2743 = vmatprep.subr.mxu0 0.0
        %2744 = vmatpush1.msra.mxu0 %v2670
        %2745 = vmatprep.subr.mxu0 0.0
        %2746 = vmatpush1.msra.mxu0 %v2669
        %2747 = vmatprep.subr.mxu0 0.0
        %2748 = vmatpush1.msra.mxu0 %v2668
        %2749 = vmatprep.subr.mxu0 0.0
        %2750 = vmatpush1.msra.mxu0 %v2667
        %2751 = vmatprep.subr.mxu0 0.0
        %2752 = vmatpush1.msra.mxu0 %v2666
        %2753 = vmatprep.subr.mxu0 0.0
        %2754 = vmatpush1.msra.mxu0 %v2665
        %2755 = vmatprep.subr.mxu0 0.0
        %2756 = vmatpush1.msra.mxu0 %v2664
        %2757 = vmatprep.subr.mxu0 0.0
        %2758 = vmatpush1.msra.mxu0 %v2663
        %2759 = vmatprep.subr.mxu0 0.0
        %2760 = vmatpush1.msra.mxu0 %v2662
        %2761 = vmatprep.subr.mxu0 0.0
        %2762 = vmatpush1.msra.mxu0 %v2661
        %2763 = vmatprep.subr.mxu0 0.0
        %2764 = vmatpush1.msra.mxu0 %v2660
        %2765 = vmatprep.subr.mxu0 0.0
        %2766 = vmatpush1.msra.mxu0 %v2659
        %2767 = vmatprep.subr.mxu0 0.0
        %2768 = vmatpush1.msra.mxu0 %v2658
        %2769 = vmatprep.subr.mxu0 0.0
        %2770 = vmatpush1.msra.mxu0 %v2657
        %2771 = vmatprep.subr.mxu0 0.0
        %2772 = vmatpush1.msra.mxu0 %v2656
        %2773 = vmatprep.subr.mxu0 0.0
        %2774 = vmatpush1.msra.mxu0 %v2655
        %2775 = vmatprep.subr.mxu0 0.0
        %2776 = vmatpush2.msra.mxu0 %v2686
        %2777 = vmatprep.subr.mxu0 0.0
        %2778 = vmatpush2.msra.mxu0 %v2685
        %2779 = vmatprep.subr.mxu0 0.0
        %2780 = vmatpush2.msra.mxu0 %v2684
        %2781 = vmatprep.subr.mxu0 0.0
        %2782 = vmatpush2.msra.mxu0 %v2683
        %2783 = vmatprep.subr.mxu0 0.0
        %2784 = vmatpush2.msra.mxu0 %v2682
        %2785 = vmatprep.subr.mxu0 0.0
        %2786 = vmatpush2.msra.mxu0 %v2681
        %2787 = vmatprep.subr.mxu0 0.0
        %2788 = vmatpush2.msra.mxu0 %v2680
        %2789 = vmatprep.subr.mxu0 0.0
        %2790 = vmatpush2.msra.mxu0 %v2679
        %2791 = vmatprep.subr.mxu0 0.0
        %2792 = vmatpush2.msra.mxu0 %v2678
        %2793 = vmatprep.subr.mxu0 0.0
        %2794 = vmatpush2.msra.mxu0 %v2677
        %2795 = vmatprep.subr.mxu0 0.0
        %2796 = vmatpush2.msra.mxu0 %v2676
        %2797 = vmatprep.subr.mxu0 0.0
        %2798 = vmatpush2.msra.mxu0 %v2675
        %2799 = vmatprep.subr.mxu0 0.0
        %2800 = vmatpush2.msra.mxu0 %v2674
        %2801 = vmatprep.subr.mxu0 0.0
        %2802 = vmatpush2.msra.mxu0 %v2673
        %2803 = vmatprep.subr.mxu0 0.0
        %2804 = vmatpush2.msra.mxu0 %v2672
        %2805 = vmatprep.subr.mxu0 0.0
        %2806 = vmatpush2.msra.mxu0 %v2671
        %2807 = vmatprep.mubr.f32.mxu0 %v2736
        %2808 = vmatmul.mubr.f32.gmra.mxu0 %v2735
        %v2809 = vpop.f32.mrf.mxu0
        %v2810 = vadd.f32 %v2719, %v2809
        %v2811 = vpop.f32.mrf.mxu0
        %2812 = vdwg.mxu0
        %2813 = vmatprep.subr.mxu0 0.0
        %2814 = vmatpush1.msra.mxu0 %v2702
        %2815 = vmatprep.subr.mxu0 0.0
        %2816 = vmatpush1.msra.mxu0 %v2701
        %2817 = vmatprep.subr.mxu0 0.0
        %2818 = vmatpush1.msra.mxu0 %v2700
        %2819 = vmatprep.subr.mxu0 0.0
        %2820 = vmatpush1.msra.mxu0 %v2699
        %2821 = vmatprep.subr.mxu0 0.0
        %2822 = vmatpush1.msra.mxu0 %v2698
        %2823 = vmatprep.subr.mxu0 0.0
        %2824 = vmatpush1.msra.mxu0 %v2697
        %2825 = vmatprep.subr.mxu0 0.0
        %2826 = vmatpush1.msra.mxu0 %v2696
        %2827 = vmatprep.subr.mxu0 0.0
        %2828 = vmatpush1.msra.mxu0 %v2695
        %2829 = vmatprep.subr.mxu0 0.0
        %2830 = vmatpush1.msra.mxu0 %v2694
        %2831 = vmatprep.subr.mxu0 0.0
        %2832 = vmatpush1.msra.mxu0 %v2693
        %2833 = vmatprep.subr.mxu0 0.0
        %2834 = vmatpush1.msra.mxu0 %v2692
        %2835 = vmatprep.subr.mxu0 0.0
        %2836 = vmatpush1.msra.mxu0 %v2691
        %2837 = vmatprep.subr.mxu0 0.0
        %2838 = vmatpush1.msra.mxu0 %v2690
        %2839 = vmatprep.subr.mxu0 0.0
        %2840 = vmatpush1.msra.mxu0 %v2689
        %2841 = vmatprep.subr.mxu0 0.0
        %2842 = vmatpush1.msra.mxu0 %v2688
        %2843 = vmatprep.subr.mxu0 0.0
        %2844 = vmatpush1.msra.mxu0 %v2687
        %2845 = vmatprep.subr.mxu0 0.0
        %2846 = vmatpush2.msra.mxu0 %v2718
        %2847 = vmatprep.subr.mxu0 0.0
        %2848 = vmatpush2.msra.mxu0 %v2717
        %2849 = vmatprep.subr.mxu0 0.0
        %2850 = vmatpush2.msra.mxu0 %v2716
        %2851 = vmatprep.subr.mxu0 0.0
        %2852 = vmatpush2.msra.mxu0 %v2715
        %2853 = vmatprep.subr.mxu0 0.0
        %2854 = vmatpush2.msra.mxu0 %v2714
        %2855 = vmatprep.subr.mxu0 0.0
        %2856 = vmatpush2.msra.mxu0 %v2713
        %2857 = vmatprep.subr.mxu0 0.0
        %2858 = vmatpush2.msra.mxu0 %v2712
        %2859 = vmatprep.subr.mxu0 0.0
        %2860 = vmatpush2.msra.mxu0 %v2711
        %2861 = vmatprep.subr.mxu0 0.0
        %2862 = vmatpush2.msra.mxu0 %v2710
        %2863 = vmatprep.subr.mxu0 0.0
        %2864 = vmatpush2.msra.mxu0 %v2709
        %2865 = vmatprep.subr.mxu0 0.0
        %2866 = vmatpush2.msra.mxu0 %v2708
        %2867 = vmatprep.subr.mxu0 0.0
        %2868 = vmatpush2.msra.mxu0 %v2707
        %2869 = vmatprep.subr.mxu0 0.0
        %2870 = vmatpush2.msra.mxu0 %v2706
        %2871 = vmatprep.subr.mxu0 0.0
        %2872 = vmatpush2.msra.mxu0 %v2705
        %2873 = vmatprep.subr.mxu0 0.0
        %2874 = vmatpush2.msra.mxu0 %v2704
        %2875 = vmatprep.subr.mxu0 0.0
        %2876 = vmatpush2.msra.mxu0 %v2703
        %2877 = vmatprep.mubr.f32.mxu0 %v2738
        %2878 = vmatmul.mubr.f32.gmra.mxu0 %v2737
        %v2879 = vpop.f32.mrf.mxu0
        %v2880 = vadd.f32 %v2810, %v2879
        %v2881 = vpop.f32.mrf.mxu0
        %2882 = vdwg.mxu0
        %v2883 = vmax.f32 %v2880, 0.0
        %v2884 = vld [vmem:[%s5] sm:$0xff]
        %v2885 = vld [vmem:[%s5 + $0x8] sm:$0xff]
        %v2886 = vld [vmem:[%s5 + $0x10] sm:$0xff]
        %v2887 = vld [vmem:[%s5 + $0x18] sm:$0xff]
        %v2888 = vld [vmem:[%s5 + $0x20] sm:$0xff]
        %v2889 = vld [vmem:[%s5 + $0x28] sm:$0xff]
        %v2890 = vld [vmem:[%s5 + $0x30] sm:$0xff]
        %v2891 = vld [vmem:[%s5 + $0x38] sm:$0xff]
        %v2892 = vld [vmem:[%s5 + $0x40] sm:$0xff]
        %v2893 = vld [vmem:[%s5 + $0x48] sm:$0xff]
        %v2894 = vld [vmem:[%s5 + $0x50] sm:$0xff]
        %v2895 = vld [vmem:[%s5 + $0x58] sm:$0xff]
        %v2896 = vld [vmem:[%s5 + $0x60] sm:$0xff]
        %v2897 = vld [vmem:[%s5 + $0x68] sm:$0xff]
        %v2898 = vld [vmem:[%s5 + $0x70] sm:$0xff]
        %v2899 = vld [vmem:[%s5 + $0x78] sm:$0xff]
        %v2900 = vld [vmem:[%s5 + $0x80] sm:$0xff]
        %v2901 = vld [vmem:[%s5 + $0x88] sm:$0xff]
        %v2902 = vld [vmem:[%s5 + $0x90] sm:$0xff]
        %v2903 = vld [vmem:[%s5 + $0x98] sm:$0xff]
        %v2904 = vld [vmem:[%s5 + $0xa0] sm:$0xff]
        %v2905 = vld [vmem:[%s5 + $0xa8] sm:$0xff]
        %v2906 = vld [vmem:[%s5 + $0xb0] sm:$0xff]
        %v2907 = vld [vmem:[%s5 + $0xb8] sm:$0xff]
        %v2908 = vld [vmem:[%s5 + $0xc0] sm:$0xff]
        %v2909 = vld [vmem:[%s5 + $0xc8] sm:$0xff]
        %v2910 = vld [vmem:[%s5 + $0xd0] sm:$0xff]
        %v2911 = vld [vmem:[%s5 + $0xd8] sm:$0xff]
        %v2912 = vld [vmem:[%s5 + $0xe0] sm:$0xff]
        %v2913 = vld [vmem:[%s5 + $0xe8] sm:$0xff]
        %v2914 = vld [vmem:[%s5 + $0xf0] sm:$0xff]
        %v2915 = vld [vmem:[%s5 + $0xf8] sm:$0xff]
        %v2916 = vld [vmem:[%s6] sm:$0xff]
        %v2918 = vlaneseq
        %v2919 = vshrl.u32 %v2918, 7
        %v2920 = vsub.s32 0, %v2919
        %v2921 = vrot.slane %v2916, %v2920
        %v2922 = vlaneseq
        %v2923 = vshrl.u32 %v2922, 7
        %v2924 = vsub.s32 1, %v2923
        %v2925 = vrot.slane %v2916, %v2924
        %v2926 = vlaneseq
        %v2927 = vshrl.u32 %v2926, 7
        %v2928 = vsub.s32 2, %v2927
        %v2929 = vrot.slane %v2916, %v2928
        %v2930 = vlaneseq
        %v2931 = vshrl.u32 %v2930, 7
        %v2932 = vsub.s32 3, %v2931
        %v2933 = vrot.slane %v2916, %v2932
        %v2934 = vlaneseq
        %v2935 = vshrl.u32 %v2934, 7
        %v2936 = vsub.s32 4, %v2935
        %v2937 = vrot.slane %v2916, %v2936
        %v2938 = vlaneseq
        %v2939 = vshrl.u32 %v2938, 7
        %v2940 = vsub.s32 5, %v2939
        %v2941 = vrot.slane %v2916, %v2940
        %v2942 = vlaneseq
        %v2943 = vshrl.u32 %v2942, 7
        %v2944 = vsub.s32 6, %v2943
        %v2945 = vrot.slane %v2916, %v2944
        %v2946 = vlaneseq
        %v2947 = vshrl.u32 %v2946, 7
        %v2948 = vsub.s32 7, %v2947
        %v2949 = vrot.slane %v2916, %v2948
        %v2959 = vsel %vm318, %v2883, 0
        %2961 = vmatprep.subr.mxu0 0.0
        %2962 = vmatpush1.msra.mxu0 0.0
        %2963 = vmatprep.subr.mxu0 0.0
        %2964 = vmatpush1.msra.mxu0 0.0
        %2965 = vmatprep.subr.mxu0 0.0
        %2966 = vmatpush1.msra.mxu0 0.0
        %2967 = vmatprep.subr.mxu0 0.0
        %2968 = vmatpush1.msra.mxu0 0.0
        %2969 = vmatprep.subr.mxu0 0.0
        %2970 = vmatpush1.msra.mxu0 0.0
        %2971 = vmatprep.subr.mxu0 0.0
        %2972 = vmatpush1.msra.mxu0 0.0
        %2973 = vmatprep.subr.mxu0 0.0
        %2974 = vmatpush1.msra.mxu0 0.0
        %2975 = vmatprep.subr.mxu0 0.0
        %2976 = vmatpush1.msra.mxu0 0.0
        %2977 = vmatprep.subr.mxu0 0.0
        %2978 = vmatpush1.msra.mxu0 0.0
        %2979 = vmatprep.subr.mxu0 0.0
        %2980 = vmatpush1.msra.mxu0 0.0
        %2981 = vmatprep.subr.mxu0 0.0
        %2982 = vmatpush1.msra.mxu0 0.0
        %2983 = vmatprep.subr.mxu0 0.0
        %2984 = vmatpush1.msra.mxu0 0.0
        %2985 = vmatprep.subr.mxu0 %v2909
        %2986 = vmatpush1.msra.mxu0 %v2908
        %2987 = vmatprep.subr.mxu0 %v2901
        %2988 = vmatpush1.msra.mxu0 %v2900
        %2989 = vmatprep.subr.mxu0 %v2893
        %2990 = vmatpush1.msra.mxu0 %v2892
        %2991 = vmatprep.subr.mxu0 %v2885
        %2992 = vmatpush1.msra.mxu0 %v2884
        %2993 = vmatprep.subr.mxu0 0.0
        %2994 = vmatpush2.msra.mxu0 0.0
        %2995 = vmatprep.subr.mxu0 0.0
        %2996 = vmatpush2.msra.mxu0 0.0
        %2997 = vmatprep.subr.mxu0 0.0
        %2998 = vmatpush2.msra.mxu0 0.0
        %2999 = vmatprep.subr.mxu0 0.0
        %3000 = vmatpush2.msra.mxu0 0.0
        %3001 = vmatprep.subr.mxu0 0.0
        %3002 = vmatpush2.msra.mxu0 0.0
        %3003 = vmatprep.subr.mxu0 0.0
        %3004 = vmatpush2.msra.mxu0 0.0
        %3005 = vmatprep.subr.mxu0 0.0
        %3006 = vmatpush2.msra.mxu0 0.0
        %3007 = vmatprep.subr.mxu0 0.0
        %3008 = vmatpush2.msra.mxu0 0.0
        %3009 = vmatprep.subr.mxu0 0.0
        %3010 = vmatpush2.msra.mxu0 0.0
        %3011 = vmatprep.subr.mxu0 0.0
        %3012 = vmatpush2.msra.mxu0 0.0
        %3013 = vmatprep.subr.mxu0 0.0
        %3014 = vmatpush2.msra.mxu0 0.0
        %3015 = vmatprep.subr.mxu0 0.0
        %3016 = vmatpush2.msra.mxu0 0.0
        %3017 = vmatprep.subr.mxu0 0.0
        %3018 = vmatpush2.msra.mxu0 0.0
        %3019 = vmatprep.subr.mxu0 0.0
        %3020 = vmatpush2.msra.mxu0 0.0
        %3021 = vmatprep.subr.mxu0 0.0
        %3022 = vmatpush2.msra.mxu0 0.0
        %3023 = vmatprep.subr.mxu0 0.0
        %3024 = vmatpush2.msra.mxu0 0.0
        %3025 = vmatprep.mubr.f32.mxu0 0.0
        %3026 = vmatmul.mubr.f32.gmra.mxu0 %v2959
        %v3027 = vpop.f32.mrf.mxu0
        %v3028 = vadd.f32 %v2921, %v3027
        %v3029 = vpop.f32.mrf.mxu0
        %v3030 = vadd.f32 %v2925, %v3029
        %3031 = vdwg.mxu0
        %3032 = vmatprep.subr.mxu0 0.0
        %3033 = vmatpush1.msra.mxu0 0.0
        %3034 = vmatprep.subr.mxu0 0.0
        %3035 = vmatpush1.msra.mxu0 0.0
        %3036 = vmatprep.subr.mxu0 0.0
        %3037 = vmatpush1.msra.mxu0 0.0
        %3038 = vmatprep.subr.mxu0 0.0
        %3039 = vmatpush1.msra.mxu0 0.0
        %3040 = vmatprep.subr.mxu0 0.0
        %3041 = vmatpush1.msra.mxu0 0.0
        %3042 = vmatprep.subr.mxu0 0.0
        %3043 = vmatpush1.msra.mxu0 0.0
        %3044 = vmatprep.subr.mxu0 0.0
        %3045 = vmatpush1.msra.mxu0 0.0
        %3046 = vmatprep.subr.mxu0 0.0
        %3047 = vmatpush1.msra.mxu0 0.0
        %3048 = vmatprep.subr.mxu0 0.0
        %3049 = vmatpush1.msra.mxu0 0.0
        %3050 = vmatprep.subr.mxu0 0.0
        %3051 = vmatpush1.msra.mxu0 0.0
        %3052 = vmatprep.subr.mxu0 0.0
        %3053 = vmatpush1.msra.mxu0 0.0
        %3054 = vmatprep.subr.mxu0 0.0
        %3055 = vmatpush1.msra.mxu0 0.0
        %3056 = vmatprep.subr.mxu0 %v2911
        %3057 = vmatpush1.msra.mxu0 %v2910
        %3058 = vmatprep.subr.mxu0 %v2903
        %3059 = vmatpush1.msra.mxu0 %v2902
        %3060 = vmatprep.subr.mxu0 %v2895
        %3061 = vmatpush1.msra.mxu0 %v2894
        %3062 = vmatprep.subr.mxu0 %v2887
        %3063 = vmatpush1.msra.mxu0 %v2886
        %3064 = vmatprep.subr.mxu0 0.0
        %3065 = vmatpush2.msra.mxu0 0.0
        %3066 = vmatprep.subr.mxu0 0.0
        %3067 = vmatpush2.msra.mxu0 0.0
        %3068 = vmatprep.subr.mxu0 0.0
        %3069 = vmatpush2.msra.mxu0 0.0
        %3070 = vmatprep.subr.mxu0 0.0
        %3071 = vmatpush2.msra.mxu0 0.0
        %3072 = vmatprep.subr.mxu0 0.0
        %3073 = vmatpush2.msra.mxu0 0.0
        %3074 = vmatprep.subr.mxu0 0.0
        %3075 = vmatpush2.msra.mxu0 0.0
        %3076 = vmatprep.subr.mxu0 0.0
        %3077 = vmatpush2.msra.mxu0 0.0
        %3078 = vmatprep.subr.mxu0 0.0
        %3079 = vmatpush2.msra.mxu0 0.0
        %3080 = vmatprep.subr.mxu0 0.0
        %3081 = vmatpush2.msra.mxu0 0.0
        %3082 = vmatprep.subr.mxu0 0.0
        %3083 = vmatpush2.msra.mxu0 0.0
        %3084 = vmatprep.subr.mxu0 0.0
        %3085 = vmatpush2.msra.mxu0 0.0
        %3086 = vmatprep.subr.mxu0 0.0
        %3087 = vmatpush2.msra.mxu0 0.0
        %3088 = vmatprep.subr.mxu0 0.0
        %3089 = vmatpush2.msra.mxu0 0.0
        %3090 = vmatprep.subr.mxu0 0.0
        %3091 = vmatpush2.msra.mxu0 0.0
        %3092 = vmatprep.subr.mxu0 0.0
        %3093 = vmatpush2.msra.mxu0 0.0
        %3094 = vmatprep.subr.mxu0 0.0
        %3095 = vmatpush2.msra.mxu0 0.0
        %3096 = vmatprep.mubr.f32.mxu0 0.0
        %3097 = vmatmul.mubr.f32.gmra.mxu0 %v2959
        %v3098 = vpop.f32.mrf.mxu0
        %v3099 = vadd.f32 %v2929, %v3098
        %v3100 = vpop.f32.mrf.mxu0
        %v3101 = vadd.f32 %v2933, %v3100
        %3102 = vdwg.mxu0
        %3103 = vmatprep.subr.mxu0 0.0
        %3104 = vmatpush1.msra.mxu0 0.0
        %3105 = vmatprep.subr.mxu0 0.0
        %3106 = vmatpush1.msra.mxu0 0.0
        %3107 = vmatprep.subr.mxu0 0.0
        %3108 = vmatpush1.msra.mxu0 0.0
        %3109 = vmatprep.subr.mxu0 0.0
        %3110 = vmatpush1.msra.mxu0 0.0
        %3111 = vmatprep.subr.mxu0 0.0
        %3112 = vmatpush1.msra.mxu0 0.0
        %3113 = vmatprep.subr.mxu0 0.0
        %3114 = vmatpush1.msra.mxu0 0.0
        %3115 = vmatprep.subr.mxu0 0.0
        %3116 = vmatpush1.msra.mxu0 0.0
        %3117 = vmatprep.subr.mxu0 0.0
        %3118 = vmatpush1.msra.mxu0 0.0
        %3119 = vmatprep.subr.mxu0 0.0
        %3120 = vmatpush1.msra.mxu0 0.0
        %3121 = vmatprep.subr.mxu0 0.0
        %3122 = vmatpush1.msra.mxu0 0.0
        %3123 = vmatprep.subr.mxu0 0.0
        %3124 = vmatpush1.msra.mxu0 0.0
        %3125 = vmatprep.subr.mxu0 0.0
        %3126 = vmatpush1.msra.mxu0 0.0
        %3127 = vmatprep.subr.mxu0 %v2913
        %3128 = vmatpush1.msra.mxu0 %v2912
        %3129 = vmatprep.subr.mxu0 %v2905
        %3130 = vmatpush1.msra.mxu0 %v2904
        %3131 = vmatprep.subr.mxu0 %v2897
        %3132 = vmatpush1.msra.mxu0 %v2896
        %3133 = vmatprep.subr.mxu0 %v2889
        %3134 = vmatpush1.msra.mxu0 %v2888
        %3135 = vmatprep.subr.mxu0 0.0
        %3136 = vmatpush2.msra.mxu0 0.0
        %3137 = vmatprep.subr.mxu0 0.0
        %3138 = vmatpush2.msra.mxu0 0.0
        %3139 = vmatprep.subr.mxu0 0.0
        %3140 = vmatpush2.msra.mxu0 0.0
        %3141 = vmatprep.subr.mxu0 0.0
        %3142 = vmatpush2.msra.mxu0 0.0
        %3143 = vmatprep.subr.mxu0 0.0
        %3144 = vmatpush2.msra.mxu0 0.0
        %3145 = vmatprep.subr.mxu0 0.0
        %3146 = vmatpush2.msra.mxu0 0.0
        %3147 = vmatprep.subr.mxu0 0.0
        %3148 = vmatpush2.msra.mxu0 0.0
        %3149 = vmatprep.subr.mxu0 0.0
        %3150 = vmatpush2.msra.mxu0 0.0
        %3151 = vmatprep.subr.mxu0 0.0
        %3152 = vmatpush2.msra.mxu0 0.0
        %3153 = vmatprep.subr.mxu0 0.0
        %3154 = vmatpush2.msra.mxu0 0.0
        %3155 = vmatprep.subr.mxu0 0.0
        %3156 = vmatpush2.msra.mxu0 0.0
        %3157 = vmatprep.subr.mxu0 0.0
        %3158 = vmatpush2.msra.mxu0 0.0
        %3159 = vmatprep.subr.mxu0 0.0
        %3160 = vmatpush2.msra.mxu0 0.0
        %3161 = vmatprep.subr.mxu0 0.0
        %3162 = vmatpush2.msra.mxu0 0.0
        %3163 = vmatprep.subr.mxu0 0.0
        %3164 = vmatpush2.msra.mxu0 0.0
        %3165 = vmatprep.subr.mxu0 0.0
        %3166 = vmatpush2.msra.mxu0 0.0
        %3167 = vmatprep.mubr.f32.mxu0 0.0
        %3168 = vmatmul.mubr.f32.gmra.mxu0 %v2959
        %v3169 = vpop.f32.mrf.mxu0
        %v3170 = vadd.f32 %v2937, %v3169
        %v3171 = vpop.f32.mrf.mxu0
        %v3172 = vadd.f32 %v2941, %v3171
        %3173 = vdwg.mxu0
        %3174 = vmatprep.subr.mxu0 0.0
        %3175 = vmatpush1.msra.mxu0 0.0
        %3176 = vmatprep.subr.mxu0 0.0
        %3177 = vmatpush1.msra.mxu0 0.0
        %3178 = vmatprep.subr.mxu0 0.0
        %3179 = vmatpush1.msra.mxu0 0.0
        %3180 = vmatprep.subr.mxu0 0.0
        %3181 = vmatpush1.msra.mxu0 0.0
        %3182 = vmatprep.subr.mxu0 0.0
        %3183 = vmatpush1.msra.mxu0 0.0
        %3184 = vmatprep.subr.mxu0 0.0
        %3185 = vmatpush1.msra.mxu0 0.0
        %3186 = vmatprep.subr.mxu0 0.0
        %3187 = vmatpush1.msra.mxu0 0.0
        %3188 = vmatprep.subr.mxu0 0.0
        %3189 = vmatpush1.msra.mxu0 0.0
        %3190 = vmatprep.subr.mxu0 0.0
        %3191 = vmatpush1.msra.mxu0 0.0
        %3192 = vmatprep.subr.mxu0 0.0
        %3193 = vmatpush1.msra.mxu0 0.0
        %3194 = vmatprep.subr.mxu0 0.0
        %3195 = vmatpush1.msra.mxu0 0.0
        %3196 = vmatprep.subr.mxu0 0.0
        %3197 = vmatpush1.msra.mxu0 0.0
        %3198 = vmatprep.subr.mxu0 %v2915
        %3199 = vmatpush1.msra.mxu0 %v2914
        %3200 = vmatprep.subr.mxu0 %v2907
        %3201 = vmatpush1.msra.mxu0 %v2906
        %3202 = vmatprep.subr.mxu0 %v2899
        %3203 = vmatpush1.msra.mxu0 %v2898
        %3204 = vmatprep.subr.mxu0 %v2891
        %3205 = vmatpush1.msra.mxu0 %v2890
        %3206 = vmatprep.subr.mxu0 0.0
        %3207 = vmatpush2.msra.mxu0 0.0
        %3208 = vmatprep.subr.mxu0 0.0
        %3209 = vmatpush2.msra.mxu0 0.0
        %3210 = vmatprep.subr.mxu0 0.0
        %3211 = vmatpush2.msra.mxu0 0.0
        %3212 = vmatprep.subr.mxu0 0.0
        %3213 = vmatpush2.msra.mxu0 0.0
        %3214 = vmatprep.subr.mxu0 0.0
        %3215 = vmatpush2.msra.mxu0 0.0
        %3216 = vmatprep.subr.mxu0 0.0
        %3217 = vmatpush2.msra.mxu0 0.0
        %3218 = vmatprep.subr.mxu0 0.0
        %3219 = vmatpush2.msra.mxu0 0.0
        %3220 = vmatprep.subr.mxu0 0.0
        %3221 = vmatpush2.msra.mxu0 0.0
        %3222 = vmatprep.subr.mxu0 0.0
        %3223 = vmatpush2.msra.mxu0 0.0
        %3224 = vmatprep.subr.mxu0 0.0
        %3225 = vmatpush2.msra.mxu0 0.0
        %3226 = vmatprep.subr.mxu0 0.0
        %3227 = vmatpush2.msra.mxu0 0.0
        %3228 = vmatprep.subr.mxu0 0.0
        %3229 = vmatpush2.msra.mxu0 0.0
        %3230 = vmatprep.subr.mxu0 0.0
        %3231 = vmatpush2.msra.mxu0 0.0
        %3232 = vmatprep.subr.mxu0 0.0
        %3233 = vmatpush2.msra.mxu0 0.0
        %3234 = vmatprep.subr.mxu0 0.0
        %3235 = vmatpush2.msra.mxu0 0.0
        %3236 = vmatprep.subr.mxu0 0.0
        %3237 = vmatpush2.msra.mxu0 0.0
        %3238 = vmatprep.mubr.f32.mxu0 0.0
        %3239 = vmatmul.mubr.f32.gmra.mxu0 %v2959
        %v3240 = vpop.f32.mrf.mxu0
        %v3241 = vadd.f32 %v2945, %v3240
        %v3242 = vpop.f32.mrf.mxu0
        %v3243 = vadd.f32 %v2949, %v3242
        %3244 = vdwg.mxu0
        %v3245 = vmax.f32 %v3028, %v3170
        %v3246 = vmax.f32 %v3030, %v3172
        %v3247 = vmax.f32 %v3099, %v3241
        %v3248 = vmax.f32 %v3101, %v3243
        %v3249 = vsub.f32 %v3028, %v3245
        %v3250 = vsub.f32 %v3030, %v3246
        %v3251 = vsub.f32 %v3099, %v3247
        %v3252 = vsub.f32 %v3101, %v3248
        %v3253 = vmul.f32 %v3249, 1.442695
        %v3254 = vpow.pop %v3253
        %v3255 = vmul.f32 %v3250, 1.442695
        %v3256 = vpow.pop %v3255
        %v3257 = vmul.f32 %v3251, 1.442695
        %v3258 = vpow.pop %v3257
        %v3259 = vmul.f32 %v3252, 1.442695
        %v3260 = vpow.pop %v3259
        %v3261 = vsub.f32 %v3170, %v3245
        %v3262 = vsub.f32 %v3172, %v3246
        %v3263 = vsub.f32 %v3241, %v3247
        %v3264 = vsub.f32 %v3243, %v3248
        %v3265 = vmul.f32 %v3261, 1.442695
        %v3266 = vpow.pop %v3265
        %v3267 = vmul.f32 %v3262, 1.442695
        %v3268 = vpow.pop %v3267
        %v3269 = vmul.f32 %v3263, 1.442695
        %v3270 = vpow.pop %v3269
        %v3271 = vmul.f32 %v3264, 1.442695
        %v3272 = vpow.pop %v3271
        %v3273 = vadd.f32 %v3254, %v3266
        %v3274 = vadd.f32 %v3256, %v3268
        %v3275 = vadd.f32 %v3258, %v3270
        %v3276 = vadd.f32 %v3260, %v3272
        %v3277 = vrcp.pop %v3273
        %v3278 = vrcp.pop %v3274
        %v3279 = vrcp.pop %v3275
        %v3280 = vrcp.pop %v3276
        %v3281 = vmul.f32 %v3273, %v3277
        %v3282 = vmul.f32 %v3274, %v3278
        %v3283 = vmul.f32 %v3275, %v3279
        %v3284 = vmul.f32 %v3276, %v3280
        %v3285 = vsub.f32 2.0, %v3281
        %v3286 = vsub.f32 2.0, %v3282
        %v3287 = vsub.f32 2.0, %v3283
        %v3288 = vsub.f32 2.0, %v3284
        %v3289 = vmul.f32 %v3277, %v3285
        %v3290 = vmul.f32 %v3278, %v3286
        %v3291 = vmul.f32 %v3279, %v3287
        %v3292 = vmul.f32 %v3280, %v3288
        %v3293 = vld [vmem:[#allocation2] sm:$0xff]
        %v3294 = vld [vmem:[#allocation2 + $0x8] sm:$0xff]
        %v3295 = vld [vmem:[#allocation2 + $0x10] sm:$0xff]
        %v3296 = vld [vmem:[#allocation2 + $0x18] sm:$0xff]
        %v3297 = vld [vmem:[#allocation2 + $0x20] sm:$0xff]
        %v3298 = vld [vmem:[#allocation2 + $0x28] sm:$0xff]
        %v3299 = vld [vmem:[#allocation2 + $0x30] sm:$0xff]
        %v3300 = vld [vmem:[#allocation2 + $0x38] sm:$0xff]
        %v3301 = vmul.f32 %v3254, %v3289
        %v3302 = vmul.f32 %v3256, %v3290
        %v3303 = vmul.f32 %v3258, %v3291
        %v3304 = vmul.f32 %v3260, %v3292
        %v3305 = vlaneseq
        %v3306 = vshrl.u32 %v3305, 7
        %v3307 = vsub.s32 0, %v3306
        %v3308 = vrot.slane %v3301, %v3307
        %v3309 = vlaneseq
        %v3310 = vshrl.u32 %v3309, 7
        %v3311 = vsub.s32 0, %v3310
        %v3312 = vrot.slane %v3302, %v3311
        %v3313 = vlaneseq
        %v3314 = vshrl.u32 %v3313, 7
        %v3315 = vsub.s32 0, %v3314
        %v3316 = vrot.slane %v3303, %v3315
        %v3317 = vlaneseq
        %v3318 = vshrl.u32 %v3317, 7
        %v3319 = vsub.s32 0, %v3318
        %v3320 = vrot.slane %v3304, %v3319
        %v3321 = vmul.f32 %v3293, %v3308
        %v3322 = vmul.f32 %v3294, %v3312
        %v3323 = vmul.f32 %v3295, %v3316
        %v3324 = vmul.f32 %v3296, %v3320
        %v3325 = vmul.f32 %v3297, %v3308
        %v3326 = vmul.f32 %v3298, %v3312
        %v3327 = vmul.f32 %v3299, %v3316
        %v3328 = vmul.f32 %v3300, %v3320
        %v3329 = vld [vmem:[%s2593] sm:$0xff]
        %v3330 = vld [vmem:[%s2593 + $0x8] sm:$0xff]
        %v3331 = vld [vmem:[%s2593 + $0x10] sm:$0xff]
        %v3332 = vld [vmem:[%s2593 + $0x18] sm:$0xff]
        %v3333 = vld [vmem:[%s2593 + $0x20] sm:$0xff]
        %v3334 = vld [vmem:[%s2593 + $0x28] sm:$0xff]
        %v3335 = vld [vmem:[%s2593 + $0x30] sm:$0xff]
        %v3336 = vld [vmem:[%s2593 + $0x38] sm:$0xff]
        %v3337 = vmul.f32 %v3266, %v3289
        %v3338 = vmul.f32 %v3268, %v3290
        %v3339 = vmul.f32 %v3270, %v3291
        %v3340 = vmul.f32 %v3272, %v3292
        %v3341 = vlaneseq
        %v3342 = vshrl.u32 %v3341, 7
        %v3343 = vsub.s32 0, %v3342
        %v3344 = vrot.slane %v3337, %v3343
        %v3345 = vlaneseq
        %v3346 = vshrl.u32 %v3345, 7
        %v3347 = vsub.s32 0, %v3346
        %v3348 = vrot.slane %v3338, %v3347
        %v3349 = vlaneseq
        %v3350 = vshrl.u32 %v3349, 7
        %v3351 = vsub.s32 0, %v3350
        %v3352 = vrot.slane %v3339, %v3351
        %v3353 = vlaneseq
        %v3354 = vshrl.u32 %v3353, 7
        %v3355 = vsub.s32 0, %v3354
        %v3356 = vrot.slane %v3340, %v3355
        %v3357 = vmul.f32 %v3329, %v3344
        %v3358 = vmul.f32 %v3330, %v3348
        %v3359 = vmul.f32 %v3331, %v3352
        %v3360 = vmul.f32 %v3332, %v3356
        %v3361 = vmul.f32 %v3333, %v3344
        %v3362 = vmul.f32 %v3334, %v3348
        %v3363 = vmul.f32 %v3335, %v3352
        %v3364 = vmul.f32 %v3336, %v3356
        %v3365 = vadd.f32 %v3321, %v3357
        %v3366 = vadd.f32 %v3322, %v3358
        %v3367 = vadd.f32 %v3323, %v3359
        %v3368 = vadd.f32 %v3324, %v3360
        %v3369 = vadd.f32 %v3325, %v3361
        %v3370 = vadd.f32 %v3326, %v3362
        %v3371 = vadd.f32 %v3327, %v3363
        %v3372 = vadd.f32 %v3328, %v3364
        %3373 = vst [vmem:[%s271] sm:$0xff] %v3365
        %3374 = vst [vmem:[%s271 + $0x8] sm:$0xff] %v3366
        %3375 = vst [vmem:[%s271 + $0x10] sm:$0xff] %v3367
        %3376 = vst [vmem:[%s271 + $0x18] sm:$0xff] %v3368
        %3377 = vst [vmem:[%s271 + $0x20] sm:$0xff] %v3369
        %3378 = vst [vmem:[%s271 + $0x28] sm:$0xff] %v3370
        %3379 = vst [vmem:[%s271 + $0x30] sm:$0xff] %v3371
        %3380 = vst [vmem:[%s271 + $0x38] sm:$0xff] %v3372
        %s3381 = sand.u32 %s181, 1
        %s3382 = scalar_lea.sflag [#allocation4], %s3381
        %s3383 = sand.u32 %s181, 1
        %s3384 = smul.addr %s3383, 64
        %s3385 = scalar_lea.vmem [#allocation3], %s3384
        // Predicated region
        $region49: #{tpu_custom_call.1} parent=47 // pred_check
          %p3386 = pneg %p191
        $region50: #{tpu_custom_call.1} parent=47 // pred_check_branch
          %3388 = sbr.rel (%p3386) target = $region52
        $region51: #{tpu_custom_call.1} parent=47 // pred_region
          %s3390 = ssub.s32 1024, 1024
          %3391 = vsyncadd %s3382, %s3390
          %s3392 = smul.addr %s21, 8
          %s3393 = smul.addr %s3392, 128
          %s3394 = scalar_lea.hbm %s7, %s3393
          %s3395 = sshll.u32 %s3385, 4
          %s3396 = int_to_ptr.vmem [resolvable:$true] %s3395
          %3401 = dma.vmem_to_hbm [thread:$0]  %s3396, 1024, %s3394, %s3382, 512, 512, 32
        $region52: #{tpu_custom_call.1} parent=47 // pred_fallthru
          _
      $region48: #{tpu_custom_call.1} parent=5 // pred_fallthru
        _
      %p3402 = scmp.le.s32.totalorder 2, %s16
      // Predicated region
      $region53: #{tpu_custom_call.1} parent=5 // pred_check
        %p3403 = pneg %p3402
      $region54: #{tpu_custom_call.1} parent=5 // pred_check_branch
        %3405 = sbr.rel (%p3403) target = $region56
      $region55: #{tpu_custom_call.1} parent=5 // pred_region
        %s3406 = ssub.s32 %s16, 2
        // Predicated region
        $region57: #{tpu_custom_call.1} parent=55 // pred_check
          %p3407 = pneg %p197
        $region58: #{tpu_custom_call.1} parent=55 // pred_check_branch
          %3409 = sbr.rel (%p3407) target = $region60
        $region59: #{tpu_custom_call.1} parent=55 // pred_region
          %s3410 = sand.u32 %s182, 1
          %s3411 = scalar_lea.sflag [#allocation4], %s3410
          %s3412 = sand.u32 %s182, 1
          %s3413 = smul.addr %s3412, 64
          %s3414 = scalar_lea.vmem [#allocation3], %s3413
          %3415 = dma.done %s3411, 1024
        $region60: #{tpu_custom_call.1} parent=55 // pred_fallthru
          _
      $region56: #{tpu_custom_call.1} parent=5 // pred_fallthru
        _
    $region6: #{tpu_custom_call.1} parent=1 // loop_footer
      %s20 = sadd.s32 1, %s16
    $region7: #{tpu_custom_call.1} parent=1 // loop_footer_branch
      %15 = sbr.rel target = $region3
    $region8: #{tpu_custom_call.1} parent=1 // loop_exit
      _
    %3416 = vsyncpa [#allocation4], 1
    %s3417 = scalar_lea.sflag [#allocation4], 1
    %3418 = vsyncpa %s3417, 1

</llo_original>
